<compile_context>
chip_gen: v5e
topology: v5e:2x2
jax: 0.10.0
libtpu: 0.0.40
codegen_flags: <defaults>
</compile_context>

<pallas_src>
import functools

import jax
import jax.numpy as jnp
from jax import lax
from jax.experimental import pallas as pl
from jax.experimental.pallas import tpu as pltpu

MAX_LAG = 29
BN_EPS = 1e-5
LRELU_SLOPE = 0.2


def _round_up(x, m):
    return (x + m - 1) // m * m


# ---------------------------------------------------------------------------
# In-kernel helpers
# ---------------------------------------------------------------------------

def _bn_lrelu(y, prm, mask, inv_m, eps, slope):
    """bias + training-mode BatchNorm (stats over rows where mask) + LeakyReLU.

    y    : (Mp, Np) f32 matmul accumulator
    prm  : (8, Np) f32 slab: row0=bias, row1=gamma, row2=beta (rest zero)
    mask : (Mp, 1) bool -- True for real (non-padded) rows; stats divide by true M.
    """
    bias, gamma, beta = prm[0:1, :], prm[1:2, :], prm[2:3, :]
    y = y + bias
    ym = jnp.where(mask, y, 0.0)
    mean = jnp.sum(ym, axis=0, keepdims=True) * inv_m
    d = jnp.where(mask, y - mean, 0.0)
    var = jnp.sum(d * d, axis=0, keepdims=True) * inv_m        # biased var (PyTorch BN fwd)
    z = (y - mean) * lax.rsqrt(var + eps) * gamma + beta
    z = jnp.where(z > 0, z, slope * z)                          # LeakyReLU(0.2)
    return jnp.where(mask, z, 0.0)                              # keep padded rows zero


def _mm_bn_lrelu_kernel(x_ref, w_ref, prm_ref, o_ref, *, m_true, eps, slope):
    """(Mp,Kp)@(Kp,Np) on the MXU + fused bias/BN/LeakyReLU epilogue, single grid step."""
    acc = jnp.dot(x_ref[...], w_ref[...], preferred_element_type=jnp.float32)
    mask = lax.broadcasted_iota(jnp.int32, (acc.shape[0], 1), 0) < m_true
    o_ref[...] = _bn_lrelu(acc, prm_ref[...], mask, 1.0 / m_true, eps, slope)


def _mlp_kernel(x_ref, w1_ref, p1_ref, w2_ref, p2_ref, w3_ref, b3_ref, o_ref,
                *, m_true, eps, slope):
    """Entire D3 MLP fused: Linear->BN->LReLU, Linear->BN->LReLU, Linear."""
    mask = lax.broadcasted_iota(jnp.int32, (x_ref.shape[0], 1), 0) < m_true
    inv_m = 1.0 / m_true
    h = jnp.dot(x_ref[...], w1_ref[...], preferred_element_type=jnp.float32)
    h = _bn_lrelu(h, p1_ref[...], mask, inv_m, eps, slope)
    h = jnp.dot(h.astype(jnp.bfloat16), w2_ref[...], preferred_element_type=jnp.float32)
    h = _bn_lrelu(h, p2_ref[...], mask, inv_m, eps, slope)
    h = jnp.dot(h.astype(jnp.bfloat16), w3_ref[...], preferred_element_type=jnp.float32)
    o_ref[...] = h + b3_ref[0:1, :]


# ---------------------------------------------------------------------------
# Wrappers (padding, param packing, pallas_call plumbing)
# ---------------------------------------------------------------------------

def _pack_prm(bias, gamma, beta, npad):
    prm = jnp.zeros((8, npad), jnp.float32)
    prm = prm.at[0, :bias.shape[0]].set(bias.astype(jnp.float32))
    prm = prm.at[1, :gamma.shape[0]].set(gamma.astype(jnp.float32))
    prm = prm.at[2, :beta.shape[0]].set(beta.astype(jnp.float32))
    return prm


def matmul_bn_lrelu(x, w, bias, gamma, beta):
    """LeakyReLU(BatchNorm_train(x @ w + bias)), one single-step Pallas kernel."""
    M, K = x.shape
    K2, N = w.shape
    assert K == K2
    Mp, Kp, Np = _round_up(M, 8), _round_up(K, 128), _round_up(N, 128)
    xp = jnp.pad(x.astype(jnp.bfloat16), ((0, Mp - M), (0, Kp - K)))
    wp = jnp.pad(w.astype(jnp.bfloat16), ((0, Kp - K), (0, Np - N)))
    prm = _pack_prm(bias, gamma, beta, Np)
    kern = functools.partial(_mm_bn_lrelu_kernel, m_true=M, eps=BN_EPS, slope=LRELU_SLOPE)
    out = pl.pallas_call(
        kern,
        out_shape=jax.ShapeDtypeStruct((Mp, Np), jnp.float32),
        grid=(1,),
        in_specs=[pl.BlockSpec((Mp, Kp), lambda i: (0, 0)),
                  pl.BlockSpec((Kp, Np), lambda i: (0, 0)),
                  pl.BlockSpec((8, Np), lambda i: (0, 0))],
        out_specs=pl.BlockSpec((Mp, Np), lambda i: (0, 0)),
        compiler_params=pltpu.CompilerParams(dimension_semantics=("arbitrary",)),
    )(xp, wp, prm)
    return out[:M, :N]


def conv_bn_lrelu(x_nhwc, wgt, bias, gamma, beta, *, stride, pad):
    """Conv2d(stride,pad) + BatchNorm2d (batch stats) + LeakyReLU(0.2); NHWC in/out."""
    n = x_nhwc.shape[0]
    cout, cin, k, _ = wgt.shape
    # Patches: (N, Ho, Wo, Cin*k*k); feature order (Cin, kh, kw) == PyTorch weight layout.
    patches = lax.conv_general_dilated_patches(
        x_nhwc, (k, k), (stride, stride), ((pad, pad), (pad, pad)),
        dimension_numbers=("NHWC", "HWIO", "NHWC"))
    _, ho, wo, kk = patches.shape
    cols = patches.reshape(n * ho * wo, kk)
    wmat = wgt.reshape(cout, cin * k * k).T                   # (Cin*k*k, Cout)
    y = matmul_bn_lrelu(cols, wmat, bias, gamma, beta)        # BN stats over N,Ho,Wo rows
    return y.reshape(n, ho, wo, cout)                         # stays channels-last


def d3_mlp(x, p):
    """Fused D3: Linear->BN1d->LReLU -> Linear->BN1d->LReLU -> Linear, one pallas_call."""
    M, K = x.shape
    Mp, Kp = _round_up(M, 8), _round_up(K, 128)
    N1, N2, N3 = p["d3l1_w"].shape[1], p["d3l2_w"].shape[1], p["d3l3_w"].shape[1]
    N1p, N2p, N3p = _round_up(N1, 128), _round_up(N2, 128), _round_up(N3, 128)

    xp = jnp.pad(x.astype(jnp.bfloat16), ((0, Mp - M), (0, Kp - K)))
    w1 = jnp.pad(p["d3l1_w"].astype(jnp.bfloat16), ((0, Kp - K), (0, N1p - N1)))
    w2 = jnp.pad(p["d3l2_w"].astype(jnp.bfloat16), ((0, N1p - N1), (0, N2p - N2)))
    w3 = jnp.pad(p["d3l3_w"].astype(jnp.bfloat16), ((0, N2p - N2), (0, N3p - N3)))
    p1 = _pack_prm(p["d3l1_b"], p["d3bn1_g"], p["d3bn1_b"], N1p)
    p2 = _pack_prm(p["d3l2_b"], p["d3bn2_g"], p["d3bn2_b"], N2p)
    b3 = jnp.zeros((8, N3p), jnp.float32).at[0, :N3].set(p["d3l3_b"].astype(jnp.float32))

    kern = functools.partial(_mlp_kernel, m_true=M, eps=BN_EPS, slope=LRELU_SLOPE)
    out = pl.pallas_call(
        kern,
        out_shape=jax.ShapeDtypeStruct((Mp, N3p), jnp.float32),
        grid=(1,),
        in_specs=[pl.BlockSpec((Mp, Kp), lambda i: (0, 0)),
                  pl.BlockSpec((Kp, N1p), lambda i: (0, 0)),
                  pl.BlockSpec((8, N1p), lambda i: (0, 0)),
                  pl.BlockSpec((N1p, N2p), lambda i: (0, 0)),
                  pl.BlockSpec((8, N2p), lambda i: (0, 0)),
                  pl.BlockSpec((N2p, N3p), lambda i: (0, 0)),
                  pl.BlockSpec((8, N3p), lambda i: (0, 0))],
        out_specs=pl.BlockSpec((Mp, N3p), lambda i: (0, 0)),
        compiler_params=pltpu.CompilerParams(dimension_semantics=("arbitrary",)),
    )(xp, w1, p1, w2, p2, w3, b3)
    return out[:M, :N3]


# ---------------------------------------------------------------------------
# Parameters + forward
# ---------------------------------------------------------------------------

def init_params(key, d3_in):
    keys = jax.random.split(key, 8)

    def conv_w(k_, cout, cin, ksz):
        return jax.random.normal(k_, (cout, cin, ksz, ksz), jnp.float32) / jnp.sqrt(cin * ksz * ksz)

    def lin_w(k_, fin, fout):
        return jax.random.normal(k_, (fin, fout), jnp.float32) / jnp.sqrt(fin)

    p = {}
    # D1: Conv2d(1,64,5,2,p=1)->BN->LReLU -> Conv2d(64,128,4,1,p=1)->BN->LReLU
    p["d1c1_w"] = conv_w(keys[0], 64, 1, 5);   p["d1c1_b"] = jnp.zeros((64,))
    p["d1bn1_g"] = jnp.ones((64,));            p["d1bn1_b"] = jnp.zeros((64,))
    p["d1c2_w"] = conv_w(keys[1], 128, 64, 4); p["d1c2_b"] = jnp.zeros((128,))
    p["d1bn2_g"] = jnp.ones((128,));           p["d1bn2_b"] = jnp.zeros((128,))
    # D2: Conv2d(1,32,5,2,p=1)->BN->LReLU -> Conv2d(32,64,5,2,p=1)->BN->LReLU
    p["d2c1_w"] = conv_w(keys[2], 32, 1, 5);   p["d2c1_b"] = jnp.zeros((32,))
    p["d2bn1_g"] = jnp.ones((32,));            p["d2bn1_b"] = jnp.zeros((32,))
    p["d2c2_w"] = conv_w(keys[3], 64, 32, 5);  p["d2c2_b"] = jnp.zeros((64,))
    p["d2bn2_g"] = jnp.ones((64,));            p["d2bn2_b"] = jnp.zeros((64,))
    # D3: Linear -> BN1d -> LReLU -> Linear -> BN1d -> LReLU -> Linear
    p["d3l1_w"] = lin_w(keys[4], d3_in, 128);  p["d3l1_b"] = jnp.zeros((128,))
    p["d3bn1_g"] = jnp.ones((128,));           p["d3bn1_b"] = jnp.zeros((128,))
    p["d3l2_w"] = lin_w(keys[5], 128, 64);     p["d3l2_b"] = jnp.zeros((64,))
    p["d3bn2_g"] = jnp.ones((64,));            p["d3bn2_b"] = jnp.zeros((64,))
    p["d3l3_w"] = lin_w(keys[6], 64, 1);       p["d3l3_b"] = jnp.zeros((1,))
    return p


def discriminator_forward(params, X, Y, conditional):
    """X, Y: NCHW float32 (as in the PyTorch module). conditional: (N,) lags in [1, 29]."""
    n = X.shape[0]
    Xh = jnp.transpose(X, (0, 2, 3, 1))                        # to NHWC once per branch
    Yh = jnp.transpose(Y, (0, 2, 3, 1))
    # D1(X)
    h = conv_bn_lrelu(Xh, params["d1c1_w"], params["d1c1_b"],
                      params["d1bn1_g"], params["d1bn1_b"], stride=2, pad=1)
    h = conv_bn_lrelu(h, params["d1c2_w"], params["d1c2_b"],
                      params["d1bn2_g"], params["d1bn2_b"], stride=1, pad=1)
    disc_X = jnp.transpose(h, (0, 3, 1, 2)).reshape(n, -1)     # match PyTorch Flatten(1) on NCHW
    # D2(Y)
    g = conv_bn_lrelu(Yh, params["d2c1_w"], params["d2c1_b"],
                      params["d2bn1_g"], params["d2bn1_b"], stride=2, pad=1)
    g = conv_bn_lrelu(g, params["d2c2_w"], params["d2c2_b"],
                      params["d2bn2_g"], params["d2bn2_b"], stride=2, pad=1)
    disc_Y = jnp.transpose(g, (0, 3, 1, 2)).reshape(n, -1)
    # TODO(synk): on v7x the independent D1/D2 branches could be placed on the two
    # TensorCores (pl.core_map); kept sequential since v5e/v6e have a single TC.
    lag_idx = conditional.astype(jnp.int32) - 1                # one_hot(arange(29))[lag-1]
    one_hot = jax.nn.one_hot(lag_idx, MAX_LAG, dtype=jnp.float32)
    d = jnp.concatenate([disc_X, disc_Y, one_hot], axis=1)
    return d3_mlp(d, params)                                   # (N, 1)


if __name__ == "__main__":
    key = jax.random.PRNGKey(0)
    kx, ky, kp = jax.random.split(key, 3)
    N = 2
    X = jax.random.normal(kx, (N, 1, 16, 16), jnp.float32)
    Y = jax.random.normal(ky, (N, 1, 16, 16), jnp.float32)
    conditional = jnp.array([3.0, 17.0], dtype=jnp.float32)    # lags in [1, 29]

    # Flattened feature sizes for the small demo shapes:
    #   D1: 16 -conv(5,2,1)-> 7 -conv(4,1,1)-> 6  -> 128*6*6 = 4608
    #   D2: 16 -conv(5,2,1)-> 7 -conv(5,2,1)-> 3  ->  64*3*3 = 576
    d3_in = 128 * 6 * 6 + 64 * 3 * 3 + MAX_LAG                 # 5213
    # TODO(synk): the original module hardcodes nn.Linear(23965, 128) for its full-size
    # inputs; here the first D3 Linear fan-in is derived from the small demo shapes.
    params = init_params(kp, d3_in)

    fwd = jax.jit(discriminator_forward)
    out = fwd(params, X, Y, conditional)
    out = jax.block_until_ready(out)
    assert out.shape == (N, 1) and out.dtype == jnp.float32
    print("KERNEL_OK")
</pallas_src>

<mosaic_0001>
module attributes {stable_mosaic.version = 11 : i64} {
  func.func @_mm_bn_lrelu_kernel(%arg0: i32, %arg1: memref<104x128xbf16, #tpu.memory_space<vmem>>, %arg2: memref<128x128xbf16, #tpu.memory_space<vmem>>, %arg3: memref<8x128xf32, #tpu.memory_space<vmem>>, %arg4: memref<104x128xf32, #tpu.memory_space<vmem>>) attributes {dimension_semantics = [#tpu.dimension_semantics<arbitrary>], iteration_bounds = array<i64: 1>, scalar_prefetch = 0 : i64, scratch_operands = 0 : i64, tpu.core_type = #tpu.core_type<tc>, window_params = [{pipeline_mode = #tpu.pipeline_mode<synchronous>, transform_indices = @transform_0, window_bounds = array<i64: 104, 128>}, {pipeline_mode = #tpu.pipeline_mode<synchronous>, transform_indices = @transform_1, window_bounds = array<i64: 128, 128>}, {pipeline_mode = #tpu.pipeline_mode<synchronous>, transform_indices = @transform_2, window_bounds = array<i64: 8, 128>}, {pipeline_mode = #tpu.pipeline_mode<synchronous>, transform_indices = @transform_3, window_bounds = array<i64: 104, 128>}]} {
    %c0 = arith.constant 0 : index
    %c0_0 = arith.constant 0 : index
    %0 = vector.load %arg1[%c0, %c0_0] : memref<104x128xbf16, #tpu.memory_space<vmem>>, vector<104x128xbf16>
    %c0_1 = arith.constant 0 : index
    %c0_2 = arith.constant 0 : index
    %1 = vector.load %arg2[%c0_1, %c0_2] : memref<128x128xbf16, #tpu.memory_space<vmem>>, vector<128x128xbf16>
    %cst = arith.constant dense<0.000000e+00> : vector<104x128xf32>
    %2 = tpu.matmul %0, %1, %cst {dimension_numbers = #tpu.dot_dimension_numbers<[1], [0], [0], [1], [0, 0, 1, 1], [], []>} : vector<104x128xbf16>, vector<128x128xbf16>, vector<104x128xf32> -> vector<104x128xf32>
    %3 = tpu.iota {dimensions = array<i32: 0>} : vector<104x1xi32>
    %c98_i32 = arith.constant 98 : i32
    %4 = vector.broadcast %c98_i32 : i32 to vector<104x1xi32>
    %5 = arith.cmpi slt, %3, %4 : vector<104x1xi32>
    %c0_3 = arith.constant 0 : index
    %c0_4 = arith.constant 0 : index
    %6 = vector.load %arg3[%c0_3, %c0_4] : memref<8x128xf32, #tpu.memory_space<vmem>>, vector<8x128xf32>
    %7 = vector.extract_strided_slice %6 {offsets = [0, 0], sizes = [1, 128], strides = [1, 1]} : vector<8x128xf32> to vector<1x128xf32>
    %8 = vector.extract_strided_slice %6 {offsets = [1, 0], sizes = [1, 128], strides = [1, 1]} : vector<8x128xf32> to vector<1x128xf32>
    %9 = vector.extract_strided_slice %6 {offsets = [2, 0], sizes = [1, 128], strides = [1, 1]} : vector<8x128xf32> to vector<1x128xf32>
    %10 = vector.broadcast %7 : vector<1x128xf32> to vector<104x128xf32>
    %11 = arith.addf %2, %10 : vector<104x128xf32>
    %cst_5 = arith.constant 0.000000e+00 : f32
    %12 = vector.shape_cast %5 : vector<104x1xi1> to vector<104x1xi1>
    %13 = vector.broadcast %12 : vector<104x1xi1> to vector<104x128xi1>
    %14 = vector.broadcast %cst_5 : f32 to vector<104x128xf32>
    %15 = arith.select %13, %11, %14 : vector<104x128xi1>, vector<104x128xf32>
    %cst_6 = arith.constant dense<0.000000e+00> : vector<128xf32>
    %16 = vector.multi_reduction <add>, %15, %cst_6 [0] : vector<104x128xf32> to vector<128xf32>
    %17 = vector.shape_cast %16 : vector<128xf32> to vector<1x128xf32>
    %cst_7 = arith.constant 0.0102040814 : f32
    %18 = vector.broadcast %cst_7 : f32 to vector<1x128xf32>
    %19 = arith.mulf %17, %18 : vector<1x128xf32>
    %20 = vector.broadcast %19 : vector<1x128xf32> to vector<104x128xf32>
    %21 = arith.subf %11, %20 : vector<104x128xf32>
    %cst_8 = arith.constant 0.000000e+00 : f32
    %22 = vector.shape_cast %5 : vector<104x1xi1> to vector<104x1xi1>
    %23 = vector.broadcast %22 : vector<104x1xi1> to vector<104x128xi1>
    %24 = vector.broadcast %cst_8 : f32 to vector<104x128xf32>
    %25 = arith.select %23, %21, %24 : vector<104x128xi1>, vector<104x128xf32>
    %26 = arith.mulf %25, %25 : vector<104x128xf32>
    %cst_9 = arith.constant dense<0.000000e+00> : vector<128xf32>
    %27 = vector.multi_reduction <add>, %26, %cst_9 [0] : vector<104x128xf32> to vector<128xf32>
    %28 = vector.shape_cast %27 : vector<128xf32> to vector<1x128xf32>
    %cst_10 = arith.constant 0.0102040814 : f32
    %29 = vector.broadcast %cst_10 : f32 to vector<1x128xf32>
    %30 = arith.mulf %28, %29 : vector<1x128xf32>
    %31 = vector.broadcast %19 : vector<1x128xf32> to vector<104x128xf32>
    %32 = arith.subf %11, %31 : vector<104x128xf32>
    %cst_11 = arith.constant 9.99999974E-6 : f32
    %33 = vector.broadcast %cst_11 : f32 to vector<1x128xf32>
    %34 = arith.addf %30, %33 : vector<1x128xf32>
    %35 = math.rsqrt %34 : vector<1x128xf32>
    %36 = vector.broadcast %35 : vector<1x128xf32> to vector<104x128xf32>
    %37 = arith.mulf %32, %36 : vector<104x128xf32>
    %38 = vector.broadcast %8 : vector<1x128xf32> to vector<104x128xf32>
    %39 = arith.mulf %37, %38 : vector<104x128xf32>
    %40 = vector.broadcast %9 : vector<1x128xf32> to vector<104x128xf32>
    %41 = arith.addf %39, %40 : vector<104x128xf32>
    %cst_12 = arith.constant 0.000000e+00 : f32
    %42 = vector.broadcast %cst_12 : f32 to vector<104x128xf32>
    %43 = arith.cmpf ogt, %41, %42 : vector<104x128xf32>
    %cst_13 = arith.constant 2.000000e-01 : f32
    %44 = vector.broadcast %cst_13 : f32 to vector<104x128xf32>
    %45 = arith.mulf %44, %41 : vector<104x128xf32>
    %46 = arith.select %43, %41, %45 : vector<104x128xi1>, vector<104x128xf32>
    %cst_14 = arith.constant 0.000000e+00 : f32
    %47 = vector.shape_cast %5 : vector<104x1xi1> to vector<104x1xi1>
    %48 = vector.broadcast %47 : vector<104x1xi1> to vector<104x128xi1>
    %49 = vector.broadcast %cst_14 : f32 to vector<104x128xf32>
    %50 = arith.select %48, %46, %49 : vector<104x128xi1>, vector<104x128xf32>
    %c0_15 = arith.constant 0 : index
    %c0_16 = arith.constant 0 : index
    %51 = vector.load %arg4[%c0_15, %c0_16] : memref<104x128xf32, #tpu.memory_space<vmem>>, vector<104x128xf32>
    tpu.vector_store %arg4[%c0_15, %c0_16], %50 {strides = array<i32>} : memref<104x128xf32, #tpu.memory_space<vmem>>, vector<104x128xf32>,
    return
  }
  func.func @transform_0(%arg0: i32) -> (i32, i32) {
    %c0_i32 = arith.constant 0 : i32
    %c0_i32_0 = arith.constant 0 : i32
    %c0_i32_1 = arith.constant 0 : i32
    return %c0_i32, %c0_i32_0 : i32, i32
  }
  func.func @transform_1(%arg0: i32) -> (i32, i32) {
    %c0_i32 = arith.constant 0 : i32
    %c0_i32_0 = arith.constant 0 : i32
    %c0_i32_1 = arith.constant 0 : i32
    return %c0_i32, %c0_i32_0 : i32, i32
  }
  func.func @transform_2(%arg0: i32) -> (i32, i32) {
    %c0_i32 = arith.constant 0 : i32
    %c0_i32_0 = arith.constant 0 : i32
    %c0_i32_1 = arith.constant 0 : i32
    return %c0_i32, %c0_i32_0 : i32, i32
  }
  func.func @transform_3(%arg0: i32) -> (i32, i32) {
    %c0_i32 = arith.constant 0 : i32
    %c0_i32_0 = arith.constant 0 : i32
    %c0_i32_1 = arith.constant 0 : i32
    return %c0_i32, %c0_i32_0 : i32, i32
  }
}

module attributes {stable_mosaic.version = 11 : i64} {
  func.func @_mm_bn_lrelu_kernel(%arg0: i32, %arg1: memref<72x1024xbf16, #tpu.memory_space<vmem>>, %arg2: memref<1024x128xbf16, #tpu.memory_space<vmem>>, %arg3: memref<8x128xf32, #tpu.memory_space<vmem>>, %arg4: memref<72x128xf32, #tpu.memory_space<vmem>>) attributes {dimension_semantics = [#tpu.dimension_semantics<arbitrary>], iteration_bounds = array<i64: 1>, scalar_prefetch = 0 : i64, scratch_operands = 0 : i64, tpu.core_type = #tpu.core_type<tc>, window_params = [{pipeline_mode = #tpu.pipeline_mode<synchronous>, transform_indices = @transform_0, window_bounds = array<i64: 72, 1024>}, {pipeline_mode = #tpu.pipeline_mode<synchronous>, transform_indices = @transform_1, window_bounds = array<i64: 1024, 128>}, {pipeline_mode = #tpu.pipeline_mode<synchronous>, transform_indices = @transform_2, window_bounds = array<i64: 8, 128>}, {pipeline_mode = #tpu.pipeline_mode<synchronous>, transform_indices = @transform_3, window_bounds = array<i64: 72, 128>}]} {
    %c0 = arith.constant 0 : index
    %c0_0 = arith.constant 0 : index
    %0 = vector.load %arg1[%c0, %c0_0] : memref<72x1024xbf16, #tpu.memory_space<vmem>>, vector<72x1024xbf16>
    %c0_1 = arith.constant 0 : index
    %c0_2 = arith.constant 0 : index
    %1 = vector.load %arg2[%c0_1, %c0_2] : memref<1024x128xbf16, #tpu.memory_space<vmem>>, vector<1024x128xbf16>
    %cst = arith.constant dense<0.000000e+00> : vector<72x128xf32>
    %2 = tpu.matmul %0, %1, %cst {dimension_numbers = #tpu.dot_dimension_numbers<[1], [0], [0], [1], [0, 0, 1, 1], [], []>} : vector<72x1024xbf16>, vector<1024x128xbf16>, vector<72x128xf32> -> vector<72x128xf32>
    %3 = tpu.iota {dimensions = array<i32: 0>} : vector<72x1xi32>
    %c72_i32 = arith.constant 72 : i32
    %4 = vector.broadcast %c72_i32 : i32 to vector<72x1xi32>
    %5 = arith.cmpi slt, %3, %4 : vector<72x1xi32>
    %c0_3 = arith.constant 0 : index
    %c0_4 = arith.constant 0 : index
    %6 = vector.load %arg3[%c0_3, %c0_4] : memref<8x128xf32, #tpu.memory_space<vmem>>, vector<8x128xf32>
    %7 = vector.extract_strided_slice %6 {offsets = [0, 0], sizes = [1, 128], strides = [1, 1]} : vector<8x128xf32> to vector<1x128xf32>
    %8 = vector.extract_strided_slice %6 {offsets = [1, 0], sizes = [1, 128], strides = [1, 1]} : vector<8x128xf32> to vector<1x128xf32>
    %9 = vector.extract_strided_slice %6 {offsets = [2, 0], sizes = [1, 128], strides = [1, 1]} : vector<8x128xf32> to vector<1x128xf32>
    %10 = vector.broadcast %7 : vector<1x128xf32> to vector<72x128xf32>
    %11 = arith.addf %2, %10 : vector<72x128xf32>
    %cst_5 = arith.constant 0.000000e+00 : f32
    %12 = vector.shape_cast %5 : vector<72x1xi1> to vector<72x1xi1>
    %13 = vector.broadcast %12 : vector<72x1xi1> to vector<72x128xi1>
    %14 = vector.broadcast %cst_5 : f32 to vector<72x128xf32>
    %15 = arith.select %13, %11, %14 : vector<72x128xi1>, vector<72x128xf32>
    %cst_6 = arith.constant dense<0.000000e+00> : vector<128xf32>
    %16 = vector.multi_reduction <add>, %15, %cst_6 [0] : vector<72x128xf32> to vector<128xf32>
    %17 = vector.shape_cast %16 : vector<128xf32> to vector<1x128xf32>
    %cst_7 = arith.constant 0.013888889 : f32
    %18 = vector.broadcast %cst_7 : f32 to vector<1x128xf32>
    %19 = arith.mulf %17, %18 : vector<1x128xf32>
    %20 = vector.broadcast %19 : vector<1x128xf32> to vector<72x128xf32>
    %21 = arith.subf %11, %20 : vector<72x128xf32>
    %cst_8 = arith.constant 0.000000e+00 : f32
    %22 = vector.shape_cast %5 : vector<72x1xi1> to vector<72x1xi1>
    %23 = vector.broadcast %22 : vector<72x1xi1> to vector<72x128xi1>
    %24 = vector.broadcast %cst_8 : f32 to vector<72x128xf32>
    %25 = arith.select %23, %21, %24 : vector<72x128xi1>, vector<72x128xf32>
    %26 = arith.mulf %25, %25 : vector<72x128xf32>
    %cst_9 = arith.constant dense<0.000000e+00> : vector<128xf32>
    %27 = vector.multi_reduction <add>, %26, %cst_9 [0] : vector<72x128xf32> to vector<128xf32>
    %28 = vector.shape_cast %27 : vector<128xf32> to vector<1x128xf32>
    %cst_10 = arith.constant 0.013888889 : f32
    %29 = vector.broadcast %cst_10 : f32 to vector<1x128xf32>
    %30 = arith.mulf %28, %29 : vector<1x128xf32>
    %31 = vector.broadcast %19 : vector<1x128xf32> to vector<72x128xf32>
    %32 = arith.subf %11, %31 : vector<72x128xf32>
    %cst_11 = arith.constant 9.99999974E-6 : f32
    %33 = vector.broadcast %cst_11 : f32 to vector<1x128xf32>
    %34 = arith.addf %30, %33 : vector<1x128xf32>
    %35 = math.rsqrt %34 : vector<1x128xf32>
    %36 = vector.broadcast %35 : vector<1x128xf32> to vector<72x128xf32>
    %37 = arith.mulf %32, %36 : vector<72x128xf32>
    %38 = vector.broadcast %8 : vector<1x128xf32> to vector<72x128xf32>
    %39 = arith.mulf %37, %38 : vector<72x128xf32>
    %40 = vector.broadcast %9 : vector<1x128xf32> to vector<72x128xf32>
    %41 = arith.addf %39, %40 : vector<72x128xf32>
    %cst_12 = arith.constant 0.000000e+00 : f32
    %42 = vector.broadcast %cst_12 : f32 to vector<72x128xf32>
    %43 = arith.cmpf ogt, %41, %42 : vector<72x128xf32>
    %cst_13 = arith.constant 2.000000e-01 : f32
    %44 = vector.broadcast %cst_13 : f32 to vector<72x128xf32>
    %45 = arith.mulf %44, %41 : vector<72x128xf32>
    %46 = arith.select %43, %41, %45 : vector<72x128xi1>, vector<72x128xf32>
    %cst_14 = arith.constant 0.000000e+00 : f32
    %47 = vector.shape_cast %5 : vector<72x1xi1> to vector<72x1xi1>
    %48 = vector.broadcast %47 : vector<72x1xi1> to vector<72x128xi1>
    %49 = vector.broadcast %cst_14 : f32 to vector<72x128xf32>
    %50 = arith.select %48, %46, %49 : vector<72x128xi1>, vector<72x128xf32>
    %c0_15 = arith.constant 0 : index
    %c0_16 = arith.constant 0 : index
    %51 = vector.load %arg4[%c0_15, %c0_16] : memref<72x128xf32, #tpu.memory_space<vmem>>, vector<72x128xf32>
    tpu.vector_store %arg4[%c0_15, %c0_16], %50 {strides = array<i32>} : memref<72x128xf32, #tpu.memory_space<vmem>>, vector<72x128xf32>,
    return
  }
  func.func @transform_0(%arg0: i32) -> (i32, i32) {
    %c0_i32 = arith.constant 0 : i32
    %c0_i32_0 = arith.constant 0 : i32
    %c0_i32_1 = arith.constant 0 : i32
    return %c0_i32, %c0_i32_0 : i32, i32
  }
  func.func @transform_1(%arg0: i32) -> (i32, i32) {
    %c0_i32 = arith.constant 0 : i32
    %c0_i32_0 = arith.constant 0 : i32
    %c0_i32_1 = arith.constant 0 : i32
    return %c0_i32, %c0_i32_0 : i32, i32
  }
  func.func @transform_2(%arg0: i32) -> (i32, i32) {
    %c0_i32 = arith.constant 0 : i32
    %c0_i32_0 = arith.constant 0 : i32
    %c0_i32_1 = arith.constant 0 : i32
    return %c0_i32, %c0_i32_0 : i32, i32
  }
  func.func @transform_3(%arg0: i32) -> (i32, i32) {
    %c0_i32 = arith.constant 0 : i32
    %c0_i32_0 = arith.constant 0 : i32
    %c0_i32_1 = arith.constant 0 : i32
    return %c0_i32, %c0_i32_0 : i32, i32
  }
}

module attributes {stable_mosaic.version = 11 : i64} {
  func.func @_mm_bn_lrelu_kernel(%arg0: i32, %arg1: memref<24x896xbf16, #tpu.memory_space<vmem>>, %arg2: memref<896x128xbf16, #tpu.memory_space<vmem>>, %arg3: memref<8x128xf32, #tpu.memory_space<vmem>>, %arg4: memref<24x128xf32, #tpu.memory_space<vmem>>) attributes {dimension_semantics = [#tpu.dimension_semantics<arbitrary>], iteration_bounds = array<i64: 1>, scalar_prefetch = 0 : i64, scratch_operands = 0 : i64, tpu.core_type = #tpu.core_type<tc>, window_params = [{pipeline_mode = #tpu.pipeline_mode<synchronous>, transform_indices = @transform_0, window_bounds = array<i64: 24, 896>}, {pipeline_mode = #tpu.pipeline_mode<synchronous>, transform_indices = @transform_1, window_bounds = array<i64: 896, 128>}, {pipeline_mode = #tpu.pipeline_mode<synchronous>, transform_indices = @transform_2, window_bounds = array<i64: 8, 128>}, {pipeline_mode = #tpu.pipeline_mode<synchronous>, transform_indices = @transform_3, window_bounds = array<i64: 24, 128>}]} {
    %c0 = arith.constant 0 : index
    %c0_0 = arith.constant 0 : index
    %0 = vector.load %arg1[%c0, %c0_0] : memref<24x896xbf16, #tpu.memory_space<vmem>>, vector<24x896xbf16>
    %c0_1 = arith.constant 0 : index
    %c0_2 = arith.constant 0 : index
    %1 = vector.load %arg2[%c0_1, %c0_2] : memref<896x128xbf16, #tpu.memory_space<vmem>>, vector<896x128xbf16>
    %cst = arith.constant dense<0.000000e+00> : vector<24x128xf32>
    %2 = tpu.matmul %0, %1, %cst {dimension_numbers = #tpu.dot_dimension_numbers<[1], [0], [0], [1], [0, 0, 1, 1], [], []>} : vector<24x896xbf16>, vector<896x128xbf16>, vector<24x128xf32> -> vector<24x128xf32>
    %3 = tpu.iota {dimensions = array<i32: 0>} : vector<24x1xi32>
    %c18_i32 = arith.constant 18 : i32
    %4 = vector.broadcast %c18_i32 : i32 to vector<24x1xi32>
    %5 = arith.cmpi slt, %3, %4 : vector<24x1xi32>
    %c0_3 = arith.constant 0 : index
    %c0_4 = arith.constant 0 : index
    %6 = vector.load %arg3[%c0_3, %c0_4] : memref<8x128xf32, #tpu.memory_space<vmem>>, vector<8x128xf32>
    %7 = vector.extract_strided_slice %6 {offsets = [0, 0], sizes = [1, 128], strides = [1, 1]} : vector<8x128xf32> to vector<1x128xf32>
    %8 = vector.extract_strided_slice %6 {offsets = [1, 0], sizes = [1, 128], strides = [1, 1]} : vector<8x128xf32> to vector<1x128xf32>
    %9 = vector.extract_strided_slice %6 {offsets = [2, 0], sizes = [1, 128], strides = [1, 1]} : vector<8x128xf32> to vector<1x128xf32>
    %10 = vector.broadcast %7 : vector<1x128xf32> to vector<24x128xf32>
    %11 = arith.addf %2, %10 : vector<24x128xf32>
    %cst_5 = arith.constant 0.000000e+00 : f32
    %12 = vector.shape_cast %5 : vector<24x1xi1> to vector<24x1xi1>
    %13 = vector.broadcast %12 : vector<24x1xi1> to vector<24x128xi1>
    %14 = vector.broadcast %cst_5 : f32 to vector<24x128xf32>
    %15 = arith.select %13, %11, %14 : vector<24x128xi1>, vector<24x128xf32>
    %cst_6 = arith.constant dense<0.000000e+00> : vector<128xf32>
    %16 = vector.multi_reduction <add>, %15, %cst_6 [0] : vector<24x128xf32> to vector<128xf32>
    %17 = vector.shape_cast %16 : vector<128xf32> to vector<1x128xf32>
    %cst_7 = arith.constant 0.055555556 : f32
    %18 = vector.broadcast %cst_7 : f32 to vector<1x128xf32>
    %19 = arith.mulf %17, %18 : vector<1x128xf32>
    %20 = vector.broadcast %19 : vector<1x128xf32> to vector<24x128xf32>
    %21 = arith.subf %11, %20 : vector<24x128xf32>
    %cst_8 = arith.constant 0.000000e+00 : f32
    %22 = vector.shape_cast %5 : vector<24x1xi1> to vector<24x1xi1>
    %23 = vector.broadcast %22 : vector<24x1xi1> to vector<24x128xi1>
    %24 = vector.broadcast %cst_8 : f32 to vector<24x128xf32>
    %25 = arith.select %23, %21, %24 : vector<24x128xi1>, vector<24x128xf32>
    %26 = arith.mulf %25, %25 : vector<24x128xf32>
    %cst_9 = arith.constant dense<0.000000e+00> : vector<128xf32>
    %27 = vector.multi_reduction <add>, %26, %cst_9 [0] : vector<24x128xf32> to vector<128xf32>
    %28 = vector.shape_cast %27 : vector<128xf32> to vector<1x128xf32>
    %cst_10 = arith.constant 0.055555556 : f32
    %29 = vector.broadcast %cst_10 : f32 to vector<1x128xf32>
    %30 = arith.mulf %28, %29 : vector<1x128xf32>
    %31 = vector.broadcast %19 : vector<1x128xf32> to vector<24x128xf32>
    %32 = arith.subf %11, %31 : vector<24x128xf32>
    %cst_11 = arith.constant 9.99999974E-6 : f32
    %33 = vector.broadcast %cst_11 : f32 to vector<1x128xf32>
    %34 = arith.addf %30, %33 : vector<1x128xf32>
    %35 = math.rsqrt %34 : vector<1x128xf32>
    %36 = vector.broadcast %35 : vector<1x128xf32> to vector<24x128xf32>
    %37 = arith.mulf %32, %36 : vector<24x128xf32>
    %38 = vector.broadcast %8 : vector<1x128xf32> to vector<24x128xf32>
    %39 = arith.mulf %37, %38 : vector<24x128xf32>
    %40 = vector.broadcast %9 : vector<1x128xf32> to vector<24x128xf32>
    %41 = arith.addf %39, %40 : vector<24x128xf32>
    %cst_12 = arith.constant 0.000000e+00 : f32
    %42 = vector.broadcast %cst_12 : f32 to vector<24x128xf32>
    %43 = arith.cmpf ogt, %41, %42 : vector<24x128xf32>
    %cst_13 = arith.constant 2.000000e-01 : f32
    %44 = vector.broadcast %cst_13 : f32 to vector<24x128xf32>
    %45 = arith.mulf %44, %41 : vector<24x128xf32>
    %46 = arith.select %43, %41, %45 : vector<24x128xi1>, vector<24x128xf32>
    %cst_14 = arith.constant 0.000000e+00 : f32
    %47 = vector.shape_cast %5 : vector<24x1xi1> to vector<24x1xi1>
    %48 = vector.broadcast %47 : vector<24x1xi1> to vector<24x128xi1>
    %49 = vector.broadcast %cst_14 : f32 to vector<24x128xf32>
    %50 = arith.select %48, %46, %49 : vector<24x128xi1>, vector<24x128xf32>
    %c0_15 = arith.constant 0 : index
    %c0_16 = arith.constant 0 : index
    %51 = vector.load %arg4[%c0_15, %c0_16] : memref<24x128xf32, #tpu.memory_space<vmem>>, vector<24x128xf32>
    tpu.vector_store %arg4[%c0_15, %c0_16], %50 {strides = array<i32>} : memref<24x128xf32, #tpu.memory_space<vmem>>, vector<24x128xf32>,
    return
  }
  func.func @transform_0(%arg0: i32) -> (i32, i32) {
    %c0_i32 = arith.constant 0 : i32
    %c0_i32_0 = arith.constant 0 : i32
    %c0_i32_1 = arith.constant 0 : i32
    return %c0_i32, %c0_i32_0 : i32, i32
  }
  func.func @transform_1(%arg0: i32) -> (i32, i32) {
    %c0_i32 = arith.constant 0 : i32
    %c0_i32_0 = arith.constant 0 : i32
    %c0_i32_1 = arith.constant 0 : i32
    return %c0_i32, %c0_i32_0 : i32, i32
  }
  func.func @transform_2(%arg0: i32) -> (i32, i32) {
    %c0_i32 = arith.constant 0 : i32
    %c0_i32_0 = arith.constant 0 : i32
    %c0_i32_1 = arith.constant 0 : i32
    return %c0_i32, %c0_i32_0 : i32, i32
  }
  func.func @transform_3(%arg0: i32) -> (i32, i32) {
    %c0_i32 = arith.constant 0 : i32
    %c0_i32_0 = arith.constant 0 : i32
    %c0_i32_1 = arith.constant 0 : i32
    return %c0_i32, %c0_i32_0 : i32, i32
  }
}

module attributes {stable_mosaic.version = 11 : i64} {
  func.func @_mlp_kernel(%arg0: i32, %arg1: memref<8x5248xbf16, #tpu.memory_space<vmem>>, %arg2: memref<5248x128xbf16, #tpu.memory_space<vmem>>, %arg3: memref<8x128xf32, #tpu.memory_space<vmem>>, %arg4: memref<128x128xbf16, #tpu.memory_space<vmem>>, %arg5: memref<8x128xf32, #tpu.memory_space<vmem>>, %arg6: memref<128x128xbf16, #tpu.memory_space<vmem>>, %arg7: memref<8x128xf32, #tpu.memory_space<vmem>>, %arg8: memref<8x128xf32, #tpu.memory_space<vmem>>) attributes {dimension_semantics = [#tpu.dimension_semantics<arbitrary>], iteration_bounds = array<i64: 1>, scalar_prefetch = 0 : i64, scratch_operands = 0 : i64, tpu.core_type = #tpu.core_type<tc>, window_params = [{pipeline_mode = #tpu.pipeline_mode<synchronous>, transform_indices = @transform_0, window_bounds = array<i64: 8, 5248>}, {pipeline_mode = #tpu.pipeline_mode<synchronous>, transform_indices = @transform_1, window_bounds = array<i64: 5248, 128>}, {pipeline_mode = #tpu.pipeline_mode<synchronous>, transform_indices = @transform_2, window_bounds = array<i64: 8, 128>}, {pipeline_mode = #tpu.pipeline_mode<synchronous>, transform_indices = @transform_3, window_bounds = array<i64: 128, 128>}, {pipeline_mode = #tpu.pipeline_mode<synchronous>, transform_indices = @transform_4, window_bounds = array<i64: 8, 128>}, {pipeline_mode = #tpu.pipeline_mode<synchronous>, transform_indices = @transform_5, window_bounds = array<i64: 128, 128>}, {pipeline_mode = #tpu.pipeline_mode<synchronous>, transform_indices = @transform_6, window_bounds = array<i64: 8, 128>}, {pipeline_mode = #tpu.pipeline_mode<synchronous>, transform_indices = @transform_7, window_bounds = array<i64: 8, 128>}]} {
    %0 = tpu.iota {dimensions = array<i32: 0>} : vector<8x1xi32>
    %c2_i32 = arith.constant 2 : i32
    %1 = vector.broadcast %c2_i32 : i32 to vector<8x1xi32>
    %2 = arith.cmpi slt, %0, %1 : vector<8x1xi32>
    %c0 = arith.constant 0 : index
    %c0_0 = arith.constant 0 : index
    %3 = vector.load %arg1[%c0, %c0_0] : memref<8x5248xbf16, #tpu.memory_space<vmem>>, vector<8x5248xbf16>
    %c0_1 = arith.constant 0 : index
    %c0_2 = arith.constant 0 : index
    %4 = vector.load %arg2[%c0_1, %c0_2] : memref<5248x128xbf16, #tpu.memory_space<vmem>>, vector<5248x128xbf16>
    %cst = arith.constant dense<0.000000e+00> : vector<8x128xf32>
    %5 = tpu.matmul %3, %4, %cst {dimension_numbers = #tpu.dot_dimension_numbers<[1], [0], [0], [1], [0, 0, 1, 1], [], []>} : vector<8x5248xbf16>, vector<5248x128xbf16>, vector<8x128xf32> -> vector<8x128xf32>
    %c0_3 = arith.constant 0 : index
    %c0_4 = arith.constant 0 : index
    %6 = vector.load %arg3[%c0_3, %c0_4] : memref<8x128xf32, #tpu.memory_space<vmem>>, vector<8x128xf32>
    %7 = vector.extract_strided_slice %6 {offsets = [0, 0], sizes = [1, 128], strides = [1, 1]} : vector<8x128xf32> to vector<1x128xf32>
    %8 = vector.extract_strided_slice %6 {offsets = [1, 0], sizes = [1, 128], strides = [1, 1]} : vector<8x128xf32> to vector<1x128xf32>
    %9 = vector.extract_strided_slice %6 {offsets = [2, 0], sizes = [1, 128], strides = [1, 1]} : vector<8x128xf32> to vector<1x128xf32>
    %10 = vector.broadcast %7 : vector<1x128xf32> to vector<8x128xf32>
    %11 = arith.addf %5, %10 : vector<8x128xf32>
    %cst_5 = arith.constant 0.000000e+00 : f32
    %12 = vector.shape_cast %2 : vector<8x1xi1> to vector<8x1xi1>
    %13 = vector.broadcast %12 : vector<8x1xi1> to vector<8x128xi1>
    %14 = vector.broadcast %cst_5 : f32 to vector<8x128xf32>
    %15 = arith.select %13, %11, %14 : vector<8x128xi1>, vector<8x128xf32>
    %cst_6 = arith.constant dense<0.000000e+00> : vector<128xf32>
    %16 = vector.multi_reduction <add>, %15, %cst_6 [0] : vector<8x128xf32> to vector<128xf32>
    %17 = vector.shape_cast %16 : vector<128xf32> to vector<1x128xf32>
    %cst_7 = arith.constant 5.000000e-01 : f32
    %18 = vector.broadcast %cst_7 : f32 to vector<1x128xf32>
    %19 = arith.mulf %17, %18 : vector<1x128xf32>
    %20 = vector.broadcast %19 : vector<1x128xf32> to vector<8x128xf32>
    %21 = arith.subf %11, %20 : vector<8x128xf32>
    %cst_8 = arith.constant 0.000000e+00 : f32
    %22 = vector.shape_cast %2 : vector<8x1xi1> to vector<8x1xi1>
    %23 = vector.broadcast %22 : vector<8x1xi1> to vector<8x128xi1>
    %24 = vector.broadcast %cst_8 : f32 to vector<8x128xf32>
    %25 = arith.select %23, %21, %24 : vector<8x128xi1>, vector<8x128xf32>
    %26 = arith.mulf %25, %25 : vector<8x128xf32>
    %cst_9 = arith.constant dense<0.000000e+00> : vector<128xf32>
    %27 = vector.multi_reduction <add>, %26, %cst_9 [0] : vector<8x128xf32> to vector<128xf32>
    %28 = vector.shape_cast %27 : vector<128xf32> to vector<1x128xf32>
    %cst_10 = arith.constant 5.000000e-01 : f32
    %29 = vector.broadcast %cst_10 : f32 to vector<1x128xf32>
    %30 = arith.mulf %28, %29 : vector<1x128xf32>
    %31 = vector.broadcast %19 : vector<1x128xf32> to vector<8x128xf32>
    %32 = arith.subf %11, %31 : vector<8x128xf32>
    %cst_11 = arith.constant 9.99999974E-6 : f32
    %33 = vector.broadcast %cst_11 : f32 to vector<1x128xf32>
    %34 = arith.addf %30, %33 : vector<1x128xf32>
    %35 = math.rsqrt %34 : vector<1x128xf32>
    %36 = vector.broadcast %35 : vector<1x128xf32> to vector<8x128xf32>
    %37 = arith.mulf %32, %36 : vector<8x128xf32>
    %38 = vector.broadcast %8 : vector<1x128xf32> to vector<8x128xf32>
    %39 = arith.mulf %37, %38 : vector<8x128xf32>
    %40 = vector.broadcast %9 : vector<1x128xf32> to vector<8x128xf32>
    %41 = arith.addf %39, %40 : vector<8x128xf32>
    %cst_12 = arith.constant 0.000000e+00 : f32
    %42 = vector.broadcast %cst_12 : f32 to vector<8x128xf32>
    %43 = arith.cmpf ogt, %41, %42 : vector<8x128xf32>
    %cst_13 = arith.constant 2.000000e-01 : f32
    %44 = vector.broadcast %cst_13 : f32 to vector<8x128xf32>
    %45 = arith.mulf %44, %41 : vector<8x128xf32>
    %46 = arith.select %43, %41, %45 : vector<8x128xi1>, vector<8x128xf32>
    %cst_14 = arith.constant 0.000000e+00 : f32
    %47 = vector.shape_cast %2 : vector<8x1xi1> to vector<8x1xi1>
    %48 = vector.broadcast %47 : vector<8x1xi1> to vector<8x128xi1>
    %49 = vector.broadcast %cst_14 : f32 to vector<8x128xf32>
    %50 = arith.select %48, %46, %49 : vector<8x128xi1>, vector<8x128xf32>
    %51 = arith.truncf %50 : vector<8x128xf32> to vector<8x128xbf16>
    %c0_15 = arith.constant 0 : index
    %c0_16 = arith.constant 0 : index
    %52 = vector.load %arg4[%c0_15, %c0_16] : memref<128x128xbf16, #tpu.memory_space<vmem>>, vector<128x128xbf16>
    %cst_17 = arith.constant dense<0.000000e+00> : vector<8x128xf32>
    %53 = tpu.matmul %51, %52, %cst_17 {dimension_numbers = #tpu.dot_dimension_numbers<[1], [0], [0], [1], [0, 0, 1, 1], [], []>} : vector<8x128xbf16>, vector<128x128xbf16>, vector<8x128xf32> -> vector<8x128xf32>
    %c0_18 = arith.constant 0 : index
    %c0_19 = arith.constant 0 : index
    %54 = vector.load %arg5[%c0_18, %c0_19] : memref<8x128xf32, #tpu.memory_space<vmem>>, vector<8x128xf32>
    %55 = vector.extract_strided_slice %54 {offsets = [0, 0], sizes = [1, 128], strides = [1, 1]} : vector<8x128xf32> to vector<1x128xf32>
    %56 = vector.extract_strided_slice %54 {offsets = [1, 0], sizes = [1, 128], strides = [1, 1]} : vector<8x128xf32> to vector<1x128xf32>
    %57 = vector.extract_strided_slice %54 {offsets = [2, 0], sizes = [1, 128], strides = [1, 1]} : vector<8x128xf32> to vector<1x128xf32>
    %58 = vector.broadcast %55 : vector<1x128xf32> to vector<8x128xf32>
    %59 = arith.addf %53, %58 : vector<8x128xf32>
    %cst_20 = arith.constant 0.000000e+00 : f32
    %60 = vector.shape_cast %2 : vector<8x1xi1> to vector<8x1xi1>
    %61 = vector.broadcast %60 : vector<8x1xi1> to vector<8x128xi1>
    %62 = vector.broadcast %cst_20 : f32 to vector<8x128xf32>
    %63 = arith.select %61, %59, %62 : vector<8x128xi1>, vector<8x128xf32>
    %cst_21 = arith.constant dense<0.000000e+00> : vector<128xf32>
    %64 = vector.multi_reduction <add>, %63, %cst_21 [0] : vector<8x128xf32> to vector<128xf32>
    %65 = vector.shape_cast %64 : vector<128xf32> to vector<1x128xf32>
    %cst_22 = arith.constant 5.000000e-01 : f32
    %66 = vector.broadcast %cst_22 : f32 to vector<1x128xf32>
    %67 = arith.mulf %65, %66 : vector<1x128xf32>
    %68 = vector.broadcast %67 : vector<1x128xf32> to vector<8x128xf32>
    %69 = arith.subf %59, %68 : vector<8x128xf32>
    %cst_23 = arith.constant 0.000000e+00 : f32
    %70 = vector.shape_cast %2 : vector<8x1xi1> to vector<8x1xi1>
    %71 = vector.broadcast %70 : vector<8x1xi1> to vector<8x128xi1>
    %72 = vector.broadcast %cst_23 : f32 to vector<8x128xf32>
    %73 = arith.select %71, %69, %72 : vector<8x128xi1>, vector<8x128xf32>
    %74 = arith.mulf %73, %73 : vector<8x128xf32>
    %cst_24 = arith.constant dense<0.000000e+00> : vector<128xf32>
    %75 = vector.multi_reduction <add>, %74, %cst_24 [0] : vector<8x128xf32> to vector<128xf32>
    %76 = vector.shape_cast %75 : vector<128xf32> to vector<1x128xf32>
    %cst_25 = arith.constant 5.000000e-01 : f32
    %77 = vector.broadcast %cst_25 : f32 to vector<1x128xf32>
    %78 = arith.mulf %76, %77 : vector<1x128xf32>
    %79 = vector.broadcast %67 : vector<1x128xf32> to vector<8x128xf32>
    %80 = arith.subf %59, %79 : vector<8x128xf32>
    %cst_26 = arith.constant 9.99999974E-6 : f32
    %81 = vector.broadcast %cst_26 : f32 to vector<1x128xf32>
    %82 = arith.addf %78, %81 : vector<1x128xf32>
    %83 = math.rsqrt %82 : vector<1x128xf32>
    %84 = vector.broadcast %83 : vector<1x128xf32> to vector<8x128xf32>
    %85 = arith.mulf %80, %84 : vector<8x128xf32>
    %86 = vector.broadcast %56 : vector<1x128xf32> to vector<8x128xf32>
    %87 = arith.mulf %85, %86 : vector<8x128xf32>
    %88 = vector.broadcast %57 : vector<1x128xf32> to vector<8x128xf32>
    %89 = arith.addf %87, %88 : vector<8x128xf32>
    %cst_27 = arith.constant 0.000000e+00 : f32
    %90 = vector.broadcast %cst_27 : f32 to vector<8x128xf32>
    %91 = arith.cmpf ogt, %89, %90 : vector<8x128xf32>
    %cst_28 = arith.constant 2.000000e-01 : f32
    %92 = vector.broadcast %cst_28 : f32 to vector<8x128xf32>
    %93 = arith.mulf %92, %89 : vector<8x128xf32>
    %94 = arith.select %91, %89, %93 : vector<8x128xi1>, vector<8x128xf32>
    %cst_29 = arith.constant 0.000000e+00 : f32
    %95 = vector.shape_cast %2 : vector<8x1xi1> to vector<8x1xi1>
    %96 = vector.broadcast %95 : vector<8x1xi1> to vector<8x128xi1>
    %97 = vector.broadcast %cst_29 : f32 to vector<8x128xf32>
    %98 = arith.select %96, %94, %97 : vector<8x128xi1>, vector<8x128xf32>
    %99 = arith.truncf %98 : vector<8x128xf32> to vector<8x128xbf16>
    %c0_30 = arith.constant 0 : index
    %c0_31 = arith.constant 0 : index
    %100 = vector.load %arg6[%c0_30, %c0_31] : memref<128x128xbf16, #tpu.memory_space<vmem>>, vector<128x128xbf16>
    %cst_32 = arith.constant dense<0.000000e+00> : vector<8x128xf32>
    %101 = tpu.matmul %99, %100, %cst_32 {dimension_numbers = #tpu.dot_dimension_numbers<[1], [0], [0], [1], [0, 0, 1, 1], [], []>} : vector<8x128xbf16>, vector<128x128xbf16>, vector<8x128xf32> -> vector<8x128xf32>
    %c0_33 = arith.constant 0 : index
    %c0_34 = arith.constant 0 : index
    %102 = vector.load %arg7[%c0_33, %c0_34] : memref<8x128xf32, #tpu.memory_space<vmem>>, vector<1x128xf32>
    %103 = vector.broadcast %102 : vector<1x128xf32> to vector<8x128xf32>
    %104 = arith.addf %101, %103 : vector<8x128xf32>
    %c0_35 = arith.constant 0 : index
    %c0_36 = arith.constant 0 : index
    %105 = vector.load %arg8[%c0_35, %c0_36] : memref<8x128xf32, #tpu.memory_space<vmem>>, vector<8x128xf32>
    tpu.vector_store %arg8[%c0_35, %c0_36], %104 {strides = array<i32>} : memref<8x128xf32, #tpu.memory_space<vmem>>, vector<8x128xf32>,
    return
  }
  func.func @transform_0(%arg0: i32) -> (i32, i32) {
    %c0_i32 = arith.constant 0 : i32
    %c0_i32_0 = arith.constant 0 : i32
    %c0_i32_1 = arith.constant 0 : i32
    return %c0_i32, %c0_i32_0 : i32, i32
  }
  func.func @transform_1(%arg0: i32) -> (i32, i32) {
    %c0_i32 = arith.constant 0 : i32
    %c0_i32_0 = arith.constant 0 : i32
    %c0_i32_1 = arith.constant 0 : i32
    return %c0_i32, %c0_i32_0 : i32, i32
  }
  func.func @transform_2(%arg0: i32) -> (i32, i32) {
    %c0_i32 = arith.constant 0 : i32
    %c0_i32_0 = arith.constant 0 : i32
    %c0_i32_1 = arith.constant 0 : i32
    return %c0_i32, %c0_i32_0 : i32, i32
  }
  func.func @transform_3(%arg0: i32) -> (i32, i32) {
    %c0_i32 = arith.constant 0 : i32
    %c0_i32_0 = arith.constant 0 : i32
    %c0_i32_1 = arith.constant 0 : i32
    return %c0_i32, %c0_i32_0 : i32, i32
  }
  func.func @transform_4(%arg0: i32) -> (i32, i32) {
    %c0_i32 = arith.constant 0 : i32
    %c0_i32_0 = arith.constant 0 : i32
    %c0_i32_1 = arith.constant 0 : i32
    return %c0_i32, %c0_i32_0 : i32, i32
  }
  func.func @transform_5(%arg0: i32) -> (i32, i32) {
    %c0_i32 = arith.constant 0 : i32
    %c0_i32_0 = arith.constant 0 : i32
    %c0_i32_1 = arith.constant 0 : i32
    return %c0_i32, %c0_i32_0 : i32, i32
  }
  func.func @transform_6(%arg0: i32) -> (i32, i32) {
    %c0_i32 = arith.constant 0 : i32
    %c0_i32_0 = arith.constant 0 : i32
    %c0_i32_1 = arith.constant 0 : i32
    return %c0_i32, %c0_i32_0 : i32, i32
  }
  func.func @transform_7(%arg0: i32) -> (i32, i32) {
    %c0_i32 = arith.constant 0 : i32
    %c0_i32_0 = arith.constant 0 : i32
    %c0_i32_1 = arith.constant 0 : i32
    return %c0_i32, %c0_i32_0 : i32, i32
  }
}

</mosaic_0001>

<llo_original>
// kernel: discriminator_forward.5
$region0: #{discriminator_forward.5}
  #allocation0 [shape = 'u32[]', space=smem, size = 0x4, offset = 0x4, fixed_abs, tag = 'smem constant byte address 0x4 - core index']
  #allocation1 [shape = 'u32[72,128]{1,0:T(1,128)}', space=vmem, size = 0x9000, scoped, tag = 'internal scratch']
  %s0 = inlined_call_operand.vmem [shape: bf16[104,128], index: 0, kind: input, shape index: {}]
  %s1 = inlined_call_operand.vmem [shape: bf16[128,128], index: 1, kind: input, shape index: {}]
  %s2 = inlined_call_operand.vmem [shape: f32[8,128], index: 2, kind: input, shape index: {}]
  %s3 = inlined_call_operand.vmem [shape: f32[104,128], index: 3, kind: output, shape index: {}]
  %s4 = sld [smem:[#allocation0]]
  $region22: #{discriminator_forward.5} parent=0
    _
  %s6 = ssub.s32 1, %s4
  %s7 = scalar_select 0, %s6, %s4
  // Predicated region
  $region2: #{discriminator_forward.5} parent=0 // pred_check
    _
  $region3: #{discriminator_forward.5} parent=0 // pred_check_branch
    %9 = sbr.rel (0) target = $region5
  $region4: #{discriminator_forward.5} parent=0 // pred_region
    _
  $region5: #{discriminator_forward.5} parent=0 // pred_fallthru
    _
  // Predicated region
  $region6: #{discriminator_forward.5} parent=0 // pred_check
    _
  $region7: #{discriminator_forward.5} parent=0 // pred_check_branch
    %11 = sbr.rel (0) target = $region9
  $region8: #{discriminator_forward.5} parent=0 // pred_region
    _
  $region9: #{discriminator_forward.5} parent=0 // pred_fallthru
    _
  // Predicated region
  $region10: #{discriminator_forward.5} parent=0 // pred_check
    _
  $region11: #{discriminator_forward.5} parent=0 // pred_check_branch
    %13 = sbr.rel (0) target = $region13
  $region12: #{discriminator_forward.5} parent=0 // pred_region
    _
  $region13: #{discriminator_forward.5} parent=0 // pred_fallthru
    _
  %v14 = vld [vmem:[%s0] sm:$0xf]
  %v15 = vld [vmem:[%s0 + $0x4] sm:$0xf]
  %v16 = vld [vmem:[%s0 + $0x8] sm:$0xf]
  %v17 = vld [vmem:[%s0 + $0xc] sm:$0xf]
  %v18 = vld [vmem:[%s0 + $0x10] sm:$0xf]
  %v19 = vld [vmem:[%s0 + $0x14] sm:$0xf]
  %v20 = vld [vmem:[%s0 + $0x18] sm:$0xf]
  %v21 = vld [vmem:[%s0 + $0x1c] sm:$0xf]
  %v22 = vld [vmem:[%s0 + $0x20] sm:$0xf]
  %v23 = vld [vmem:[%s0 + $0x24] sm:$0xf]
  %v24 = vld [vmem:[%s0 + $0x28] sm:$0xf]
  %v25 = vld [vmem:[%s0 + $0x2c] sm:$0xf]
  %v26 = vld [vmem:[%s0 + $0x30] sm:$0xf]
  %v27 = vld [vmem:[%s1] sm:$0xf]
  %v28 = vld [vmem:[%s1 + $0x4] sm:$0xf]
  %v29 = vld [vmem:[%s1 + $0x8] sm:$0xf]
  %v30 = vld [vmem:[%s1 + $0xc] sm:$0xf]
  %v31 = vld [vmem:[%s1 + $0x10] sm:$0xf]
  %v32 = vld [vmem:[%s1 + $0x14] sm:$0xf]
  %v33 = vld [vmem:[%s1 + $0x18] sm:$0xf]
  %v34 = vld [vmem:[%s1 + $0x1c] sm:$0xf]
  %v35 = vld [vmem:[%s1 + $0x20] sm:$0xf]
  %v36 = vld [vmem:[%s1 + $0x24] sm:$0xf]
  %v37 = vld [vmem:[%s1 + $0x28] sm:$0xf]
  %v38 = vld [vmem:[%s1 + $0x2c] sm:$0xf]
  %v39 = vld [vmem:[%s1 + $0x30] sm:$0xf]
  %v40 = vld [vmem:[%s1 + $0x34] sm:$0xf]
  %v41 = vld [vmem:[%s1 + $0x38] sm:$0xf]
  %v42 = vld [vmem:[%s1 + $0x3c] sm:$0xf]
  %v43 = vlaneseq
  %v44 = vshrl.u32 %v43, 7
  %v45 = vadd.s32 %v44, 8
  %v46 = vadd.s32 %v44, 16
  %v47 = vadd.s32 %v44, 24
  %v48 = vadd.s32 %v44, 32
  %v49 = vadd.s32 %v44, 40
  %v50 = vadd.s32 %v44, 48
  %v51 = vadd.s32 %v44, 56
  %v52 = vadd.s32 %v44, 64
  %v53 = vadd.s32 %v44, 72
  %v54 = vadd.s32 %v44, 80
  %v55 = vadd.s32 %v44, 88
  %v56 = vadd.s32 %v44, 96
  %vm57 = vcmp.lt.s32.totalorder %v44, 98
  %vm58 = vcmp.lt.s32.totalorder %v45, 98
  %vm59 = vcmp.lt.s32.totalorder %v46, 98
  %vm60 = vcmp.lt.s32.totalorder %v47, 98
  %vm61 = vcmp.lt.s32.totalorder %v48, 98
  %vm62 = vcmp.lt.s32.totalorder %v49, 98
  %vm63 = vcmp.lt.s32.totalorder %v50, 98
  %vm64 = vcmp.lt.s32.totalorder %v51, 98
  %vm65 = vcmp.lt.s32.totalorder %v52, 98
  %vm66 = vcmp.lt.s32.totalorder %v53, 98
  %vm67 = vcmp.lt.s32.totalorder %v54, 98
  %vm68 = vcmp.lt.s32.totalorder %v55, 98
  %vm69 = vcmp.lt.s32.totalorder %v56, 98
  %v70 = vld [vmem:[%s2] sm:$0xff]
  %v71 = vperm.slane %v70, 0
  %v85 = vunpack.c.l.b16 %v14
  %v86 = vunpack.c.l.b16 %v15
  %v87 = vunpack.c.l.b16 %v16
  %v88 = vunpack.c.l.b16 %v17
  %v89 = vunpack.c.l.b16 %v18
  %v90 = vunpack.c.l.b16 %v19
  %v91 = vunpack.c.l.b16 %v20
  %v92 = vunpack.c.l.b16 %v21
  %v93 = vunpack.c.l.b16 %v22
  %v94 = vunpack.c.l.b16 %v23
  %v95 = vunpack.c.l.b16 %v24
  %v96 = vunpack.c.l.b16 %v25
  %v97 = vunpack.c.l.b16 %v26
  %v98 = vpack.c.b16 %v86, %v85
  %v99 = vpack.c.b16 %v88, %v87
  %v100 = vpack.c.b16 %v90, %v89
  %v101 = vpack.c.b16 %v92, %v91
  %v102 = vpack.c.b16 %v94, %v93
  %v103 = vpack.c.b16 %v96, %v95
  %v104 = vpack.c.b16 %v97, %v97
  %v128 = vunpack.c.l.b16 %v27
  %v129 = vunpack.c.l.b16 %v28
  %v130 = vunpack.c.l.b16 %v29
  %v131 = vunpack.c.l.b16 %v30
  %v132 = vunpack.c.l.b16 %v31
  %v133 = vunpack.c.l.b16 %v32
  %v134 = vunpack.c.l.b16 %v33
  %v135 = vunpack.c.l.b16 %v34
  %v136 = vunpack.c.l.b16 %v35
  %v137 = vunpack.c.l.b16 %v36
  %v138 = vunpack.c.l.b16 %v37
  %v139 = vunpack.c.l.b16 %v38
  %v140 = vunpack.c.l.b16 %v39
  %v141 = vunpack.c.l.b16 %v40
  %v142 = vunpack.c.l.b16 %v41
  %v143 = vunpack.c.l.b16 %v42
  %v144 = vpack.c.b16 %v129, %v128
  %v145 = vpack.c.b16 %v131, %v130
  %v146 = vpack.c.b16 %v133, %v132
  %v147 = vpack.c.b16 %v135, %v134
  %v148 = vpack.c.b16 %v137, %v136
  %v149 = vpack.c.b16 %v139, %v138
  %v150 = vpack.c.b16 %v141, %v140
  %v151 = vpack.c.b16 %v143, %v142
  %160 = vmatpush.bf16.msra.mxu0 %v151
  %161 = vmatpush.bf16.msra.mxu0 %v150
  %162 = vmatpush.bf16.msra.mxu0 %v149
  %163 = vmatpush.bf16.msra.mxu0 %v148
  %164 = vmatpush.bf16.msra.mxu0 %v147
  %165 = vmatpush.bf16.msra.mxu0 %v146
  %166 = vmatpush.bf16.msra.mxu0 %v145
  %167 = vmatpush.bf16.msra.mxu0 %v144
  %168 = vmatmul.bf16.gmra.mxu0 %v98
  %v169 = vpop.f32.mrf.mxu0
  %v170 = vadd.f32 %v71, %v169
  %v171 = vpop.f32.mrf.mxu0
  %v172 = vadd.f32 %v71, %v171
  %173 = vmatmul.bf16.gmra.mxu0 %v99
  %v174 = vpop.f32.mrf.mxu0
  %v175 = vadd.f32 %v71, %v174
  %v176 = vpop.f32.mrf.mxu0
  %v177 = vadd.f32 %v71, %v176
  %178 = vmatmul.bf16.gmra.mxu0 %v100
  %v179 = vpop.f32.mrf.mxu0
  %v180 = vadd.f32 %v71, %v179
  %v181 = vpop.f32.mrf.mxu0
  %v182 = vadd.f32 %v71, %v181
  %183 = vmatmul.bf16.gmra.mxu0 %v101
  %v184 = vpop.f32.mrf.mxu0
  %v185 = vadd.f32 %v71, %v184
  %v186 = vpop.f32.mrf.mxu0
  %v187 = vadd.f32 %v71, %v186
  %188 = vmatmul.bf16.gmra.mxu0 %v102
  %v189 = vpop.f32.mrf.mxu0
  %v190 = vadd.f32 %v71, %v189
  %v191 = vpop.f32.mrf.mxu0
  %v192 = vadd.f32 %v71, %v191
  %193 = vmatmul.bf16.gmra.mxu0 %v103
  %v194 = vpop.f32.mrf.mxu0
  %v195 = vadd.f32 %v71, %v194
  %v196 = vpop.f32.mrf.mxu0
  %v197 = vadd.f32 %v71, %v196
  %198 = vmatmul.bf16.gmra.mxu0 %v104
  %v199 = vpop.f32.mrf.mxu0
  %v200 = vadd.f32 %v71, %v199
  %v201 = vpop.f32.mrf.mxu0
  %202 = vdwg.mxu0
  %v203 = vsel %vm57, 1, 0
  %v204 = vsel %vm58, 1, 0
  %v205 = vsel %vm59, 1, 0
  %v206 = vsel %vm60, 1, 0
  %v207 = vsel %vm61, 1, 0
  %v208 = vsel %vm62, 1, 0
  %v209 = vsel %vm63, 1, 0
  %v210 = vsel %vm64, 1, 0
  %v211 = vsel %vm65, 1, 0
  %v212 = vsel %vm66, 1, 0
  %v213 = vsel %vm67, 1, 0
  %v214 = vsel %vm68, 1, 0
  %v215 = vsel %vm69, 1, 0
  %vm216 = vcmp.eq.s32.totalorder %v203, 1
  %vm217 = vcmp.eq.s32.totalorder %v204, 1
  %vm218 = vcmp.eq.s32.totalorder %v205, 1
  %vm219 = vcmp.eq.s32.totalorder %v206, 1
  %vm220 = vcmp.eq.s32.totalorder %v207, 1
  %vm221 = vcmp.eq.s32.totalorder %v208, 1
  %vm222 = vcmp.eq.s32.totalorder %v209, 1
  %vm223 = vcmp.eq.s32.totalorder %v210, 1
  %vm224 = vcmp.eq.s32.totalorder %v211, 1
  %vm225 = vcmp.eq.s32.totalorder %v212, 1
  %vm226 = vcmp.eq.s32.totalorder %v213, 1
  %vm227 = vcmp.eq.s32.totalorder %v214, 1
  %vm228 = vcmp.eq.s32.totalorder %v215, 1
  %v229 = vsel %vm216, %v170, 0.0
  %v230 = vsel %vm217, %v172, 0.0
  %v231 = vsel %vm218, %v175, 0.0
  %v232 = vsel %vm219, %v177, 0.0
  %v233 = vsel %vm220, %v180, 0.0
  %v234 = vsel %vm221, %v182, 0.0
  %v235 = vsel %vm222, %v185, 0.0
  %v236 = vsel %vm223, %v187, 0.0
  %v237 = vsel %vm224, %v190, 0.0
  %v238 = vsel %vm225, %v192, 0.0
  %v239 = vsel %vm226, %v195, 0.0
  %v240 = vsel %vm227, %v197, 0.0
  %v241 = vsel %vm228, %v200, 0.0
  %v242 = vadd.f32 %v229, %v230
  %v243 = vadd.f32 %v242, %v231
  %v244 = vadd.f32 %v243, %v232
  %v245 = vadd.f32 %v244, %v233
  %v246 = vadd.f32 %v245, %v234
  %v247 = vadd.f32 %v246, %v235
  %v248 = vadd.f32 %v247, %v236
  %v249 = vadd.f32 %v248, %v237
  %v250 = vadd.f32 %v249, %v238
  %v251 = vadd.f32 %v250, %v239
  %v252 = vadd.f32 %v251, %v240
  %v253 = vadd.f32 %v252, %v241
  %v254 = vrot.slane %v253, 4
  %v255 = vadd.f32 %v253, %v254
  %v256 = vrot.slane %v255, 2
  %v257 = vadd.f32 %v255, %v256
  %v258 = vrot.slane %v257, 1
  %v259 = vadd.f32 %v257, %v258
  %v260 = vmul.f32 %v259, 0.010204081
  %v261 = vsub.f32 %v170, %v260
  %v262 = vsub.f32 %v172, %v260
  %v263 = vsub.f32 %v175, %v260
  %v264 = vsub.f32 %v177, %v260
  %v265 = vsub.f32 %v180, %v260
  %v266 = vsub.f32 %v182, %v260
  %v267 = vsub.f32 %v185, %v260
  %v268 = vsub.f32 %v187, %v260
  %v269 = vsub.f32 %v190, %v260
  %v270 = vsub.f32 %v192, %v260
  %v271 = vsub.f32 %v195, %v260
  %v272 = vsub.f32 %v197, %v260
  %v273 = vsub.f32 %v200, %v260
  %v274 = vsel %vm216, %v261, 0.0
  %v275 = vsel %vm217, %v262, 0.0
  %v276 = vsel %vm218, %v263, 0.0
  %v277 = vsel %vm219, %v264, 0.0
  %v278 = vsel %vm220, %v265, 0.0
  %v279 = vsel %vm221, %v266, 0.0
  %v280 = vsel %vm222, %v267, 0.0
  %v281 = vsel %vm223, %v268, 0.0
  %v282 = vsel %vm224, %v269, 0.0
  %v283 = vsel %vm225, %v270, 0.0
  %v284 = vsel %vm226, %v271, 0.0
  %v285 = vsel %vm227, %v272, 0.0
  %v286 = vsel %vm228, %v273, 0.0
  %v287 = vmul.f32 %v274, %v274
  %v288 = vmul.f32 %v275, %v275
  %v289 = vmul.f32 %v276, %v276
  %v290 = vmul.f32 %v277, %v277
  %v291 = vmul.f32 %v278, %v278
  %v292 = vmul.f32 %v279, %v279
  %v293 = vmul.f32 %v280, %v280
  %v294 = vmul.f32 %v281, %v281
  %v295 = vmul.f32 %v282, %v282
  %v296 = vmul.f32 %v283, %v283
  %v297 = vmul.f32 %v284, %v284
  %v298 = vmul.f32 %v285, %v285
  %v299 = vmul.f32 %v286, %v286
  %v300 = vadd.f32 %v287, %v288
  %v301 = vadd.f32 %v300, %v289
  %v302 = vadd.f32 %v301, %v290
  %v303 = vadd.f32 %v302, %v291
  %v304 = vadd.f32 %v303, %v292
  %v305 = vadd.f32 %v304, %v293
  %v306 = vadd.f32 %v305, %v294
  %v307 = vadd.f32 %v306, %v295
  %v308 = vadd.f32 %v307, %v296
  %v309 = vadd.f32 %v308, %v297
  %v310 = vadd.f32 %v309, %v298
  %v311 = vadd.f32 %v310, %v299
  %v312 = vrot.slane %v311, 4
  %v313 = vadd.f32 %v311, %v312
  %v314 = vrot.slane %v313, 2
  %v315 = vadd.f32 %v313, %v314
  %v316 = vrot.slane %v315, 1
  %v317 = vadd.f32 %v315, %v316
  %v318 = vmul.f32 %v317, 0.010204081
  %v319 = vadd.f32 %v318, 1e-05
  %v320 = vrsqrt.pop %v319
  %v321 = vmul.f32 %v320, %v319
  %v322 = vmul.f32 %v321, %v320
  %v323 = vmul.f32 0.5, %v322
  %v324 = vsub.f32 1.5, %v323
  %v325 = vmul.f32 %v320, %v324
  %vm326 = vweird.f32 %v319
  %vm327 = vweird.f32 %v320
  %vm328 = vmor %vm326, %vm327
  %v329 = vsel %vm328, %v320, %v325
  %v330 = vmul.f32 %v261, %v329
  %v331 = vmul.f32 %v262, %v329
  %v332 = vmul.f32 %v263, %v329
  %v333 = vmul.f32 %v264, %v329
  %v334 = vmul.f32 %v265, %v329
  %v335 = vmul.f32 %v266, %v329
  %v336 = vmul.f32 %v267, %v329
  %v337 = vmul.f32 %v268, %v329
  %v338 = vmul.f32 %v269, %v329
  %v339 = vmul.f32 %v270, %v329
  %v340 = vmul.f32 %v271, %v329
  %v341 = vmul.f32 %v272, %v329
  %v342 = vmul.f32 %v273, %v329
  %v343 = vperm.slane %v70, 1
  %v344 = vmul.f32 %v330, %v343
  %v345 = vmul.f32 %v331, %v343
  %v346 = vmul.f32 %v332, %v343
  %v347 = vmul.f32 %v333, %v343
  %v348 = vmul.f32 %v334, %v343
  %v349 = vmul.f32 %v335, %v343
  %v350 = vmul.f32 %v336, %v343
  %v351 = vmul.f32 %v337, %v343
  %v352 = vmul.f32 %v338, %v343
  %v353 = vmul.f32 %v339, %v343
  %v354 = vmul.f32 %v340, %v343
  %v355 = vmul.f32 %v341, %v343
  %v356 = vmul.f32 %v342, %v343
  %v357 = vperm.slane %v70, 2
  %v358 = vadd.f32 %v344, %v357
  %v359 = vadd.f32 %v345, %v357
  %v360 = vadd.f32 %v346, %v357
  %v361 = vadd.f32 %v347, %v357
  %v362 = vadd.f32 %v348, %v357
  %v363 = vadd.f32 %v349, %v357
  %v364 = vadd.f32 %v350, %v357
  %v365 = vadd.f32 %v351, %v357
  %v366 = vadd.f32 %v352, %v357
  %v367 = vadd.f32 %v353, %v357
  %v368 = vadd.f32 %v354, %v357
  %v369 = vadd.f32 %v355, %v357
  %v370 = vadd.f32 %v356, %v357
  %vm371 = vcmp.gt.f32.partialorder %v358, 0.0
  %vm372 = vcmp.gt.f32.partialorder %v359, 0.0
  %vm373 = vcmp.gt.f32.partialorder %v360, 0.0
  %vm374 = vcmp.gt.f32.partialorder %v361, 0.0
  %vm375 = vcmp.gt.f32.partialorder %v362, 0.0
  %vm376 = vcmp.gt.f32.partialorder %v363, 0.0
  %vm377 = vcmp.gt.f32.partialorder %v364, 0.0
  %vm378 = vcmp.gt.f32.partialorder %v365, 0.0
  %vm379 = vcmp.gt.f32.partialorder %v366, 0.0
  %vm380 = vcmp.gt.f32.partialorder %v367, 0.0
  %vm381 = vcmp.gt.f32.partialorder %v368, 0.0
  %vm382 = vcmp.gt.f32.partialorder %v369, 0.0
  %vm383 = vcmp.gt.f32.partialorder %v370, 0.0
  %v384 = vmul.f32 %v358, 0.2
  %v385 = vmul.f32 %v359, 0.2
  %v386 = vmul.f32 %v360, 0.2
  %v387 = vmul.f32 %v361, 0.2
  %v388 = vmul.f32 %v362, 0.2
  %v389 = vmul.f32 %v363, 0.2
  %v390 = vmul.f32 %v364, 0.2
  %v391 = vmul.f32 %v365, 0.2
  %v392 = vmul.f32 %v366, 0.2
  %v393 = vmul.f32 %v367, 0.2
  %v394 = vmul.f32 %v368, 0.2
  %v395 = vmul.f32 %v369, 0.2
  %v396 = vmul.f32 %v370, 0.2
  %v397 = vsel %vm371, %v358, %v384
  %v398 = vsel %vm372, %v359, %v385
  %v399 = vsel %vm373, %v360, %v386
  %v400 = vsel %vm374, %v361, %v387
  %v401 = vsel %vm375, %v362, %v388
  %v402 = vsel %vm376, %v363, %v389
  %v403 = vsel %vm377, %v364, %v390
  %v404 = vsel %vm378, %v365, %v391
  %v405 = vsel %vm379, %v366, %v392
  %v406 = vsel %vm380, %v367, %v393
  %v407 = vsel %vm381, %v368, %v394
  %v408 = vsel %vm382, %v369, %v395
  %v409 = vsel %vm383, %v370, %v396
  %v410 = vsel %vm216, %v397, 0.0
  %v411 = vsel %vm217, %v398, 0.0
  %v412 = vsel %vm218, %v399, 0.0
  %v413 = vsel %vm219, %v400, 0.0
  %v414 = vsel %vm220, %v401, 0.0
  %v415 = vsel %vm221, %v402, 0.0
  %v416 = vsel %vm222, %v403, 0.0
  %v417 = vsel %vm223, %v404, 0.0
  %v418 = vsel %vm224, %v405, 0.0
  %v419 = vsel %vm225, %v406, 0.0
  %v420 = vsel %vm226, %v407, 0.0
  %v421 = vsel %vm227, %v408, 0.0
  %v422 = vsel %vm228, %v409, 0.0
  %423 = vst [vmem:[%s3] sm:$0xff] %v410
  %424 = vst [vmem:[%s3 + $0x8] sm:$0xff] %v411
  %425 = vst [vmem:[%s3 + $0x10] sm:$0xff] %v412
  %426 = vst [vmem:[%s3 + $0x18] sm:$0xff] %v413
  %427 = vst [vmem:[%s3 + $0x20] sm:$0xff] %v414
  %428 = vst [vmem:[%s3 + $0x28] sm:$0xff] %v415
  %429 = vst [vmem:[%s3 + $0x30] sm:$0xff] %v416
  %430 = vst [vmem:[%s3 + $0x38] sm:$0xff] %v417
  %431 = vst [vmem:[%s3 + $0x40] sm:$0xff] %v418
  %432 = vst [vmem:[%s3 + $0x48] sm:$0xff] %v419
  %433 = vst [vmem:[%s3 + $0x50] sm:$0xff] %v420
  %434 = vst [vmem:[%s3 + $0x58] sm:$0xff] %v421
  %435 = vst [vmem:[%s3 + $0x60] sm:$0xff] %v422
  // Predicated region
  $region14: #{discriminator_forward.5} parent=0 // pred_check
    _
  $region15: #{discriminator_forward.5} parent=0 // pred_check_branch
    %437 = sbr.rel (0) target = $region17
  $region16: #{discriminator_forward.5} parent=0 // pred_region
    _
  $region17: #{discriminator_forward.5} parent=0 // pred_fallthru
    _
  // Predicated region
  $region18: #{discriminator_forward.5} parent=0 // pred_check
    _
  $region19: #{discriminator_forward.5} parent=0 // pred_check_branch
    %439 = sbr.rel (0) target = $region21
  $region20: #{discriminator_forward.5} parent=0 // pred_region
    _
  $region21: #{discriminator_forward.5} parent=0 // pred_fallthru
    _

// kernel: discriminator_forward.6
$region0: #{discriminator_forward.6}
  #allocation0 [shape = 'u32[]', space=smem, size = 0x4, offset = 0x4, fixed_abs, tag = 'smem constant byte address 0x4 - core index']
  #allocation1 [shape = 'u32[72,128]{1,0:T(1,128)}', space=vmem, size = 0x9000, scoped, tag = 'internal scratch']
  %s0 = inlined_call_operand.vmem [shape: bf16[72,1024], index: 0, kind: input, shape index: {}]
  %s1 = inlined_call_operand.vmem [shape: bf16[1024,128], index: 1, kind: input, shape index: {}]
  %s2 = inlined_call_operand.vmem [shape: f32[8,128], index: 2, kind: input, shape index: {}]
  %s3 = inlined_call_operand.vmem [shape: f32[72,128], index: 3, kind: output, shape index: {}]
  %s4 = sld [smem:[#allocation0]]
  $region22: #{discriminator_forward.6} parent=0
    _
  %s6 = ssub.s32 1, %s4
  %s7 = scalar_select 0, %s6, %s4
  // Predicated region
  $region2: #{discriminator_forward.6} parent=0 // pred_check
    _
  $region3: #{discriminator_forward.6} parent=0 // pred_check_branch
    %9 = sbr.rel (0) target = $region5
  $region4: #{discriminator_forward.6} parent=0 // pred_region
    _
  $region5: #{discriminator_forward.6} parent=0 // pred_fallthru
    _
  // Predicated region
  $region6: #{discriminator_forward.6} parent=0 // pred_check
    _
  $region7: #{discriminator_forward.6} parent=0 // pred_check_branch
    %11 = sbr.rel (0) target = $region9
  $region8: #{discriminator_forward.6} parent=0 // pred_region
    _
  $region9: #{discriminator_forward.6} parent=0 // pred_fallthru
    _
  // Predicated region
  $region10: #{discriminator_forward.6} parent=0 // pred_check
    _
  $region11: #{discriminator_forward.6} parent=0 // pred_check_branch
    %13 = sbr.rel (0) target = $region13
  $region12: #{discriminator_forward.6} parent=0 // pred_region
    _
  $region13: #{discriminator_forward.6} parent=0 // pred_fallthru
    _
  %v14 = vld [vmem:[%s0] sm:$0xff]
  %v15 = vld [vmem:[%s0 + $0x8] sm:$0xff]
  %v16 = vld [vmem:[%s0 + $0x10] sm:$0xff]
  %v17 = vld [vmem:[%s0 + $0x18] sm:$0xff]
  %v18 = vld [vmem:[%s0 + $0x20] sm:$0xff]
  %v19 = vld [vmem:[%s0 + $0x28] sm:$0xff]
  %v20 = vld [vmem:[%s0 + $0x30] sm:$0xff]
  %v21 = vld [vmem:[%s0 + $0x38] sm:$0xff]
  %v22 = vld [vmem:[%s0 + $0x40] sm:$0xff]
  %v23 = vld [vmem:[%s0 + $0x48] sm:$0xff]
  %v24 = vld [vmem:[%s0 + $0x50] sm:$0xff]
  %v25 = vld [vmem:[%s0 + $0x58] sm:$0xff]
  %v26 = vld [vmem:[%s0 + $0x60] sm:$0xff]
  %v27 = vld [vmem:[%s0 + $0x68] sm:$0xff]
  %v28 = vld [vmem:[%s0 + $0x70] sm:$0xff]
  %v29 = vld [vmem:[%s0 + $0x78] sm:$0xff]
  %v30 = vld [vmem:[%s0 + $0x80] sm:$0xff]
  %v31 = vld [vmem:[%s0 + $0x88] sm:$0xff]
  %v32 = vld [vmem:[%s0 + $0x90] sm:$0xff]
  %v33 = vld [vmem:[%s0 + $0x98] sm:$0xff]
  %v34 = vld [vmem:[%s0 + $0xa0] sm:$0xff]
  %v35 = vld [vmem:[%s0 + $0xa8] sm:$0xff]
  %v36 = vld [vmem:[%s0 + $0xb0] sm:$0xff]
  %v37 = vld [vmem:[%s0 + $0xb8] sm:$0xff]
  %v38 = vld [vmem:[%s0 + $0xc0] sm:$0xff]
  %v39 = vld [vmem:[%s0 + $0xc8] sm:$0xff]
  %v40 = vld [vmem:[%s0 + $0xd0] sm:$0xff]
  %v41 = vld [vmem:[%s0 + $0xd8] sm:$0xff]
  %v42 = vld [vmem:[%s0 + $0xe0] sm:$0xff]
  %v43 = vld [vmem:[%s0 + $0xe8] sm:$0xff]
  %v44 = vld [vmem:[%s0 + $0xf0] sm:$0xff]
  %v45 = vld [vmem:[%s0 + $0xf8] sm:$0xff]
  %v46 = vld [vmem:[%s0 + $0x100] sm:$0xff]
  %v47 = vld [vmem:[%s0 + $0x108] sm:$0xff]
  %v48 = vld [vmem:[%s0 + $0x110] sm:$0xff]
  %v49 = vld [vmem:[%s0 + $0x118] sm:$0xff]
  %v50 = vld [vmem:[%s1] sm:$0xf]
  %v51 = vld [vmem:[%s1 + $0x4] sm:$0xf]
  %v52 = vld [vmem:[%s1 + $0x8] sm:$0xf]
  %v53 = vld [vmem:[%s1 + $0xc] sm:$0xf]
  %v54 = vld [vmem:[%s1 + $0x10] sm:$0xf]
  %v55 = vld [vmem:[%s1 + $0x14] sm:$0xf]
  %v56 = vld [vmem:[%s1 + $0x18] sm:$0xf]
  %v57 = vld [vmem:[%s1 + $0x1c] sm:$0xf]
  %v58 = vld [vmem:[%s1 + $0x20] sm:$0xf]
  %v59 = vld [vmem:[%s1 + $0x24] sm:$0xf]
  %v60 = vld [vmem:[%s1 + $0x28] sm:$0xf]
  %v61 = vld [vmem:[%s1 + $0x2c] sm:$0xf]
  %v62 = vld [vmem:[%s1 + $0x30] sm:$0xf]
  %v63 = vld [vmem:[%s1 + $0x34] sm:$0xf]
  %v64 = vld [vmem:[%s1 + $0x38] sm:$0xf]
  %v65 = vld [vmem:[%s1 + $0x3c] sm:$0xf]
  %v66 = vld [vmem:[%s1 + $0x40] sm:$0xf]
  %v67 = vld [vmem:[%s1 + $0x44] sm:$0xf]
  %v68 = vld [vmem:[%s1 + $0x48] sm:$0xf]
  %v69 = vld [vmem:[%s1 + $0x4c] sm:$0xf]
  %v70 = vld [vmem:[%s1 + $0x50] sm:$0xf]
  %v71 = vld [vmem:[%s1 + $0x54] sm:$0xf]
  %v72 = vld [vmem:[%s1 + $0x58] sm:$0xf]
  %v73 = vld [vmem:[%s1 + $0x5c] sm:$0xf]
  %v74 = vld [vmem:[%s1 + $0x60] sm:$0xf]
  %v75 = vld [vmem:[%s1 + $0x64] sm:$0xf]
  %v76 = vld [vmem:[%s1 + $0x68] sm:$0xf]
  %v77 = vld [vmem:[%s1 + $0x6c] sm:$0xf]
  %v78 = vld [vmem:[%s1 + $0x70] sm:$0xf]
  %v79 = vld [vmem:[%s1 + $0x74] sm:$0xf]
  %v80 = vld [vmem:[%s1 + $0x78] sm:$0xf]
  %v81 = vld [vmem:[%s1 + $0x7c] sm:$0xf]
  %v82 = vld [vmem:[%s1 + $0x80] sm:$0xf]
  %v83 = vld [vmem:[%s1 + $0x84] sm:$0xf]
  %v84 = vld [vmem:[%s1 + $0x88] sm:$0xf]
  %v85 = vld [vmem:[%s1 + $0x8c] sm:$0xf]
  %v86 = vld [vmem:[%s1 + $0x90] sm:$0xf]
  %v87 = vld [vmem:[%s1 + $0x94] sm:$0xf]
  %v88 = vld [vmem:[%s1 + $0x98] sm:$0xf]
  %v89 = vld [vmem:[%s1 + $0x9c] sm:$0xf]
  %v90 = vld [vmem:[%s1 + $0xa0] sm:$0xf]
  %v91 = vld [vmem:[%s1 + $0xa4] sm:$0xf]
  %v92 = vld [vmem:[%s1 + $0xa8] sm:$0xf]
  %v93 = vld [vmem:[%s1 + $0xac] sm:$0xf]
  %v94 = vld [vmem:[%s1 + $0xb0] sm:$0xf]
  %v95 = vld [vmem:[%s1 + $0xb4] sm:$0xf]
  %v96 = vld [vmem:[%s1 + $0xb8] sm:$0xf]
  %v97 = vld [vmem:[%s1 + $0xbc] sm:$0xf]
  %v98 = vld [vmem:[%s1 + $0xc0] sm:$0xf]
  %v99 = vld [vmem:[%s1 + $0xc4] sm:$0xf]
  %v100 = vld [vmem:[%s1 + $0xc8] sm:$0xf]
  %v101 = vld [vmem:[%s1 + $0xcc] sm:$0xf]
  %v102 = vld [vmem:[%s1 + $0xd0] sm:$0xf]
  %v103 = vld [vmem:[%s1 + $0xd4] sm:$0xf]
  %v104 = vld [vmem:[%s1 + $0xd8] sm:$0xf]
  %v105 = vld [vmem:[%s1 + $0xdc] sm:$0xf]
  %v106 = vld [vmem:[%s1 + $0xe0] sm:$0xf]
  %v107 = vld [vmem:[%s1 + $0xe4] sm:$0xf]
  %v108 = vld [vmem:[%s1 + $0xe8] sm:$0xf]
  %v109 = vld [vmem:[%s1 + $0xec] sm:$0xf]
  %v110 = vld [vmem:[%s1 + $0xf0] sm:$0xf]
  %v111 = vld [vmem:[%s1 + $0xf4] sm:$0xf]
  %v112 = vld [vmem:[%s1 + $0xf8] sm:$0xf]
  %v113 = vld [vmem:[%s1 + $0xfc] sm:$0xf]
  %v114 = vld [vmem:[%s1 + $0x100] sm:$0xf]
  %v115 = vld [vmem:[%s1 + $0x104] sm:$0xf]
  %v116 = vld [vmem:[%s1 + $0x108] sm:$0xf]
  %v117 = vld [vmem:[%s1 + $0x10c] sm:$0xf]
  %v118 = vld [vmem:[%s1 + $0x110] sm:$0xf]
  %v119 = vld [vmem:[%s1 + $0x114] sm:$0xf]
  %v120 = vld [vmem:[%s1 + $0x118] sm:$0xf]
  %v121 = vld [vmem:[%s1 + $0x11c] sm:$0xf]
  %v122 = vld [vmem:[%s1 + $0x120] sm:$0xf]
  %v123 = vld [vmem:[%s1 + $0x124] sm:$0xf]
  %v124 = vld [vmem:[%s1 + $0x128] sm:$0xf]
  %v125 = vld [vmem:[%s1 + $0x12c] sm:$0xf]
  %v126 = vld [vmem:[%s1 + $0x130] sm:$0xf]
  %v127 = vld [vmem:[%s1 + $0x134] sm:$0xf]
  %v128 = vld [vmem:[%s1 + $0x138] sm:$0xf]
  %v129 = vld [vmem:[%s1 + $0x13c] sm:$0xf]
  %v130 = vld [vmem:[%s1 + $0x140] sm:$0xf]
  %v131 = vld [vmem:[%s1 + $0x144] sm:$0xf]
  %v132 = vld [vmem:[%s1 + $0x148] sm:$0xf]
  %v133 = vld [vmem:[%s1 + $0x14c] sm:$0xf]
  %v134 = vld [vmem:[%s1 + $0x150] sm:$0xf]
  %v135 = vld [vmem:[%s1 + $0x154] sm:$0xf]
  %v136 = vld [vmem:[%s1 + $0x158] sm:$0xf]
  %v137 = vld [vmem:[%s1 + $0x15c] sm:$0xf]
  %v138 = vld [vmem:[%s1 + $0x160] sm:$0xf]
  %v139 = vld [vmem:[%s1 + $0x164] sm:$0xf]
  %v140 = vld [vmem:[%s1 + $0x168] sm:$0xf]
  %v141 = vld [vmem:[%s1 + $0x16c] sm:$0xf]
  %v142 = vld [vmem:[%s1 + $0x170] sm:$0xf]
  %v143 = vld [vmem:[%s1 + $0x174] sm:$0xf]
  %v144 = vld [vmem:[%s1 + $0x178] sm:$0xf]
  %v145 = vld [vmem:[%s1 + $0x17c] sm:$0xf]
  %v146 = vld [vmem:[%s1 + $0x180] sm:$0xf]
  %v147 = vld [vmem:[%s1 + $0x184] sm:$0xf]
  %v148 = vld [vmem:[%s1 + $0x188] sm:$0xf]
  %v149 = vld [vmem:[%s1 + $0x18c] sm:$0xf]
  %v150 = vld [vmem:[%s1 + $0x190] sm:$0xf]
  %v151 = vld [vmem:[%s1 + $0x194] sm:$0xf]
  %v152 = vld [vmem:[%s1 + $0x198] sm:$0xf]
  %v153 = vld [vmem:[%s1 + $0x19c] sm:$0xf]
  %v154 = vld [vmem:[%s1 + $0x1a0] sm:$0xf]
  %v155 = vld [vmem:[%s1 + $0x1a4] sm:$0xf]
  %v156 = vld [vmem:[%s1 + $0x1a8] sm:$0xf]
  %v157 = vld [vmem:[%s1 + $0x1ac] sm:$0xf]
  %v158 = vld [vmem:[%s1 + $0x1b0] sm:$0xf]
  %v159 = vld [vmem:[%s1 + $0x1b4] sm:$0xf]
  %v160 = vld [vmem:[%s1 + $0x1b8] sm:$0xf]
  %v161 = vld [vmem:[%s1 + $0x1bc] sm:$0xf]
  %v162 = vld [vmem:[%s1 + $0x1c0] sm:$0xf]
  %v163 = vld [vmem:[%s1 + $0x1c4] sm:$0xf]
  %v164 = vld [vmem:[%s1 + $0x1c8] sm:$0xf]
  %v165 = vld [vmem:[%s1 + $0x1cc] sm:$0xf]
  %v166 = vld [vmem:[%s1 + $0x1d0] sm:$0xf]
  %v167 = vld [vmem:[%s1 + $0x1d4] sm:$0xf]
  %v168 = vld [vmem:[%s1 + $0x1d8] sm:$0xf]
  %v169 = vld [vmem:[%s1 + $0x1dc] sm:$0xf]
  %v170 = vld [vmem:[%s1 + $0x1e0] sm:$0xf]
  %v171 = vld [vmem:[%s1 + $0x1e4] sm:$0xf]
  %v172 = vld [vmem:[%s1 + $0x1e8] sm:$0xf]
  %v173 = vld [vmem:[%s1 + $0x1ec] sm:$0xf]
  %v174 = vld [vmem:[%s1 + $0x1f0] sm:$0xf]
  %v175 = vld [vmem:[%s1 + $0x1f4] sm:$0xf]
  %v176 = vld [vmem:[%s1 + $0x1f8] sm:$0xf]
  %v177 = vld [vmem:[%s1 + $0x1fc] sm:$0xf]
  %v178 = vlaneseq
  %v179 = vshrl.u32 %v178, 7
  %v180 = vadd.s32 %v179, 8
  %v181 = vadd.s32 %v179, 16
  %v182 = vadd.s32 %v179, 24
  %v183 = vadd.s32 %v179, 32
  %v184 = vadd.s32 %v179, 40
  %v185 = vadd.s32 %v179, 48
  %v186 = vadd.s32 %v179, 56
  %v187 = vadd.s32 %v179, 64
  %vm188 = vcmp.lt.s32.totalorder %v179, 72
  %vm189 = vcmp.lt.s32.totalorder %v180, 72
  %vm190 = vcmp.lt.s32.totalorder %v181, 72
  %vm191 = vcmp.lt.s32.totalorder %v182, 72
  %vm192 = vcmp.lt.s32.totalorder %v183, 72
  %vm193 = vcmp.lt.s32.totalorder %v184, 72
  %vm194 = vcmp.lt.s32.totalorder %v185, 72
  %vm195 = vcmp.lt.s32.totalorder %v186, 72
  %vm196 = vcmp.lt.s32.totalorder %v187, 72
  %v197 = vld [vmem:[%s2] sm:$0xff]
  %v198 = vperm.slane %v197, 0
  %v235 = vunpack.c.l.b16 %v14
  %v236 = vunpack.c.h.b16 %v14
  %v237 = vunpack.c.l.b16 %v15
  %v238 = vunpack.c.h.b16 %v15
  %v239 = vunpack.c.l.b16 %v16
  %v240 = vunpack.c.h.b16 %v16
  %v241 = vunpack.c.l.b16 %v17
  %v242 = vunpack.c.h.b16 %v17
  %v243 = vunpack.c.l.b16 %v18
  %v244 = vunpack.c.h.b16 %v18
  %v245 = vunpack.c.l.b16 %v19
  %v246 = vunpack.c.h.b16 %v19
  %v247 = vunpack.c.l.b16 %v20
  %v248 = vunpack.c.h.b16 %v20
  %v249 = vunpack.c.l.b16 %v21
  %v250 = vunpack.c.h.b16 %v21
  %v251 = vunpack.c.l.b16 %v22
  %v252 = vunpack.c.h.b16 %v22
  %v253 = vunpack.c.l.b16 %v23
  %v254 = vunpack.c.h.b16 %v23
  %v255 = vunpack.c.l.b16 %v24
  %v256 = vunpack.c.h.b16 %v24
  %v257 = vunpack.c.l.b16 %v25
  %v258 = vunpack.c.h.b16 %v25
  %v259 = vunpack.c.l.b16 %v26
  %v260 = vunpack.c.h.b16 %v26
  %v261 = vunpack.c.l.b16 %v27
  %v262 = vunpack.c.h.b16 %v27
  %v263 = vunpack.c.l.b16 %v28
  %v264 = vunpack.c.h.b16 %v28
  %v265 = vunpack.c.l.b16 %v29
  %v266 = vunpack.c.h.b16 %v29
  %v267 = vunpack.c.l.b16 %v30
  %v268 = vunpack.c.h.b16 %v30
  %v269 = vunpack.c.l.b16 %v31
  %v270 = vunpack.c.h.b16 %v31
  %v271 = vunpack.c.l.b16 %v32
  %v272 = vunpack.c.h.b16 %v32
  %v273 = vunpack.c.l.b16 %v33
  %v274 = vunpack.c.h.b16 %v33
  %v275 = vunpack.c.l.b16 %v34
  %v276 = vunpack.c.h.b16 %v34
  %v277 = vunpack.c.l.b16 %v35
  %v278 = vunpack.c.h.b16 %v35
  %v279 = vunpack.c.l.b16 %v36
  %v280 = vunpack.c.h.b16 %v36
  %v281 = vunpack.c.l.b16 %v37
  %v282 = vunpack.c.h.b16 %v37
  %v283 = vunpack.c.l.b16 %v38
  %v284 = vunpack.c.h.b16 %v38
  %v285 = vunpack.c.l.b16 %v39
  %v286 = vunpack.c.h.b16 %v39
  %v287 = vunpack.c.l.b16 %v40
  %v288 = vunpack.c.h.b16 %v40
  %v289 = vunpack.c.l.b16 %v41
  %v290 = vunpack.c.h.b16 %v41
  %v291 = vunpack.c.l.b16 %v42
  %v292 = vunpack.c.h.b16 %v42
  %v293 = vunpack.c.l.b16 %v43
  %v294 = vunpack.c.h.b16 %v43
  %v295 = vunpack.c.l.b16 %v44
  %v296 = vunpack.c.h.b16 %v44
  %v297 = vunpack.c.l.b16 %v45
  %v298 = vunpack.c.h.b16 %v45
  %v299 = vunpack.c.l.b16 %v46
  %v300 = vunpack.c.h.b16 %v46
  %v301 = vunpack.c.l.b16 %v47
  %v302 = vunpack.c.h.b16 %v47
  %v303 = vunpack.c.l.b16 %v48
  %v304 = vunpack.c.h.b16 %v48
  %v305 = vunpack.c.l.b16 %v49
  %v306 = vunpack.c.h.b16 %v49
  %v307 = vpack.c.b16 %v243, %v235
  %v308 = vpack.c.b16 %v244, %v236
  %v309 = vpack.c.b16 %v245, %v237
  %v310 = vpack.c.b16 %v246, %v238
  %v311 = vpack.c.b16 %v247, %v239
  %v312 = vpack.c.b16 %v248, %v240
  %v313 = vpack.c.b16 %v249, %v241
  %v314 = vpack.c.b16 %v250, %v242
  %v315 = vpack.c.b16 %v259, %v251
  %v316 = vpack.c.b16 %v260, %v252
  %v317 = vpack.c.b16 %v261, %v253
  %v318 = vpack.c.b16 %v262, %v254
  %v319 = vpack.c.b16 %v263, %v255
  %v320 = vpack.c.b16 %v264, %v256
  %v321 = vpack.c.b16 %v265, %v257
  %v322 = vpack.c.b16 %v266, %v258
  %v323 = vpack.c.b16 %v275, %v267
  %v324 = vpack.c.b16 %v276, %v268
  %v325 = vpack.c.b16 %v277, %v269
  %v326 = vpack.c.b16 %v278, %v270
  %v327 = vpack.c.b16 %v279, %v271
  %v328 = vpack.c.b16 %v280, %v272
  %v329 = vpack.c.b16 %v281, %v273
  %v330 = vpack.c.b16 %v282, %v274
  %v331 = vpack.c.b16 %v291, %v283
  %v332 = vpack.c.b16 %v292, %v284
  %v333 = vpack.c.b16 %v293, %v285
  %v334 = vpack.c.b16 %v294, %v286
  %v335 = vpack.c.b16 %v295, %v287
  %v336 = vpack.c.b16 %v296, %v288
  %v337 = vpack.c.b16 %v297, %v289
  %v338 = vpack.c.b16 %v298, %v290
  %v339 = vpack.c.b16 %v299, %v299
  %v340 = vpack.c.b16 %v300, %v300
  %v341 = vpack.c.b16 %v301, %v301
  %v342 = vpack.c.b16 %v302, %v302
  %v343 = vpack.c.b16 %v303, %v303
  %v344 = vpack.c.b16 %v304, %v304
  %v345 = vpack.c.b16 %v305, %v305
  %v346 = vpack.c.b16 %v306, %v306
  %v515 = vunpack.c.l.b16 %v50
  %v516 = vunpack.c.l.b16 %v51
  %v517 = vunpack.c.l.b16 %v52
  %v518 = vunpack.c.l.b16 %v53
  %v519 = vunpack.c.l.b16 %v54
  %v520 = vunpack.c.l.b16 %v55
  %v521 = vunpack.c.l.b16 %v56
  %v522 = vunpack.c.l.b16 %v57
  %v523 = vunpack.c.l.b16 %v58
  %v524 = vunpack.c.l.b16 %v59
  %v525 = vunpack.c.l.b16 %v60
  %v526 = vunpack.c.l.b16 %v61
  %v527 = vunpack.c.l.b16 %v62
  %v528 = vunpack.c.l.b16 %v63
  %v529 = vunpack.c.l.b16 %v64
  %v530 = vunpack.c.l.b16 %v65
  %v531 = vunpack.c.l.b16 %v66
  %v532 = vunpack.c.l.b16 %v67
  %v533 = vunpack.c.l.b16 %v68
  %v534 = vunpack.c.l.b16 %v69
  %v535 = vunpack.c.l.b16 %v70
  %v536 = vunpack.c.l.b16 %v71
  %v537 = vunpack.c.l.b16 %v72
  %v538 = vunpack.c.l.b16 %v73
  %v539 = vunpack.c.l.b16 %v74
  %v540 = vunpack.c.l.b16 %v75
  %v541 = vunpack.c.l.b16 %v76
  %v542 = vunpack.c.l.b16 %v77
  %v543 = vunpack.c.l.b16 %v78
  %v544 = vunpack.c.l.b16 %v79
  %v545 = vunpack.c.l.b16 %v80
  %v546 = vunpack.c.l.b16 %v81
  %v547 = vunpack.c.l.b16 %v82
  %v548 = vunpack.c.l.b16 %v83
  %v549 = vunpack.c.l.b16 %v84
  %v550 = vunpack.c.l.b16 %v85
  %v551 = vunpack.c.l.b16 %v86
  %v552 = vunpack.c.l.b16 %v87
  %v553 = vunpack.c.l.b16 %v88
  %v554 = vunpack.c.l.b16 %v89
  %v555 = vunpack.c.l.b16 %v90
  %v556 = vunpack.c.l.b16 %v91
  %v557 = vunpack.c.l.b16 %v92
  %v558 = vunpack.c.l.b16 %v93
  %v559 = vunpack.c.l.b16 %v94
  %v560 = vunpack.c.l.b16 %v95
  %v561 = vunpack.c.l.b16 %v96
  %v562 = vunpack.c.l.b16 %v97
  %v563 = vunpack.c.l.b16 %v98
  %v564 = vunpack.c.l.b16 %v99
  %v565 = vunpack.c.l.b16 %v100
  %v566 = vunpack.c.l.b16 %v101
  %v567 = vunpack.c.l.b16 %v102
  %v568 = vunpack.c.l.b16 %v103
  %v569 = vunpack.c.l.b16 %v104
  %v570 = vunpack.c.l.b16 %v105
  %v571 = vunpack.c.l.b16 %v106
  %v572 = vunpack.c.l.b16 %v107
  %v573 = vunpack.c.l.b16 %v108
  %v574 = vunpack.c.l.b16 %v109
  %v575 = vunpack.c.l.b16 %v110
  %v576 = vunpack.c.l.b16 %v111
  %v577 = vunpack.c.l.b16 %v112
  %v578 = vunpack.c.l.b16 %v113
  %v579 = vunpack.c.l.b16 %v114
  %v580 = vunpack.c.l.b16 %v115
  %v581 = vunpack.c.l.b16 %v116
  %v582 = vunpack.c.l.b16 %v117
  %v583 = vunpack.c.l.b16 %v118
  %v584 = vunpack.c.l.b16 %v119
  %v585 = vunpack.c.l.b16 %v120
  %v586 = vunpack.c.l.b16 %v121
  %v587 = vunpack.c.l.b16 %v122
  %v588 = vunpack.c.l.b16 %v123
  %v589 = vunpack.c.l.b16 %v124
  %v590 = vunpack.c.l.b16 %v125
  %v591 = vunpack.c.l.b16 %v126
  %v592 = vunpack.c.l.b16 %v127
  %v593 = vunpack.c.l.b16 %v128
  %v594 = vunpack.c.l.b16 %v129
  %v595 = vunpack.c.l.b16 %v130
  %v596 = vunpack.c.l.b16 %v131
  %v597 = vunpack.c.l.b16 %v132
  %v598 = vunpack.c.l.b16 %v133
  %v599 = vunpack.c.l.b16 %v134
  %v600 = vunpack.c.l.b16 %v135
  %v601 = vunpack.c.l.b16 %v136
  %v602 = vunpack.c.l.b16 %v137
  %v603 = vunpack.c.l.b16 %v138
  %v604 = vunpack.c.l.b16 %v139
  %v605 = vunpack.c.l.b16 %v140
  %v606 = vunpack.c.l.b16 %v141
  %v607 = vunpack.c.l.b16 %v142
  %v608 = vunpack.c.l.b16 %v143
  %v609 = vunpack.c.l.b16 %v144
  %v610 = vunpack.c.l.b16 %v145
  %v611 = vunpack.c.l.b16 %v146
  %v612 = vunpack.c.l.b16 %v147
  %v613 = vunpack.c.l.b16 %v148
  %v614 = vunpack.c.l.b16 %v149
  %v615 = vunpack.c.l.b16 %v150
  %v616 = vunpack.c.l.b16 %v151
  %v617 = vunpack.c.l.b16 %v152
  %v618 = vunpack.c.l.b16 %v153
  %v619 = vunpack.c.l.b16 %v154
  %v620 = vunpack.c.l.b16 %v155
  %v621 = vunpack.c.l.b16 %v156
  %v622 = vunpack.c.l.b16 %v157
  %v623 = vunpack.c.l.b16 %v158
  %v624 = vunpack.c.l.b16 %v159
  %v625 = vunpack.c.l.b16 %v160
  %v626 = vunpack.c.l.b16 %v161
  %v627 = vunpack.c.l.b16 %v162
  %v628 = vunpack.c.l.b16 %v163
  %v629 = vunpack.c.l.b16 %v164
  %v630 = vunpack.c.l.b16 %v165
  %v631 = vunpack.c.l.b16 %v166
  %v632 = vunpack.c.l.b16 %v167
  %v633 = vunpack.c.l.b16 %v168
  %v634 = vunpack.c.l.b16 %v169
  %v635 = vunpack.c.l.b16 %v170
  %v636 = vunpack.c.l.b16 %v171
  %v637 = vunpack.c.l.b16 %v172
  %v638 = vunpack.c.l.b16 %v173
  %v639 = vunpack.c.l.b16 %v174
  %v640 = vunpack.c.l.b16 %v175
  %v641 = vunpack.c.l.b16 %v176
  %v642 = vunpack.c.l.b16 %v177
  %v643 = vpack.c.b16 %v516, %v515
  %v644 = vpack.c.b16 %v518, %v517
  %v645 = vpack.c.b16 %v520, %v519
  %v646 = vpack.c.b16 %v522, %v521
  %v647 = vpack.c.b16 %v524, %v523
  %v648 = vpack.c.b16 %v526, %v525
  %v649 = vpack.c.b16 %v528, %v527
  %v650 = vpack.c.b16 %v530, %v529
  %v651 = vpack.c.b16 %v532, %v531
  %v652 = vpack.c.b16 %v534, %v533
  %v653 = vpack.c.b16 %v536, %v535
  %v654 = vpack.c.b16 %v538, %v537
  %v655 = vpack.c.b16 %v540, %v539
  %v656 = vpack.c.b16 %v542, %v541
  %v657 = vpack.c.b16 %v544, %v543
  %v658 = vpack.c.b16 %v546, %v545
  %v659 = vpack.c.b16 %v548, %v547
  %v660 = vpack.c.b16 %v550, %v549
  %v661 = vpack.c.b16 %v552, %v551
  %v662 = vpack.c.b16 %v554, %v553
  %v663 = vpack.c.b16 %v556, %v555
  %v664 = vpack.c.b16 %v558, %v557
  %v665 = vpack.c.b16 %v560, %v559
  %v666 = vpack.c.b16 %v562, %v561
  %v667 = vpack.c.b16 %v564, %v563
  %v668 = vpack.c.b16 %v566, %v565
  %v669 = vpack.c.b16 %v568, %v567
  %v670 = vpack.c.b16 %v570, %v569
  %v671 = vpack.c.b16 %v572, %v571
  %v672 = vpack.c.b16 %v574, %v573
  %v673 = vpack.c.b16 %v576, %v575
  %v674 = vpack.c.b16 %v578, %v577
  %v675 = vpack.c.b16 %v580, %v579
  %v676 = vpack.c.b16 %v582, %v581
  %v677 = vpack.c.b16 %v584, %v583
  %v678 = vpack.c.b16 %v586, %v585
  %v679 = vpack.c.b16 %v588, %v587
  %v680 = vpack.c.b16 %v590, %v589
  %v681 = vpack.c.b16 %v592, %v591
  %v682 = vpack.c.b16 %v594, %v593
  %v683 = vpack.c.b16 %v596, %v595
  %v684 = vpack.c.b16 %v598, %v597
  %v685 = vpack.c.b16 %v600, %v599
  %v686 = vpack.c.b16 %v602, %v601
  %v687 = vpack.c.b16 %v604, %v603
  %v688 = vpack.c.b16 %v606, %v605
  %v689 = vpack.c.b16 %v608, %v607
  %v690 = vpack.c.b16 %v610, %v609
  %v691 = vpack.c.b16 %v612, %v611
  %v692 = vpack.c.b16 %v614, %v613
  %v693 = vpack.c.b16 %v616, %v615
  %v694 = vpack.c.b16 %v618, %v617
  %v695 = vpack.c.b16 %v620, %v619
  %v696 = vpack.c.b16 %v622, %v621
  %v697 = vpack.c.b16 %v624, %v623
  %v698 = vpack.c.b16 %v626, %v625
  %v699 = vpack.c.b16 %v628, %v627
  %v700 = vpack.c.b16 %v630, %v629
  %v701 = vpack.c.b16 %v632, %v631
  %v702 = vpack.c.b16 %v634, %v633
  %v703 = vpack.c.b16 %v636, %v635
  %v704 = vpack.c.b16 %v638, %v637
  %v705 = vpack.c.b16 %v640, %v639
  %v706 = vpack.c.b16 %v642, %v641
  %771 = vmatpush.bf16.msra.mxu0 %v650
  %772 = vmatpush.bf16.msra.mxu0 %v649
  %773 = vmatpush.bf16.msra.mxu0 %v648
  %774 = vmatpush.bf16.msra.mxu0 %v647
  %775 = vmatpush.bf16.msra.mxu0 %v646
  %776 = vmatpush.bf16.msra.mxu0 %v645
  %777 = vmatpush.bf16.msra.mxu0 %v644
  %778 = vmatpush.bf16.msra.mxu0 %v643
  %779 = vmatmul.bf16.gmra.mxu0 %v307
  %v780 = vpop.f32.mrf.mxu0
  %v781 = vadd.f32 %v198, %v780
  %v782 = vpop.f32.mrf.mxu0
  %v783 = vadd.f32 %v198, %v782
  %784 = vmatmul.bf16.gmra.mxu0 %v315
  %v785 = vpop.f32.mrf.mxu0
  %v786 = vadd.f32 %v198, %v785
  %v787 = vpop.f32.mrf.mxu0
  %v788 = vadd.f32 %v198, %v787
  %789 = vmatmul.bf16.gmra.mxu0 %v323
  %v790 = vpop.f32.mrf.mxu0
  %v791 = vadd.f32 %v198, %v790
  %v792 = vpop.f32.mrf.mxu0
  %v793 = vadd.f32 %v198, %v792
  %794 = vmatmul.bf16.gmra.mxu0 %v331
  %v795 = vpop.f32.mrf.mxu0
  %v796 = vadd.f32 %v198, %v795
  %v797 = vpop.f32.mrf.mxu0
  %v798 = vadd.f32 %v198, %v797
  %799 = vmatmul.bf16.gmra.mxu0 %v339
  %v800 = vpop.f32.mrf.mxu0
  %v801 = vadd.f32 %v198, %v800
  %v802 = vpop.f32.mrf.mxu0
  %803 = vdwg.mxu0
  %804 = vmatpush.bf16.msra.mxu0 %v658
  %805 = vmatpush.bf16.msra.mxu0 %v657
  %806 = vmatpush.bf16.msra.mxu0 %v656
  %807 = vmatpush.bf16.msra.mxu0 %v655
  %808 = vmatpush.bf16.msra.mxu0 %v654
  %809 = vmatpush.bf16.msra.mxu0 %v653
  %810 = vmatpush.bf16.msra.mxu0 %v652
  %811 = vmatpush.bf16.msra.mxu0 %v651
  %812 = vmatmul.bf16.gmra.mxu0 %v308
  %v813 = vpop.f32.mrf.mxu0
  %v814 = vadd.f32 %v781, %v813
  %v815 = vpop.f32.mrf.mxu0
  %v816 = vadd.f32 %v783, %v815
  %817 = vmatmul.bf16.gmra.mxu0 %v316
  %v818 = vpop.f32.mrf.mxu0
  %v819 = vadd.f32 %v786, %v818
  %v820 = vpop.f32.mrf.mxu0
  %v821 = vadd.f32 %v788, %v820
  %822 = vmatmul.bf16.gmra.mxu0 %v324
  %v823 = vpop.f32.mrf.mxu0
  %v824 = vadd.f32 %v791, %v823
  %v825 = vpop.f32.mrf.mxu0
  %v826 = vadd.f32 %v793, %v825
  %827 = vmatmul.bf16.gmra.mxu0 %v332
  %v828 = vpop.f32.mrf.mxu0
  %v829 = vadd.f32 %v796, %v828
  %v830 = vpop.f32.mrf.mxu0
  %v831 = vadd.f32 %v798, %v830
  %832 = vmatmul.bf16.gmra.mxu0 %v340
  %v833 = vpop.f32.mrf.mxu0
  %v834 = vadd.f32 %v801, %v833
  %v835 = vpop.f32.mrf.mxu0
  %836 = vdwg.mxu0
  %837 = vmatpush.bf16.msra.mxu0 %v666
  %838 = vmatpush.bf16.msra.mxu0 %v665
  %839 = vmatpush.bf16.msra.mxu0 %v664
  %840 = vmatpush.bf16.msra.mxu0 %v663
  %841 = vmatpush.bf16.msra.mxu0 %v662
  %842 = vmatpush.bf16.msra.mxu0 %v661
  %843 = vmatpush.bf16.msra.mxu0 %v660
  %844 = vmatpush.bf16.msra.mxu0 %v659
  %845 = vmatmul.bf16.gmra.mxu0 %v309
  %v846 = vpop.f32.mrf.mxu0
  %v847 = vadd.f32 %v814, %v846
  %v848 = vpop.f32.mrf.mxu0
  %v849 = vadd.f32 %v816, %v848
  %850 = vmatmul.bf16.gmra.mxu0 %v317
  %v851 = vpop.f32.mrf.mxu0
  %v852 = vadd.f32 %v819, %v851
  %v853 = vpop.f32.mrf.mxu0
  %v854 = vadd.f32 %v821, %v853
  %855 = vmatmul.bf16.gmra.mxu0 %v325
  %v856 = vpop.f32.mrf.mxu0
  %v857 = vadd.f32 %v824, %v856
  %v858 = vpop.f32.mrf.mxu0
  %v859 = vadd.f32 %v826, %v858
  %860 = vmatmul.bf16.gmra.mxu0 %v333
  %v861 = vpop.f32.mrf.mxu0
  %v862 = vadd.f32 %v829, %v861
  %v863 = vpop.f32.mrf.mxu0
  %v864 = vadd.f32 %v831, %v863
  %865 = vmatmul.bf16.gmra.mxu0 %v341
  %v866 = vpop.f32.mrf.mxu0
  %v867 = vadd.f32 %v834, %v866
  %v868 = vpop.f32.mrf.mxu0
  %869 = vdwg.mxu0
  %870 = vmatpush.bf16.msra.mxu0 %v674
  %871 = vmatpush.bf16.msra.mxu0 %v673
  %872 = vmatpush.bf16.msra.mxu0 %v672
  %873 = vmatpush.bf16.msra.mxu0 %v671
  %874 = vmatpush.bf16.msra.mxu0 %v670
  %875 = vmatpush.bf16.msra.mxu0 %v669
  %876 = vmatpush.bf16.msra.mxu0 %v668
  %877 = vmatpush.bf16.msra.mxu0 %v667
  %878 = vmatmul.bf16.gmra.mxu0 %v310
  %v879 = vpop.f32.mrf.mxu0
  %v880 = vadd.f32 %v847, %v879
  %v881 = vpop.f32.mrf.mxu0
  %v882 = vadd.f32 %v849, %v881
  %883 = vmatmul.bf16.gmra.mxu0 %v318
  %v884 = vpop.f32.mrf.mxu0
  %v885 = vadd.f32 %v852, %v884
  %v886 = vpop.f32.mrf.mxu0
  %v887 = vadd.f32 %v854, %v886
  %888 = vmatmul.bf16.gmra.mxu0 %v326
  %v889 = vpop.f32.mrf.mxu0
  %v890 = vadd.f32 %v857, %v889
  %v891 = vpop.f32.mrf.mxu0
  %v892 = vadd.f32 %v859, %v891
  %893 = vmatmul.bf16.gmra.mxu0 %v334
  %v894 = vpop.f32.mrf.mxu0
  %v895 = vadd.f32 %v862, %v894
  %v896 = vpop.f32.mrf.mxu0
  %v897 = vadd.f32 %v864, %v896
  %898 = vmatmul.bf16.gmra.mxu0 %v342
  %v899 = vpop.f32.mrf.mxu0
  %v900 = vadd.f32 %v867, %v899
  %v901 = vpop.f32.mrf.mxu0
  %902 = vdwg.mxu0
  %903 = vmatpush.bf16.msra.mxu0 %v682
  %904 = vmatpush.bf16.msra.mxu0 %v681
  %905 = vmatpush.bf16.msra.mxu0 %v680
  %906 = vmatpush.bf16.msra.mxu0 %v679
  %907 = vmatpush.bf16.msra.mxu0 %v678
  %908 = vmatpush.bf16.msra.mxu0 %v677
  %909 = vmatpush.bf16.msra.mxu0 %v676
  %910 = vmatpush.bf16.msra.mxu0 %v675
  %911 = vmatmul.bf16.gmra.mxu0 %v311
  %v912 = vpop.f32.mrf.mxu0
  %v913 = vadd.f32 %v880, %v912
  %v914 = vpop.f32.mrf.mxu0
  %v915 = vadd.f32 %v882, %v914
  %916 = vmatmul.bf16.gmra.mxu0 %v319
  %v917 = vpop.f32.mrf.mxu0
  %v918 = vadd.f32 %v885, %v917
  %v919 = vpop.f32.mrf.mxu0
  %v920 = vadd.f32 %v887, %v919
  %921 = vmatmul.bf16.gmra.mxu0 %v327
  %v922 = vpop.f32.mrf.mxu0
  %v923 = vadd.f32 %v890, %v922
  %v924 = vpop.f32.mrf.mxu0
  %v925 = vadd.f32 %v892, %v924
  %926 = vmatmul.bf16.gmra.mxu0 %v335
  %v927 = vpop.f32.mrf.mxu0
  %v928 = vadd.f32 %v895, %v927
  %v929 = vpop.f32.mrf.mxu0
  %v930 = vadd.f32 %v897, %v929
  %931 = vmatmul.bf16.gmra.mxu0 %v343
  %v932 = vpop.f32.mrf.mxu0
  %v933 = vadd.f32 %v900, %v932
  %v934 = vpop.f32.mrf.mxu0
  %935 = vdwg.mxu0
  %936 = vmatpush.bf16.msra.mxu0 %v690
  %937 = vmatpush.bf16.msra.mxu0 %v689
  %938 = vmatpush.bf16.msra.mxu0 %v688
  %939 = vmatpush.bf16.msra.mxu0 %v687
  %940 = vmatpush.bf16.msra.mxu0 %v686
  %941 = vmatpush.bf16.msra.mxu0 %v685
  %942 = vmatpush.bf16.msra.mxu0 %v684
  %943 = vmatpush.bf16.msra.mxu0 %v683
  %944 = vmatmul.bf16.gmra.mxu0 %v312
  %v945 = vpop.f32.mrf.mxu0
  %v946 = vadd.f32 %v913, %v945
  %v947 = vpop.f32.mrf.mxu0
  %v948 = vadd.f32 %v915, %v947
  %949 = vmatmul.bf16.gmra.mxu0 %v320
  %v950 = vpop.f32.mrf.mxu0
  %v951 = vadd.f32 %v918, %v950
  %v952 = vpop.f32.mrf.mxu0
  %v953 = vadd.f32 %v920, %v952
  %954 = vmatmul.bf16.gmra.mxu0 %v328
  %v955 = vpop.f32.mrf.mxu0
  %v956 = vadd.f32 %v923, %v955
  %v957 = vpop.f32.mrf.mxu0
  %v958 = vadd.f32 %v925, %v957
  %959 = vmatmul.bf16.gmra.mxu0 %v336
  %v960 = vpop.f32.mrf.mxu0
  %v961 = vadd.f32 %v928, %v960
  %v962 = vpop.f32.mrf.mxu0
  %v963 = vadd.f32 %v930, %v962
  %964 = vmatmul.bf16.gmra.mxu0 %v344
  %v965 = vpop.f32.mrf.mxu0
  %v966 = vadd.f32 %v933, %v965
  %v967 = vpop.f32.mrf.mxu0
  %968 = vdwg.mxu0
  %969 = vmatpush.bf16.msra.mxu0 %v698
  %970 = vmatpush.bf16.msra.mxu0 %v697
  %971 = vmatpush.bf16.msra.mxu0 %v696
  %972 = vmatpush.bf16.msra.mxu0 %v695
  %973 = vmatpush.bf16.msra.mxu0 %v694
  %974 = vmatpush.bf16.msra.mxu0 %v693
  %975 = vmatpush.bf16.msra.mxu0 %v692
  %976 = vmatpush.bf16.msra.mxu0 %v691
  %977 = vmatmul.bf16.gmra.mxu0 %v313
  %v978 = vpop.f32.mrf.mxu0
  %v979 = vadd.f32 %v946, %v978
  %v980 = vpop.f32.mrf.mxu0
  %v981 = vadd.f32 %v948, %v980
  %982 = vmatmul.bf16.gmra.mxu0 %v321
  %v983 = vpop.f32.mrf.mxu0
  %v984 = vadd.f32 %v951, %v983
  %v985 = vpop.f32.mrf.mxu0
  %v986 = vadd.f32 %v953, %v985
  %987 = vmatmul.bf16.gmra.mxu0 %v329
  %v988 = vpop.f32.mrf.mxu0
  %v989 = vadd.f32 %v956, %v988
  %v990 = vpop.f32.mrf.mxu0
  %v991 = vadd.f32 %v958, %v990
  %992 = vmatmul.bf16.gmra.mxu0 %v337
  %v993 = vpop.f32.mrf.mxu0
  %v994 = vadd.f32 %v961, %v993
  %v995 = vpop.f32.mrf.mxu0
  %v996 = vadd.f32 %v963, %v995
  %997 = vmatmul.bf16.gmra.mxu0 %v345
  %v998 = vpop.f32.mrf.mxu0
  %v999 = vadd.f32 %v966, %v998
  %v1000 = vpop.f32.mrf.mxu0
  %1001 = vdwg.mxu0
  %1002 = vmatpush.bf16.msra.mxu0 %v706
  %1003 = vmatpush.bf16.msra.mxu0 %v705
  %1004 = vmatpush.bf16.msra.mxu0 %v704
  %1005 = vmatpush.bf16.msra.mxu0 %v703
  %1006 = vmatpush.bf16.msra.mxu0 %v702
  %1007 = vmatpush.bf16.msra.mxu0 %v701
  %1008 = vmatpush.bf16.msra.mxu0 %v700
  %1009 = vmatpush.bf16.msra.mxu0 %v699
  %1010 = vmatmul.bf16.gmra.mxu0 %v314
  %v1011 = vpop.f32.mrf.mxu0
  %v1012 = vadd.f32 %v979, %v1011
  %v1013 = vpop.f32.mrf.mxu0
  %v1014 = vadd.f32 %v981, %v1013
  %1015 = vmatmul.bf16.gmra.mxu0 %v322
  %v1016 = vpop.f32.mrf.mxu0
  %v1017 = vadd.f32 %v984, %v1016
  %v1018 = vpop.f32.mrf.mxu0
  %v1019 = vadd.f32 %v986, %v1018
  %1020 = vmatmul.bf16.gmra.mxu0 %v330
  %v1021 = vpop.f32.mrf.mxu0
  %v1022 = vadd.f32 %v989, %v1021
  %v1023 = vpop.f32.mrf.mxu0
  %v1024 = vadd.f32 %v991, %v1023
  %1025 = vmatmul.bf16.gmra.mxu0 %v338
  %v1026 = vpop.f32.mrf.mxu0
  %v1027 = vadd.f32 %v994, %v1026
  %v1028 = vpop.f32.mrf.mxu0
  %v1029 = vadd.f32 %v996, %v1028
  %1030 = vmatmul.bf16.gmra.mxu0 %v346
  %v1031 = vpop.f32.mrf.mxu0
  %v1032 = vadd.f32 %v999, %v1031
  %v1033 = vpop.f32.mrf.mxu0
  %1034 = vdwg.mxu0
  %v1035 = vsel %vm188, 1, 0
  %v1036 = vsel %vm189, 1, 0
  %v1037 = vsel %vm190, 1, 0
  %v1038 = vsel %vm191, 1, 0
  %v1039 = vsel %vm192, 1, 0
  %v1040 = vsel %vm193, 1, 0
  %v1041 = vsel %vm194, 1, 0
  %v1042 = vsel %vm195, 1, 0
  %v1043 = vsel %vm196, 1, 0
  %vm1044 = vcmp.eq.s32.totalorder %v1035, 1
  %vm1045 = vcmp.eq.s32.totalorder %v1036, 1
  %vm1046 = vcmp.eq.s32.totalorder %v1037, 1
  %vm1047 = vcmp.eq.s32.totalorder %v1038, 1
  %vm1048 = vcmp.eq.s32.totalorder %v1039, 1
  %vm1049 = vcmp.eq.s32.totalorder %v1040, 1
  %vm1050 = vcmp.eq.s32.totalorder %v1041, 1
  %vm1051 = vcmp.eq.s32.totalorder %v1042, 1
  %vm1052 = vcmp.eq.s32.totalorder %v1043, 1
  %v1053 = vsel %vm1044, %v1012, 0.0
  %v1054 = vsel %vm1045, %v1014, 0.0
  %v1055 = vsel %vm1046, %v1017, 0.0
  %v1056 = vsel %vm1047, %v1019, 0.0
  %v1057 = vsel %vm1048, %v1022, 0.0
  %v1058 = vsel %vm1049, %v1024, 0.0
  %v1059 = vsel %vm1050, %v1027, 0.0
  %v1060 = vsel %vm1051, %v1029, 0.0
  %v1061 = vsel %vm1052, %v1032, 0.0
  %v1062 = vadd.f32 %v1053, %v1054
  %v1063 = vadd.f32 %v1062, %v1055
  %v1064 = vadd.f32 %v1063, %v1056
  %v1065 = vadd.f32 %v1064, %v1057
  %v1066 = vadd.f32 %v1065, %v1058
  %v1067 = vadd.f32 %v1066, %v1059
  %v1068 = vadd.f32 %v1067, %v1060
  %v1069 = vadd.f32 %v1068, %v1061
  %v1070 = vrot.slane %v1069, 4
  %v1071 = vadd.f32 %v1069, %v1070
  %v1072 = vrot.slane %v1071, 2
  %v1073 = vadd.f32 %v1071, %v1072
  %v1074 = vrot.slane %v1073, 1
  %v1075 = vadd.f32 %v1073, %v1074
  %v1076 = vmul.f32 %v1075, 0.013888889
  %v1077 = vsub.f32 %v1012, %v1076
  %v1078 = vsub.f32 %v1014, %v1076
  %v1079 = vsub.f32 %v1017, %v1076
  %v1080 = vsub.f32 %v1019, %v1076
  %v1081 = vsub.f32 %v1022, %v1076
  %v1082 = vsub.f32 %v1024, %v1076
  %v1083 = vsub.f32 %v1027, %v1076
  %v1084 = vsub.f32 %v1029, %v1076
  %v1085 = vsub.f32 %v1032, %v1076
  %v1086 = vsel %vm1044, %v1077, 0.0
  %v1087 = vsel %vm1045, %v1078, 0.0
  %v1088 = vsel %vm1046, %v1079, 0.0
  %v1089 = vsel %vm1047, %v1080, 0.0
  %v1090 = vsel %vm1048, %v1081, 0.0
  %v1091 = vsel %vm1049, %v1082, 0.0
  %v1092 = vsel %vm1050, %v1083, 0.0
  %v1093 = vsel %vm1051, %v1084, 0.0
  %v1094 = vsel %vm1052, %v1085, 0.0
  %v1095 = vmul.f32 %v1086, %v1086
  %v1096 = vmul.f32 %v1087, %v1087
  %v1097 = vmul.f32 %v1088, %v1088
  %v1098 = vmul.f32 %v1089, %v1089
  %v1099 = vmul.f32 %v1090, %v1090
  %v1100 = vmul.f32 %v1091, %v1091
  %v1101 = vmul.f32 %v1092, %v1092
  %v1102 = vmul.f32 %v1093, %v1093
  %v1103 = vmul.f32 %v1094, %v1094
  %v1104 = vadd.f32 %v1095, %v1096
  %v1105 = vadd.f32 %v1104, %v1097
  %v1106 = vadd.f32 %v1105, %v1098
  %v1107 = vadd.f32 %v1106, %v1099
  %v1108 = vadd.f32 %v1107, %v1100
  %v1109 = vadd.f32 %v1108, %v1101
  %v1110 = vadd.f32 %v1109, %v1102
  %v1111 = vadd.f32 %v1110, %v1103
  %v1112 = vrot.slane %v1111, 4
  %v1113 = vadd.f32 %v1111, %v1112
  %v1114 = vrot.slane %v1113, 2
  %v1115 = vadd.f32 %v1113, %v1114
  %v1116 = vrot.slane %v1115, 1
  %v1117 = vadd.f32 %v1115, %v1116
  %v1118 = vmul.f32 %v1117, 0.013888889
  %v1119 = vadd.f32 %v1118, 1e-05
  %v1120 = vrsqrt.pop %v1119
  %v1121 = vmul.f32 %v1120, %v1119
  %v1122 = vmul.f32 %v1121, %v1120
  %v1123 = vmul.f32 0.5, %v1122
  %v1124 = vsub.f32 1.5, %v1123
  %v1125 = vmul.f32 %v1120, %v1124
  %vm1126 = vweird.f32 %v1119
  %vm1127 = vweird.f32 %v1120
  %vm1128 = vmor %vm1126, %vm1127
  %v1129 = vsel %vm1128, %v1120, %v1125
  %v1130 = vmul.f32 %v1077, %v1129
  %v1131 = vmul.f32 %v1078, %v1129
  %v1132 = vmul.f32 %v1079, %v1129
  %v1133 = vmul.f32 %v1080, %v1129
  %v1134 = vmul.f32 %v1081, %v1129
  %v1135 = vmul.f32 %v1082, %v1129
  %v1136 = vmul.f32 %v1083, %v1129
  %v1137 = vmul.f32 %v1084, %v1129
  %v1138 = vmul.f32 %v1085, %v1129
  %v1139 = vperm.slane %v197, 1
  %v1140 = vmul.f32 %v1130, %v1139
  %v1141 = vmul.f32 %v1131, %v1139
  %v1142 = vmul.f32 %v1132, %v1139
  %v1143 = vmul.f32 %v1133, %v1139
  %v1144 = vmul.f32 %v1134, %v1139
  %v1145 = vmul.f32 %v1135, %v1139
  %v1146 = vmul.f32 %v1136, %v1139
  %v1147 = vmul.f32 %v1137, %v1139
  %v1148 = vmul.f32 %v1138, %v1139
  %v1149 = vperm.slane %v197, 2
  %v1150 = vadd.f32 %v1140, %v1149
  %v1151 = vadd.f32 %v1141, %v1149
  %v1152 = vadd.f32 %v1142, %v1149
  %v1153 = vadd.f32 %v1143, %v1149
  %v1154 = vadd.f32 %v1144, %v1149
  %v1155 = vadd.f32 %v1145, %v1149
  %v1156 = vadd.f32 %v1146, %v1149
  %v1157 = vadd.f32 %v1147, %v1149
  %v1158 = vadd.f32 %v1148, %v1149
  %vm1159 = vcmp.gt.f32.partialorder %v1150, 0.0
  %vm1160 = vcmp.gt.f32.partialorder %v1151, 0.0
  %vm1161 = vcmp.gt.f32.partialorder %v1152, 0.0
  %vm1162 = vcmp.gt.f32.partialorder %v1153, 0.0
  %vm1163 = vcmp.gt.f32.partialorder %v1154, 0.0
  %vm1164 = vcmp.gt.f32.partialorder %v1155, 0.0
  %vm1165 = vcmp.gt.f32.partialorder %v1156, 0.0
  %vm1166 = vcmp.gt.f32.partialorder %v1157, 0.0
  %vm1167 = vcmp.gt.f32.partialorder %v1158, 0.0
  %v1168 = vmul.f32 %v1150, 0.2
  %v1169 = vmul.f32 %v1151, 0.2
  %v1170 = vmul.f32 %v1152, 0.2
  %v1171 = vmul.f32 %v1153, 0.2
  %v1172 = vmul.f32 %v1154, 0.2
  %v1173 = vmul.f32 %v1155, 0.2
  %v1174 = vmul.f32 %v1156, 0.2
  %v1175 = vmul.f32 %v1157, 0.2
  %v1176 = vmul.f32 %v1158, 0.2
  %v1177 = vsel %vm1159, %v1150, %v1168
  %v1178 = vsel %vm1160, %v1151, %v1169
  %v1179 = vsel %vm1161, %v1152, %v1170
  %v1180 = vsel %vm1162, %v1153, %v1171
  %v1181 = vsel %vm1163, %v1154, %v1172
  %v1182 = vsel %vm1164, %v1155, %v1173
  %v1183 = vsel %vm1165, %v1156, %v1174
  %v1184 = vsel %vm1166, %v1157, %v1175
  %v1185 = vsel %vm1167, %v1158, %v1176
  %v1186 = vsel %vm1044, %v1177, 0.0
  %v1187 = vsel %vm1045, %v1178, 0.0
  %v1188 = vsel %vm1046, %v1179, 0.0
  %v1189 = vsel %vm1047, %v1180, 0.0
  %v1190 = vsel %vm1048, %v1181, 0.0
  %v1191 = vsel %vm1049, %v1182, 0.0
  %v1192 = vsel %vm1050, %v1183, 0.0
  %v1193 = vsel %vm1051, %v1184, 0.0
  %v1194 = vsel %vm1052, %v1185, 0.0
  %1195 = vst [vmem:[%s3] sm:$0xff] %v1186
  %1196 = vst [vmem:[%s3 + $0x8] sm:$0xff] %v1187
  %1197 = vst [vmem:[%s3 + $0x10] sm:$0xff] %v1188
  %1198 = vst [vmem:[%s3 + $0x18] sm:$0xff] %v1189
  %1199 = vst [vmem:[%s3 + $0x20] sm:$0xff] %v1190
  %1200 = vst [vmem:[%s3 + $0x28] sm:$0xff] %v1191
  %1201 = vst [vmem:[%s3 + $0x30] sm:$0xff] %v1192
  %1202 = vst [vmem:[%s3 + $0x38] sm:$0xff] %v1193
  %1203 = vst [vmem:[%s3 + $0x40] sm:$0xff] %v1194
  // Predicated region
  $region14: #{discriminator_forward.6} parent=0 // pred_check
    _
  $region15: #{discriminator_forward.6} parent=0 // pred_check_branch
    %1205 = sbr.rel (0) target = $region17
  $region16: #{discriminator_forward.6} parent=0 // pred_region
    _
  $region17: #{discriminator_forward.6} parent=0 // pred_fallthru
    _
  // Predicated region
  $region18: #{discriminator_forward.6} parent=0 // pred_check
    _
  $region19: #{discriminator_forward.6} parent=0 // pred_check_branch
    %1207 = sbr.rel (0) target = $region21
  $region20: #{discriminator_forward.6} parent=0 // pred_region
    _
  $region21: #{discriminator_forward.6} parent=0 // pred_fallthru
    _

// kernel: discriminator_forward.8
$region0: #{discriminator_forward.8}
  #allocation0 [shape = 'u32[]', space=smem, size = 0x4, offset = 0x4, fixed_abs, tag = 'smem constant byte address 0x4 - core index']
  #allocation1 [shape = 'u32[72,128]{1,0:T(1,128)}', space=vmem, size = 0x9000, scoped, tag = 'internal scratch']
  %s0 = inlined_call_operand.vmem [shape: bf16[24,896], index: 0, kind: input, shape index: {}]
  %s1 = inlined_call_operand.vmem [shape: bf16[896,128], index: 1, kind: input, shape index: {}]
  %s2 = inlined_call_operand.vmem [shape: f32[8,128], index: 2, kind: input, shape index: {}]
  %s3 = inlined_call_operand.vmem [shape: f32[24,128], index: 3, kind: output, shape index: {}]
  %s4 = sld [smem:[#allocation0]]
  $region22: #{discriminator_forward.8} parent=0
    _
  %s6 = ssub.s32 1, %s4
  %s7 = scalar_select 0, %s6, %s4
  // Predicated region
  $region2: #{discriminator_forward.8} parent=0 // pred_check
    _
  $region3: #{discriminator_forward.8} parent=0 // pred_check_branch
    %9 = sbr.rel (0) target = $region5
  $region4: #{discriminator_forward.8} parent=0 // pred_region
    _
  $region5: #{discriminator_forward.8} parent=0 // pred_fallthru
    _
  // Predicated region
  $region6: #{discriminator_forward.8} parent=0 // pred_check
    _
  $region7: #{discriminator_forward.8} parent=0 // pred_check_branch
    %11 = sbr.rel (0) target = $region9
  $region8: #{discriminator_forward.8} parent=0 // pred_region
    _
  $region9: #{discriminator_forward.8} parent=0 // pred_fallthru
    _
  // Predicated region
  $region10: #{discriminator_forward.8} parent=0 // pred_check
    _
  $region11: #{discriminator_forward.8} parent=0 // pred_check_branch
    %13 = sbr.rel (0) target = $region13
  $region12: #{discriminator_forward.8} parent=0 // pred_region
    _
  $region13: #{discriminator_forward.8} parent=0 // pred_fallthru
    _
  %v14 = vld [vmem:[%s0] sm:$0xff]
  %v15 = vld [vmem:[%s0 + $0x8] sm:$0xff]
  %v16 = vld [vmem:[%s0 + $0x10] sm:$0xff]
  %v17 = vld [vmem:[%s0 + $0x18] sm:$0xf]
  %v18 = vld [vmem:[%s0 + $0x1c] sm:$0xff]
  %v19 = vld [vmem:[%s0 + $0x24] sm:$0xff]
  %v20 = vld [vmem:[%s0 + $0x2c] sm:$0xff]
  %v21 = vld [vmem:[%s0 + $0x34] sm:$0xf]
  %v22 = vld [vmem:[%s0 + $0x38] sm:$0xff]
  %v23 = vld [vmem:[%s0 + $0x40] sm:$0xff]
  %v24 = vld [vmem:[%s0 + $0x48] sm:$0xff]
  %v25 = vld [vmem:[%s0 + $0x50] sm:$0xf]
  %v26 = vld [vmem:[%s1] sm:$0xf]
  %v27 = vld [vmem:[%s1 + $0x4] sm:$0xf]
  %v28 = vld [vmem:[%s1 + $0x8] sm:$0xf]
  %v29 = vld [vmem:[%s1 + $0xc] sm:$0xf]
  %v30 = vld [vmem:[%s1 + $0x10] sm:$0xf]
  %v31 = vld [vmem:[%s1 + $0x14] sm:$0xf]
  %v32 = vld [vmem:[%s1 + $0x18] sm:$0xf]
  %v33 = vld [vmem:[%s1 + $0x1c] sm:$0xf]
  %v34 = vld [vmem:[%s1 + $0x20] sm:$0xf]
  %v35 = vld [vmem:[%s1 + $0x24] sm:$0xf]
  %v36 = vld [vmem:[%s1 + $0x28] sm:$0xf]
  %v37 = vld [vmem:[%s1 + $0x2c] sm:$0xf]
  %v38 = vld [vmem:[%s1 + $0x30] sm:$0xf]
  %v39 = vld [vmem:[%s1 + $0x34] sm:$0xf]
  %v40 = vld [vmem:[%s1 + $0x38] sm:$0xf]
  %v41 = vld [vmem:[%s1 + $0x3c] sm:$0xf]
  %v42 = vld [vmem:[%s1 + $0x40] sm:$0xf]
  %v43 = vld [vmem:[%s1 + $0x44] sm:$0xf]
  %v44 = vld [vmem:[%s1 + $0x48] sm:$0xf]
  %v45 = vld [vmem:[%s1 + $0x4c] sm:$0xf]
  %v46 = vld [vmem:[%s1 + $0x50] sm:$0xf]
  %v47 = vld [vmem:[%s1 + $0x54] sm:$0xf]
  %v48 = vld [vmem:[%s1 + $0x58] sm:$0xf]
  %v49 = vld [vmem:[%s1 + $0x5c] sm:$0xf]
  %v50 = vld [vmem:[%s1 + $0x60] sm:$0xf]
  %v51 = vld [vmem:[%s1 + $0x64] sm:$0xf]
  %v52 = vld [vmem:[%s1 + $0x68] sm:$0xf]
  %v53 = vld [vmem:[%s1 + $0x6c] sm:$0xf]
  %v54 = vld [vmem:[%s1 + $0x70] sm:$0xf]
  %v55 = vld [vmem:[%s1 + $0x74] sm:$0xf]
  %v56 = vld [vmem:[%s1 + $0x78] sm:$0xf]
  %v57 = vld [vmem:[%s1 + $0x7c] sm:$0xf]
  %v58 = vld [vmem:[%s1 + $0x80] sm:$0xf]
  %v59 = vld [vmem:[%s1 + $0x84] sm:$0xf]
  %v60 = vld [vmem:[%s1 + $0x88] sm:$0xf]
  %v61 = vld [vmem:[%s1 + $0x8c] sm:$0xf]
  %v62 = vld [vmem:[%s1 + $0x90] sm:$0xf]
  %v63 = vld [vmem:[%s1 + $0x94] sm:$0xf]
  %v64 = vld [vmem:[%s1 + $0x98] sm:$0xf]
  %v65 = vld [vmem:[%s1 + $0x9c] sm:$0xf]
  %v66 = vld [vmem:[%s1 + $0xa0] sm:$0xf]
  %v67 = vld [vmem:[%s1 + $0xa4] sm:$0xf]
  %v68 = vld [vmem:[%s1 + $0xa8] sm:$0xf]
  %v69 = vld [vmem:[%s1 + $0xac] sm:$0xf]
  %v70 = vld [vmem:[%s1 + $0xb0] sm:$0xf]
  %v71 = vld [vmem:[%s1 + $0xb4] sm:$0xf]
  %v72 = vld [vmem:[%s1 + $0xb8] sm:$0xf]
  %v73 = vld [vmem:[%s1 + $0xbc] sm:$0xf]
  %v74 = vld [vmem:[%s1 + $0xc0] sm:$0xf]
  %v75 = vld [vmem:[%s1 + $0xc4] sm:$0xf]
  %v76 = vld [vmem:[%s1 + $0xc8] sm:$0xf]
  %v77 = vld [vmem:[%s1 + $0xcc] sm:$0xf]
  %v78 = vld [vmem:[%s1 + $0xd0] sm:$0xf]
  %v79 = vld [vmem:[%s1 + $0xd4] sm:$0xf]
  %v80 = vld [vmem:[%s1 + $0xd8] sm:$0xf]
  %v81 = vld [vmem:[%s1 + $0xdc] sm:$0xf]
  %v82 = vld [vmem:[%s1 + $0xe0] sm:$0xf]
  %v83 = vld [vmem:[%s1 + $0xe4] sm:$0xf]
  %v84 = vld [vmem:[%s1 + $0xe8] sm:$0xf]
  %v85 = vld [vmem:[%s1 + $0xec] sm:$0xf]
  %v86 = vld [vmem:[%s1 + $0xf0] sm:$0xf]
  %v87 = vld [vmem:[%s1 + $0xf4] sm:$0xf]
  %v88 = vld [vmem:[%s1 + $0xf8] sm:$0xf]
  %v89 = vld [vmem:[%s1 + $0xfc] sm:$0xf]
  %v90 = vld [vmem:[%s1 + $0x100] sm:$0xf]
  %v91 = vld [vmem:[%s1 + $0x104] sm:$0xf]
  %v92 = vld [vmem:[%s1 + $0x108] sm:$0xf]
  %v93 = vld [vmem:[%s1 + $0x10c] sm:$0xf]
  %v94 = vld [vmem:[%s1 + $0x110] sm:$0xf]
  %v95 = vld [vmem:[%s1 + $0x114] sm:$0xf]
  %v96 = vld [vmem:[%s1 + $0x118] sm:$0xf]
  %v97 = vld [vmem:[%s1 + $0x11c] sm:$0xf]
  %v98 = vld [vmem:[%s1 + $0x120] sm:$0xf]
  %v99 = vld [vmem:[%s1 + $0x124] sm:$0xf]
  %v100 = vld [vmem:[%s1 + $0x128] sm:$0xf]
  %v101 = vld [vmem:[%s1 + $0x12c] sm:$0xf]
  %v102 = vld [vmem:[%s1 + $0x130] sm:$0xf]
  %v103 = vld [vmem:[%s1 + $0x134] sm:$0xf]
  %v104 = vld [vmem:[%s1 + $0x138] sm:$0xf]
  %v105 = vld [vmem:[%s1 + $0x13c] sm:$0xf]
  %v106 = vld [vmem:[%s1 + $0x140] sm:$0xf]
  %v107 = vld [vmem:[%s1 + $0x144] sm:$0xf]
  %v108 = vld [vmem:[%s1 + $0x148] sm:$0xf]
  %v109 = vld [vmem:[%s1 + $0x14c] sm:$0xf]
  %v110 = vld [vmem:[%s1 + $0x150] sm:$0xf]
  %v111 = vld [vmem:[%s1 + $0x154] sm:$0xf]
  %v112 = vld [vmem:[%s1 + $0x158] sm:$0xf]
  %v113 = vld [vmem:[%s1 + $0x15c] sm:$0xf]
  %v114 = vld [vmem:[%s1 + $0x160] sm:$0xf]
  %v115 = vld [vmem:[%s1 + $0x164] sm:$0xf]
  %v116 = vld [vmem:[%s1 + $0x168] sm:$0xf]
  %v117 = vld [vmem:[%s1 + $0x16c] sm:$0xf]
  %v118 = vld [vmem:[%s1 + $0x170] sm:$0xf]
  %v119 = vld [vmem:[%s1 + $0x174] sm:$0xf]
  %v120 = vld [vmem:[%s1 + $0x178] sm:$0xf]
  %v121 = vld [vmem:[%s1 + $0x17c] sm:$0xf]
  %v122 = vld [vmem:[%s1 + $0x180] sm:$0xf]
  %v123 = vld [vmem:[%s1 + $0x184] sm:$0xf]
  %v124 = vld [vmem:[%s1 + $0x188] sm:$0xf]
  %v125 = vld [vmem:[%s1 + $0x18c] sm:$0xf]
  %v126 = vld [vmem:[%s1 + $0x190] sm:$0xf]
  %v127 = vld [vmem:[%s1 + $0x194] sm:$0xf]
  %v128 = vld [vmem:[%s1 + $0x198] sm:$0xf]
  %v129 = vld [vmem:[%s1 + $0x19c] sm:$0xf]
  %v130 = vld [vmem:[%s1 + $0x1a0] sm:$0xf]
  %v131 = vld [vmem:[%s1 + $0x1a4] sm:$0xf]
  %v132 = vld [vmem:[%s1 + $0x1a8] sm:$0xf]
  %v133 = vld [vmem:[%s1 + $0x1ac] sm:$0xf]
  %v134 = vld [vmem:[%s1 + $0x1b0] sm:$0xf]
  %v135 = vld [vmem:[%s1 + $0x1b4] sm:$0xf]
  %v136 = vld [vmem:[%s1 + $0x1b8] sm:$0xf]
  %v137 = vld [vmem:[%s1 + $0x1bc] sm:$0xf]
  %v138 = vlaneseq
  %v139 = vshrl.u32 %v138, 7
  %v140 = vadd.s32 %v139, 8
  %v141 = vadd.s32 %v139, 16
  %vm142 = vcmp.lt.s32.totalorder %v139, 18
  %vm143 = vcmp.lt.s32.totalorder %v140, 18
  %vm144 = vcmp.lt.s32.totalorder %v141, 18
  %v145 = vld [vmem:[%s2] sm:$0xff]
  %v146 = vperm.slane %v145, 0
  %v159 = vunpack.c.l.b16 %v14
  %v160 = vunpack.c.h.b16 %v14
  %v161 = vunpack.c.l.b16 %v15
  %v162 = vunpack.c.h.b16 %v15
  %v163 = vunpack.c.l.b16 %v16
  %v164 = vunpack.c.h.b16 %v16
  %v165 = vunpack.c.l.b16 %v17
  %v166 = vunpack.c.l.b16 %v18
  %v167 = vunpack.c.h.b16 %v18
  %v168 = vunpack.c.l.b16 %v19
  %v169 = vunpack.c.h.b16 %v19
  %v170 = vunpack.c.l.b16 %v20
  %v171 = vunpack.c.h.b16 %v20
  %v172 = vunpack.c.l.b16 %v21
  %v173 = vunpack.c.l.b16 %v22
  %v174 = vunpack.c.h.b16 %v22
  %v175 = vunpack.c.l.b16 %v23
  %v176 = vunpack.c.h.b16 %v23
  %v177 = vunpack.c.l.b16 %v24
  %v178 = vunpack.c.h.b16 %v24
  %v179 = vunpack.c.l.b16 %v25
  %v180 = vpack.c.b16 %v166, %v159
  %v181 = vpack.c.b16 %v167, %v160
  %v182 = vpack.c.b16 %v168, %v161
  %v183 = vpack.c.b16 %v169, %v162
  %v184 = vpack.c.b16 %v170, %v163
  %v185 = vpack.c.b16 %v171, %v164
  %v186 = vpack.c.b16 %v172, %v165
  %v187 = vpack.c.b16 %v173, %v173
  %v188 = vpack.c.b16 %v174, %v174
  %v189 = vpack.c.b16 %v175, %v175
  %v190 = vpack.c.b16 %v176, %v176
  %v191 = vpack.c.b16 %v177, %v177
  %v192 = vpack.c.b16 %v178, %v178
  %v193 = vpack.c.b16 %v179, %v179
  %v320 = vunpack.c.l.b16 %v26
  %v321 = vunpack.c.l.b16 %v27
  %v322 = vunpack.c.l.b16 %v28
  %v323 = vunpack.c.l.b16 %v29
  %v324 = vunpack.c.l.b16 %v30
  %v325 = vunpack.c.l.b16 %v31
  %v326 = vunpack.c.l.b16 %v32
  %v327 = vunpack.c.l.b16 %v33
  %v328 = vunpack.c.l.b16 %v34
  %v329 = vunpack.c.l.b16 %v35
  %v330 = vunpack.c.l.b16 %v36
  %v331 = vunpack.c.l.b16 %v37
  %v332 = vunpack.c.l.b16 %v38
  %v333 = vunpack.c.l.b16 %v39
  %v334 = vunpack.c.l.b16 %v40
  %v335 = vunpack.c.l.b16 %v41
  %v336 = vunpack.c.l.b16 %v42
  %v337 = vunpack.c.l.b16 %v43
  %v338 = vunpack.c.l.b16 %v44
  %v339 = vunpack.c.l.b16 %v45
  %v340 = vunpack.c.l.b16 %v46
  %v341 = vunpack.c.l.b16 %v47
  %v342 = vunpack.c.l.b16 %v48
  %v343 = vunpack.c.l.b16 %v49
  %v344 = vunpack.c.l.b16 %v50
  %v345 = vunpack.c.l.b16 %v51
  %v346 = vunpack.c.l.b16 %v52
  %v347 = vunpack.c.l.b16 %v53
  %v348 = vunpack.c.l.b16 %v54
  %v349 = vunpack.c.l.b16 %v55
  %v350 = vunpack.c.l.b16 %v56
  %v351 = vunpack.c.l.b16 %v57
  %v352 = vunpack.c.l.b16 %v58
  %v353 = vunpack.c.l.b16 %v59
  %v354 = vunpack.c.l.b16 %v60
  %v355 = vunpack.c.l.b16 %v61
  %v356 = vunpack.c.l.b16 %v62
  %v357 = vunpack.c.l.b16 %v63
  %v358 = vunpack.c.l.b16 %v64
  %v359 = vunpack.c.l.b16 %v65
  %v360 = vunpack.c.l.b16 %v66
  %v361 = vunpack.c.l.b16 %v67
  %v362 = vunpack.c.l.b16 %v68
  %v363 = vunpack.c.l.b16 %v69
  %v364 = vunpack.c.l.b16 %v70
  %v365 = vunpack.c.l.b16 %v71
  %v366 = vunpack.c.l.b16 %v72
  %v367 = vunpack.c.l.b16 %v73
  %v368 = vunpack.c.l.b16 %v74
  %v369 = vunpack.c.l.b16 %v75
  %v370 = vunpack.c.l.b16 %v76
  %v371 = vunpack.c.l.b16 %v77
  %v372 = vunpack.c.l.b16 %v78
  %v373 = vunpack.c.l.b16 %v79
  %v374 = vunpack.c.l.b16 %v80
  %v375 = vunpack.c.l.b16 %v81
  %v376 = vunpack.c.l.b16 %v82
  %v377 = vunpack.c.l.b16 %v83
  %v378 = vunpack.c.l.b16 %v84
  %v379 = vunpack.c.l.b16 %v85
  %v380 = vunpack.c.l.b16 %v86
  %v381 = vunpack.c.l.b16 %v87
  %v382 = vunpack.c.l.b16 %v88
  %v383 = vunpack.c.l.b16 %v89
  %v384 = vunpack.c.l.b16 %v90
  %v385 = vunpack.c.l.b16 %v91
  %v386 = vunpack.c.l.b16 %v92
  %v387 = vunpack.c.l.b16 %v93
  %v388 = vunpack.c.l.b16 %v94
  %v389 = vunpack.c.l.b16 %v95
  %v390 = vunpack.c.l.b16 %v96
  %v391 = vunpack.c.l.b16 %v97
  %v392 = vunpack.c.l.b16 %v98
  %v393 = vunpack.c.l.b16 %v99
  %v394 = vunpack.c.l.b16 %v100
  %v395 = vunpack.c.l.b16 %v101
  %v396 = vunpack.c.l.b16 %v102
  %v397 = vunpack.c.l.b16 %v103
  %v398 = vunpack.c.l.b16 %v104
  %v399 = vunpack.c.l.b16 %v105
  %v400 = vunpack.c.l.b16 %v106
  %v401 = vunpack.c.l.b16 %v107
  %v402 = vunpack.c.l.b16 %v108
  %v403 = vunpack.c.l.b16 %v109
  %v404 = vunpack.c.l.b16 %v110
  %v405 = vunpack.c.l.b16 %v111
  %v406 = vunpack.c.l.b16 %v112
  %v407 = vunpack.c.l.b16 %v113
  %v408 = vunpack.c.l.b16 %v114
  %v409 = vunpack.c.l.b16 %v115
  %v410 = vunpack.c.l.b16 %v116
  %v411 = vunpack.c.l.b16 %v117
  %v412 = vunpack.c.l.b16 %v118
  %v413 = vunpack.c.l.b16 %v119
  %v414 = vunpack.c.l.b16 %v120
  %v415 = vunpack.c.l.b16 %v121
  %v416 = vunpack.c.l.b16 %v122
  %v417 = vunpack.c.l.b16 %v123
  %v418 = vunpack.c.l.b16 %v124
  %v419 = vunpack.c.l.b16 %v125
  %v420 = vunpack.c.l.b16 %v126
  %v421 = vunpack.c.l.b16 %v127
  %v422 = vunpack.c.l.b16 %v128
  %v423 = vunpack.c.l.b16 %v129
  %v424 = vunpack.c.l.b16 %v130
  %v425 = vunpack.c.l.b16 %v131
  %v426 = vunpack.c.l.b16 %v132
  %v427 = vunpack.c.l.b16 %v133
  %v428 = vunpack.c.l.b16 %v134
  %v429 = vunpack.c.l.b16 %v135
  %v430 = vunpack.c.l.b16 %v136
  %v431 = vunpack.c.l.b16 %v137
  %v432 = vpack.c.b16 %v321, %v320
  %v433 = vpack.c.b16 %v323, %v322
  %v434 = vpack.c.b16 %v325, %v324
  %v435 = vpack.c.b16 %v327, %v326
  %v436 = vpack.c.b16 %v329, %v328
  %v437 = vpack.c.b16 %v331, %v330
  %v438 = vpack.c.b16 %v333, %v332
  %v439 = vpack.c.b16 %v335, %v334
  %v440 = vpack.c.b16 %v337, %v336
  %v441 = vpack.c.b16 %v339, %v338
  %v442 = vpack.c.b16 %v341, %v340
  %v443 = vpack.c.b16 %v343, %v342
  %v444 = vpack.c.b16 %v345, %v344
  %v445 = vpack.c.b16 %v347, %v346
  %v446 = vpack.c.b16 %v349, %v348
  %v447 = vpack.c.b16 %v351, %v350
  %v448 = vpack.c.b16 %v353, %v352
  %v449 = vpack.c.b16 %v355, %v354
  %v450 = vpack.c.b16 %v357, %v356
  %v451 = vpack.c.b16 %v359, %v358
  %v452 = vpack.c.b16 %v361, %v360
  %v453 = vpack.c.b16 %v363, %v362
  %v454 = vpack.c.b16 %v365, %v364
  %v455 = vpack.c.b16 %v367, %v366
  %v456 = vpack.c.b16 %v369, %v368
  %v457 = vpack.c.b16 %v371, %v370
  %v458 = vpack.c.b16 %v373, %v372
  %v459 = vpack.c.b16 %v375, %v374
  %v460 = vpack.c.b16 %v377, %v376
  %v461 = vpack.c.b16 %v379, %v378
  %v462 = vpack.c.b16 %v381, %v380
  %v463 = vpack.c.b16 %v383, %v382
  %v464 = vpack.c.b16 %v385, %v384
  %v465 = vpack.c.b16 %v387, %v386
  %v466 = vpack.c.b16 %v389, %v388
  %v467 = vpack.c.b16 %v391, %v390
  %v468 = vpack.c.b16 %v393, %v392
  %v469 = vpack.c.b16 %v395, %v394
  %v470 = vpack.c.b16 %v397, %v396
  %v471 = vpack.c.b16 %v399, %v398
  %v472 = vpack.c.b16 %v401, %v400
  %v473 = vpack.c.b16 %v403, %v402
  %v474 = vpack.c.b16 %v405, %v404
  %v475 = vpack.c.b16 %v407, %v406
  %v476 = vpack.c.b16 %v409, %v408
  %v477 = vpack.c.b16 %v411, %v410
  %v478 = vpack.c.b16 %v413, %v412
  %v479 = vpack.c.b16 %v415, %v414
  %v480 = vpack.c.b16 %v417, %v416
  %v481 = vpack.c.b16 %v419, %v418
  %v482 = vpack.c.b16 %v421, %v420
  %v483 = vpack.c.b16 %v423, %v422
  %v484 = vpack.c.b16 %v425, %v424
  %v485 = vpack.c.b16 %v427, %v426
  %v486 = vpack.c.b16 %v429, %v428
  %v487 = vpack.c.b16 %v431, %v430
  %544 = vmatpush.bf16.msra.mxu0 %v439
  %545 = vmatpush.bf16.msra.mxu0 %v438
  %546 = vmatpush.bf16.msra.mxu0 %v437
  %547 = vmatpush.bf16.msra.mxu0 %v436
  %548 = vmatpush.bf16.msra.mxu0 %v435
  %549 = vmatpush.bf16.msra.mxu0 %v434
  %550 = vmatpush.bf16.msra.mxu0 %v433
  %551 = vmatpush.bf16.msra.mxu0 %v432
  %552 = vmatmul.bf16.gmra.mxu0 %v180
  %v553 = vpop.f32.mrf.mxu0
  %v554 = vadd.f32 %v146, %v553
  %v555 = vpop.f32.mrf.mxu0
  %v556 = vadd.f32 %v146, %v555
  %557 = vmatmul.bf16.gmra.mxu0 %v187
  %v558 = vpop.f32.mrf.mxu0
  %v559 = vadd.f32 %v146, %v558
  %v560 = vpop.f32.mrf.mxu0
  %561 = vdwg.mxu0
  %562 = vmatpush.bf16.msra.mxu0 %v447
  %563 = vmatpush.bf16.msra.mxu0 %v446
  %564 = vmatpush.bf16.msra.mxu0 %v445
  %565 = vmatpush.bf16.msra.mxu0 %v444
  %566 = vmatpush.bf16.msra.mxu0 %v443
  %567 = vmatpush.bf16.msra.mxu0 %v442
  %568 = vmatpush.bf16.msra.mxu0 %v441
  %569 = vmatpush.bf16.msra.mxu0 %v440
  %570 = vmatmul.bf16.gmra.mxu0 %v181
  %v571 = vpop.f32.mrf.mxu0
  %v572 = vadd.f32 %v554, %v571
  %v573 = vpop.f32.mrf.mxu0
  %v574 = vadd.f32 %v556, %v573
  %575 = vmatmul.bf16.gmra.mxu0 %v188
  %v576 = vpop.f32.mrf.mxu0
  %v577 = vadd.f32 %v559, %v576
  %v578 = vpop.f32.mrf.mxu0
  %579 = vdwg.mxu0
  %580 = vmatpush.bf16.msra.mxu0 %v455
  %581 = vmatpush.bf16.msra.mxu0 %v454
  %582 = vmatpush.bf16.msra.mxu0 %v453
  %583 = vmatpush.bf16.msra.mxu0 %v452
  %584 = vmatpush.bf16.msra.mxu0 %v451
  %585 = vmatpush.bf16.msra.mxu0 %v450
  %586 = vmatpush.bf16.msra.mxu0 %v449
  %587 = vmatpush.bf16.msra.mxu0 %v448
  %588 = vmatmul.bf16.gmra.mxu0 %v182
  %v589 = vpop.f32.mrf.mxu0
  %v590 = vadd.f32 %v572, %v589
  %v591 = vpop.f32.mrf.mxu0
  %v592 = vadd.f32 %v574, %v591
  %593 = vmatmul.bf16.gmra.mxu0 %v189
  %v594 = vpop.f32.mrf.mxu0
  %v595 = vadd.f32 %v577, %v594
  %v596 = vpop.f32.mrf.mxu0
  %597 = vdwg.mxu0
  %598 = vmatpush.bf16.msra.mxu0 %v463
  %599 = vmatpush.bf16.msra.mxu0 %v462
  %600 = vmatpush.bf16.msra.mxu0 %v461
  %601 = vmatpush.bf16.msra.mxu0 %v460
  %602 = vmatpush.bf16.msra.mxu0 %v459
  %603 = vmatpush.bf16.msra.mxu0 %v458
  %604 = vmatpush.bf16.msra.mxu0 %v457
  %605 = vmatpush.bf16.msra.mxu0 %v456
  %606 = vmatmul.bf16.gmra.mxu0 %v183
  %v607 = vpop.f32.mrf.mxu0
  %v608 = vadd.f32 %v590, %v607
  %v609 = vpop.f32.mrf.mxu0
  %v610 = vadd.f32 %v592, %v609
  %611 = vmatmul.bf16.gmra.mxu0 %v190
  %v612 = vpop.f32.mrf.mxu0
  %v613 = vadd.f32 %v595, %v612
  %v614 = vpop.f32.mrf.mxu0
  %615 = vdwg.mxu0
  %616 = vmatpush.bf16.msra.mxu0 %v471
  %617 = vmatpush.bf16.msra.mxu0 %v470
  %618 = vmatpush.bf16.msra.mxu0 %v469
  %619 = vmatpush.bf16.msra.mxu0 %v468
  %620 = vmatpush.bf16.msra.mxu0 %v467
  %621 = vmatpush.bf16.msra.mxu0 %v466
  %622 = vmatpush.bf16.msra.mxu0 %v465
  %623 = vmatpush.bf16.msra.mxu0 %v464
  %624 = vmatmul.bf16.gmra.mxu0 %v184
  %v625 = vpop.f32.mrf.mxu0
  %v626 = vadd.f32 %v608, %v625
  %v627 = vpop.f32.mrf.mxu0
  %v628 = vadd.f32 %v610, %v627
  %629 = vmatmul.bf16.gmra.mxu0 %v191
  %v630 = vpop.f32.mrf.mxu0
  %v631 = vadd.f32 %v613, %v630
  %v632 = vpop.f32.mrf.mxu0
  %633 = vdwg.mxu0
  %634 = vmatpush.bf16.msra.mxu0 %v479
  %635 = vmatpush.bf16.msra.mxu0 %v478
  %636 = vmatpush.bf16.msra.mxu0 %v477
  %637 = vmatpush.bf16.msra.mxu0 %v476
  %638 = vmatpush.bf16.msra.mxu0 %v475
  %639 = vmatpush.bf16.msra.mxu0 %v474
  %640 = vmatpush.bf16.msra.mxu0 %v473
  %641 = vmatpush.bf16.msra.mxu0 %v472
  %642 = vmatmul.bf16.gmra.mxu0 %v185
  %v643 = vpop.f32.mrf.mxu0
  %v644 = vadd.f32 %v626, %v643
  %v645 = vpop.f32.mrf.mxu0
  %v646 = vadd.f32 %v628, %v645
  %647 = vmatmul.bf16.gmra.mxu0 %v192
  %v648 = vpop.f32.mrf.mxu0
  %v649 = vadd.f32 %v631, %v648
  %v650 = vpop.f32.mrf.mxu0
  %651 = vdwg.mxu0
  %652 = vmatpush.bf16.msra.mxu0 %v487
  %653 = vmatpush.bf16.msra.mxu0 %v486
  %654 = vmatpush.bf16.msra.mxu0 %v485
  %655 = vmatpush.bf16.msra.mxu0 %v484
  %656 = vmatpush.bf16.msra.mxu0 %v483
  %657 = vmatpush.bf16.msra.mxu0 %v482
  %658 = vmatpush.bf16.msra.mxu0 %v481
  %659 = vmatpush.bf16.msra.mxu0 %v480
  %660 = vmatmul.bf16.gmra.mxu0 %v186
  %v661 = vpop.f32.mrf.mxu0
  %v662 = vadd.f32 %v644, %v661
  %v663 = vpop.f32.mrf.mxu0
  %v664 = vadd.f32 %v646, %v663
  %665 = vmatmul.bf16.gmra.mxu0 %v193
  %v666 = vpop.f32.mrf.mxu0
  %v667 = vadd.f32 %v649, %v666
  %v668 = vpop.f32.mrf.mxu0
  %669 = vdwg.mxu0
  %v670 = vsel %vm142, 1, 0
  %v671 = vsel %vm143, 1, 0
  %v672 = vsel %vm144, 1, 0
  %vm673 = vcmp.eq.s32.totalorder %v670, 1
  %vm674 = vcmp.eq.s32.totalorder %v671, 1
  %vm675 = vcmp.eq.s32.totalorder %v672, 1
  %v676 = vsel %vm673, %v662, 0.0
  %v677 = vsel %vm674, %v664, 0.0
  %v678 = vsel %vm675, %v667, 0.0
  %v679 = vadd.f32 %v676, %v677
  %v680 = vadd.f32 %v679, %v678
  %v681 = vrot.slane %v680, 4
  %v682 = vadd.f32 %v680, %v681
  %v683 = vrot.slane %v682, 2
  %v684 = vadd.f32 %v682, %v683
  %v685 = vrot.slane %v684, 1
  %v686 = vadd.f32 %v684, %v685
  %v687 = vmul.f32 %v686, 0.055555556
  %v688 = vsub.f32 %v662, %v687
  %v689 = vsub.f32 %v664, %v687
  %v690 = vsub.f32 %v667, %v687
  %v691 = vsel %vm673, %v688, 0.0
  %v692 = vsel %vm674, %v689, 0.0
  %v693 = vsel %vm675, %v690, 0.0
  %v694 = vmul.f32 %v691, %v691
  %v695 = vmul.f32 %v692, %v692
  %v696 = vmul.f32 %v693, %v693
  %v697 = vadd.f32 %v694, %v695
  %v698 = vadd.f32 %v697, %v696
  %v699 = vrot.slane %v698, 4
  %v700 = vadd.f32 %v698, %v699
  %v701 = vrot.slane %v700, 2
  %v702 = vadd.f32 %v700, %v701
  %v703 = vrot.slane %v702, 1
  %v704 = vadd.f32 %v702, %v703
  %v705 = vmul.f32 %v704, 0.055555556
  %v706 = vadd.f32 %v705, 1e-05
  %v707 = vrsqrt.pop %v706
  %v708 = vmul.f32 %v707, %v706
  %v709 = vmul.f32 %v708, %v707
  %v710 = vmul.f32 0.5, %v709
  %v711 = vsub.f32 1.5, %v710
  %v712 = vmul.f32 %v707, %v711
  %vm713 = vweird.f32 %v706
  %vm714 = vweird.f32 %v707
  %vm715 = vmor %vm713, %vm714
  %v716 = vsel %vm715, %v707, %v712
  %v717 = vmul.f32 %v688, %v716
  %v718 = vmul.f32 %v689, %v716
  %v719 = vmul.f32 %v690, %v716
  %v720 = vperm.slane %v145, 1
  %v721 = vmul.f32 %v717, %v720
  %v722 = vmul.f32 %v718, %v720
  %v723 = vmul.f32 %v719, %v720
  %v724 = vperm.slane %v145, 2
  %v725 = vadd.f32 %v721, %v724
  %v726 = vadd.f32 %v722, %v724
  %v727 = vadd.f32 %v723, %v724
  %vm728 = vcmp.gt.f32.partialorder %v725, 0.0
  %vm729 = vcmp.gt.f32.partialorder %v726, 0.0
  %vm730 = vcmp.gt.f32.partialorder %v727, 0.0
  %v731 = vmul.f32 %v725, 0.2
  %v732 = vmul.f32 %v726, 0.2
  %v733 = vmul.f32 %v727, 0.2
  %v734 = vsel %vm728, %v725, %v731
  %v735 = vsel %vm729, %v726, %v732
  %v736 = vsel %vm730, %v727, %v733
  %v737 = vsel %vm673, %v734, 0.0
  %v738 = vsel %vm674, %v735, 0.0
  %v739 = vsel %vm675, %v736, 0.0
  %740 = vst [vmem:[%s3] sm:$0xff] %v737
  %741 = vst [vmem:[%s3 + $0x8] sm:$0xff] %v738
  %742 = vst [vmem:[%s3 + $0x10] sm:$0xff] %v739
  // Predicated region
  $region14: #{discriminator_forward.8} parent=0 // pred_check
    _
  $region15: #{discriminator_forward.8} parent=0 // pred_check_branch
    %744 = sbr.rel (0) target = $region17
  $region16: #{discriminator_forward.8} parent=0 // pred_region
    _
  $region17: #{discriminator_forward.8} parent=0 // pred_fallthru
    _
  // Predicated region
  $region18: #{discriminator_forward.8} parent=0 // pred_check
    _
  $region19: #{discriminator_forward.8} parent=0 // pred_check_branch
    %746 = sbr.rel (0) target = $region21
  $region20: #{discriminator_forward.8} parent=0 // pred_region
    _
  $region21: #{discriminator_forward.8} parent=0 // pred_fallthru
    _

// kernel: discriminator_forward.9
$region0: #{discriminator_forward.9}
  #allocation0 [shape = 'u32[]', space=smem, size = 0x4, offset = 0x4, fixed_abs, tag = 'smem constant byte address 0x4 - core index']
  #allocation1 [shape = 'u32[72,128]{1,0:T(1,128)}', space=vmem, size = 0x9000, scoped, tag = 'internal scratch']
  %s0 = inlined_call_operand.vmem [shape: bf16[8,5248], index: 0, kind: input, shape index: {}]
  %s1 = inlined_call_operand.vmem [shape: bf16[5248,128], index: 1, kind: input, shape index: {}]
  %s2 = inlined_call_operand.vmem [shape: f32[8,128], index: 2, kind: input, shape index: {}]
  %s3 = inlined_call_operand.vmem [shape: bf16[128,128], index: 3, kind: input, shape index: {}]
  %s4 = inlined_call_operand.vmem [shape: f32[8,128], index: 4, kind: input, shape index: {}]
  %s5 = inlined_call_operand.vmem [shape: bf16[128,128], index: 5, kind: input, shape index: {}]
  %s6 = inlined_call_operand.vmem [shape: f32[8,128], index: 6, kind: input, shape index: {}]
  %s7 = inlined_call_operand.vmem [shape: f32[8,128], index: 7, kind: output, shape index: {}]
  %s8 = sld [smem:[#allocation0]]
  $region38: #{discriminator_forward.9} parent=0
    _
  %s10 = ssub.s32 1, %s8
  %s11 = scalar_select 0, %s10, %s8
  // Predicated region
  $region2: #{discriminator_forward.9} parent=0 // pred_check
    _
  $region3: #{discriminator_forward.9} parent=0 // pred_check_branch
    %13 = sbr.rel (0) target = $region5
  $region4: #{discriminator_forward.9} parent=0 // pred_region
    _
  $region5: #{discriminator_forward.9} parent=0 // pred_fallthru
    _
  // Predicated region
  $region6: #{discriminator_forward.9} parent=0 // pred_check
    _
  $region7: #{discriminator_forward.9} parent=0 // pred_check_branch
    %15 = sbr.rel (0) target = $region9
  $region8: #{discriminator_forward.9} parent=0 // pred_region
    _
  $region9: #{discriminator_forward.9} parent=0 // pred_fallthru
    _
  // Predicated region
  $region10: #{discriminator_forward.9} parent=0 // pred_check
    _
  $region11: #{discriminator_forward.9} parent=0 // pred_check_branch
    %17 = sbr.rel (0) target = $region13
  $region12: #{discriminator_forward.9} parent=0 // pred_region
    _
  $region13: #{discriminator_forward.9} parent=0 // pred_fallthru
    _
  // Predicated region
  $region14: #{discriminator_forward.9} parent=0 // pred_check
    _
  $region15: #{discriminator_forward.9} parent=0 // pred_check_branch
    %19 = sbr.rel (0) target = $region17
  $region16: #{discriminator_forward.9} parent=0 // pred_region
    _
  $region17: #{discriminator_forward.9} parent=0 // pred_fallthru
    _
  // Predicated region
  $region18: #{discriminator_forward.9} parent=0 // pred_check
    _
  $region19: #{discriminator_forward.9} parent=0 // pred_check_branch
    %21 = sbr.rel (0) target = $region21
  $region20: #{discriminator_forward.9} parent=0 // pred_region
    _
  $region21: #{discriminator_forward.9} parent=0 // pred_fallthru
    _
  // Predicated region
  $region22: #{discriminator_forward.9} parent=0 // pred_check
    _
  $region23: #{discriminator_forward.9} parent=0 // pred_check_branch
    %23 = sbr.rel (0) target = $region25
  $region24: #{discriminator_forward.9} parent=0 // pred_region
    _
  $region25: #{discriminator_forward.9} parent=0 // pred_fallthru
    _
  // Predicated region
  $region26: #{discriminator_forward.9} parent=0 // pred_check
    _
  $region27: #{discriminator_forward.9} parent=0 // pred_check_branch
    %25 = sbr.rel (0) target = $region29
  $region28: #{discriminator_forward.9} parent=0 // pred_region
    _
  $region29: #{discriminator_forward.9} parent=0 // pred_fallthru
    _
  %v26 = vlaneseq
  %v27 = vshrl.u32 %v26, 7
  %vm28 = vcmp.lt.s32.totalorder %v27, 2
  %v29 = vld [vmem:[%s0] sm:$0xff]
  %v30 = vld [vmem:[%s0 + $0x8] sm:$0xff]
  %v31 = vld [vmem:[%s0 + $0x10] sm:$0xff]
  %v32 = vld [vmem:[%s0 + $0x18] sm:$0xff]
  %v33 = vld [vmem:[%s0 + $0x20] sm:$0xff]
  %v34 = vld [vmem:[%s0 + $0x28] sm:$0xff]
  %v35 = vld [vmem:[%s0 + $0x30] sm:$0xff]
  %v36 = vld [vmem:[%s0 + $0x38] sm:$0xff]
  %v37 = vld [vmem:[%s0 + $0x40] sm:$0xff]
  %v38 = vld [vmem:[%s0 + $0x48] sm:$0xff]
  %v39 = vld [vmem:[%s0 + $0x50] sm:$0xff]
  %v40 = vld [vmem:[%s0 + $0x58] sm:$0xff]
  %v41 = vld [vmem:[%s0 + $0x60] sm:$0xff]
  %v42 = vld [vmem:[%s0 + $0x68] sm:$0xff]
  %v43 = vld [vmem:[%s0 + $0x70] sm:$0xff]
  %v44 = vld [vmem:[%s0 + $0x78] sm:$0xff]
  %v45 = vld [vmem:[%s0 + $0x80] sm:$0xff]
  %v46 = vld [vmem:[%s0 + $0x88] sm:$0xff]
  %v47 = vld [vmem:[%s0 + $0x90] sm:$0xff]
  %v48 = vld [vmem:[%s0 + $0x98] sm:$0xff]
  %v49 = vld [vmem:[%s0 + $0xa0] sm:$0xf]
  %v50 = vld [vmem:[%s1] sm:$0xf]
  %v51 = vld [vmem:[%s1 + $0x4] sm:$0xf]
  %v52 = vld [vmem:[%s1 + $0x8] sm:$0xf]
  %v53 = vld [vmem:[%s1 + $0xc] sm:$0xf]
  %v54 = vld [vmem:[%s1 + $0x10] sm:$0xf]
  %v55 = vld [vmem:[%s1 + $0x14] sm:$0xf]
  %v56 = vld [vmem:[%s1 + $0x18] sm:$0xf]
  %v57 = vld [vmem:[%s1 + $0x1c] sm:$0xf]
  %v58 = vld [vmem:[%s1 + $0x20] sm:$0xf]
  %v59 = vld [vmem:[%s1 + $0x24] sm:$0xf]
  %v60 = vld [vmem:[%s1 + $0x28] sm:$0xf]
  %v61 = vld [vmem:[%s1 + $0x2c] sm:$0xf]
  %v62 = vld [vmem:[%s1 + $0x30] sm:$0xf]
  %v63 = vld [vmem:[%s1 + $0x34] sm:$0xf]
  %v64 = vld [vmem:[%s1 + $0x38] sm:$0xf]
  %v65 = vld [vmem:[%s1 + $0x3c] sm:$0xf]
  %v66 = vld [vmem:[%s1 + $0x40] sm:$0xf]
  %v67 = vld [vmem:[%s1 + $0x44] sm:$0xf]
  %v68 = vld [vmem:[%s1 + $0x48] sm:$0xf]
  %v69 = vld [vmem:[%s1 + $0x4c] sm:$0xf]
  %v70 = vld [vmem:[%s1 + $0x50] sm:$0xf]
  %v71 = vld [vmem:[%s1 + $0x54] sm:$0xf]
  %v72 = vld [vmem:[%s1 + $0x58] sm:$0xf]
  %v73 = vld [vmem:[%s1 + $0x5c] sm:$0xf]
  %v74 = vld [vmem:[%s1 + $0x60] sm:$0xf]
  %v75 = vld [vmem:[%s1 + $0x64] sm:$0xf]
  %v76 = vld [vmem:[%s1 + $0x68] sm:$0xf]
  %v77 = vld [vmem:[%s1 + $0x6c] sm:$0xf]
  %v78 = vld [vmem:[%s1 + $0x70] sm:$0xf]
  %v79 = vld [vmem:[%s1 + $0x74] sm:$0xf]
  %v80 = vld [vmem:[%s1 + $0x78] sm:$0xf]
  %v81 = vld [vmem:[%s1 + $0x7c] sm:$0xf]
  %v82 = vld [vmem:[%s1 + $0x80] sm:$0xf]
  %v83 = vld [vmem:[%s1 + $0x84] sm:$0xf]
  %v84 = vld [vmem:[%s1 + $0x88] sm:$0xf]
  %v85 = vld [vmem:[%s1 + $0x8c] sm:$0xf]
  %v86 = vld [vmem:[%s1 + $0x90] sm:$0xf]
  %v87 = vld [vmem:[%s1 + $0x94] sm:$0xf]
  %v88 = vld [vmem:[%s1 + $0x98] sm:$0xf]
  %v89 = vld [vmem:[%s1 + $0x9c] sm:$0xf]
  %v90 = vld [vmem:[%s1 + $0xa0] sm:$0xf]
  %v91 = vld [vmem:[%s1 + $0xa4] sm:$0xf]
  %v92 = vld [vmem:[%s1 + $0xa8] sm:$0xf]
  %v93 = vld [vmem:[%s1 + $0xac] sm:$0xf]
  %v94 = vld [vmem:[%s1 + $0xb0] sm:$0xf]
  %v95 = vld [vmem:[%s1 + $0xb4] sm:$0xf]
  %v96 = vld [vmem:[%s1 + $0xb8] sm:$0xf]
  %v97 = vld [vmem:[%s1 + $0xbc] sm:$0xf]
  %v98 = vld [vmem:[%s1 + $0xc0] sm:$0xf]
  %v99 = vld [vmem:[%s1 + $0xc4] sm:$0xf]
  %v100 = vld [vmem:[%s1 + $0xc8] sm:$0xf]
  %v101 = vld [vmem:[%s1 + $0xcc] sm:$0xf]
  %v102 = vld [vmem:[%s1 + $0xd0] sm:$0xf]
  %v103 = vld [vmem:[%s1 + $0xd4] sm:$0xf]
  %v104 = vld [vmem:[%s1 + $0xd8] sm:$0xf]
  %v105 = vld [vmem:[%s1 + $0xdc] sm:$0xf]
  %v106 = vld [vmem:[%s1 + $0xe0] sm:$0xf]
  %v107 = vld [vmem:[%s1 + $0xe4] sm:$0xf]
  %v108 = vld [vmem:[%s1 + $0xe8] sm:$0xf]
  %v109 = vld [vmem:[%s1 + $0xec] sm:$0xf]
  %v110 = vld [vmem:[%s1 + $0xf0] sm:$0xf]
  %v111 = vld [vmem:[%s1 + $0xf4] sm:$0xf]
  %v112 = vld [vmem:[%s1 + $0xf8] sm:$0xf]
  %v113 = vld [vmem:[%s1 + $0xfc] sm:$0xf]
  %v114 = vld [vmem:[%s1 + $0x100] sm:$0xf]
  %v115 = vld [vmem:[%s1 + $0x104] sm:$0xf]
  %v116 = vld [vmem:[%s1 + $0x108] sm:$0xf]
  %v117 = vld [vmem:[%s1 + $0x10c] sm:$0xf]
  %v118 = vld [vmem:[%s1 + $0x110] sm:$0xf]
  %v119 = vld [vmem:[%s1 + $0x114] sm:$0xf]
  %v120 = vld [vmem:[%s1 + $0x118] sm:$0xf]
  %v121 = vld [vmem:[%s1 + $0x11c] sm:$0xf]
  %v122 = vld [vmem:[%s1 + $0x120] sm:$0xf]
  %v123 = vld [vmem:[%s1 + $0x124] sm:$0xf]
  %v124 = vld [vmem:[%s1 + $0x128] sm:$0xf]
  %v125 = vld [vmem:[%s1 + $0x12c] sm:$0xf]
  %v126 = vld [vmem:[%s1 + $0x130] sm:$0xf]
  %v127 = vld [vmem:[%s1 + $0x134] sm:$0xf]
  %v128 = vld [vmem:[%s1 + $0x138] sm:$0xf]
  %v129 = vld [vmem:[%s1 + $0x13c] sm:$0xf]
  %v130 = vld [vmem:[%s1 + $0x140] sm:$0xf]
  %v131 = vld [vmem:[%s1 + $0x144] sm:$0xf]
  %v132 = vld [vmem:[%s1 + $0x148] sm:$0xf]
  %v133 = vld [vmem:[%s1 + $0x14c] sm:$0xf]
  %v134 = vld [vmem:[%s1 + $0x150] sm:$0xf]
  %v135 = vld [vmem:[%s1 + $0x154] sm:$0xf]
  %v136 = vld [vmem:[%s1 + $0x158] sm:$0xf]
  %v137 = vld [vmem:[%s1 + $0x15c] sm:$0xf]
  %v138 = vld [vmem:[%s1 + $0x160] sm:$0xf]
  %v139 = vld [vmem:[%s1 + $0x164] sm:$0xf]
  %v140 = vld [vmem:[%s1 + $0x168] sm:$0xf]
  %v141 = vld [vmem:[%s1 + $0x16c] sm:$0xf]
  %v142 = vld [vmem:[%s1 + $0x170] sm:$0xf]
  %v143 = vld [vmem:[%s1 + $0x174] sm:$0xf]
  %v144 = vld [vmem:[%s1 + $0x178] sm:$0xf]
  %v145 = vld [vmem:[%s1 + $0x17c] sm:$0xf]
  %v146 = vld [vmem:[%s1 + $0x180] sm:$0xf]
  %v147 = vld [vmem:[%s1 + $0x184] sm:$0xf]
  %v148 = vld [vmem:[%s1 + $0x188] sm:$0xf]
  %v149 = vld [vmem:[%s1 + $0x18c] sm:$0xf]
  %v150 = vld [vmem:[%s1 + $0x190] sm:$0xf]
  %v151 = vld [vmem:[%s1 + $0x194] sm:$0xf]
  %v152 = vld [vmem:[%s1 + $0x198] sm:$0xf]
  %v153 = vld [vmem:[%s1 + $0x19c] sm:$0xf]
  %v154 = vld [vmem:[%s1 + $0x1a0] sm:$0xf]
  %v155 = vld [vmem:[%s1 + $0x1a4] sm:$0xf]
  %v156 = vld [vmem:[%s1 + $0x1a8] sm:$0xf]
  %v157 = vld [vmem:[%s1 + $0x1ac] sm:$0xf]
  %v158 = vld [vmem:[%s1 + $0x1b0] sm:$0xf]
  %v159 = vld [vmem:[%s1 + $0x1b4] sm:$0xf]
  %v160 = vld [vmem:[%s1 + $0x1b8] sm:$0xf]
  %v161 = vld [vmem:[%s1 + $0x1bc] sm:$0xf]
  %v162 = vld [vmem:[%s1 + $0x1c0] sm:$0xf]
  %v163 = vld [vmem:[%s1 + $0x1c4] sm:$0xf]
  %v164 = vld [vmem:[%s1 + $0x1c8] sm:$0xf]
  %v165 = vld [vmem:[%s1 + $0x1cc] sm:$0xf]
  %v166 = vld [vmem:[%s1 + $0x1d0] sm:$0xf]
  %v167 = vld [vmem:[%s1 + $0x1d4] sm:$0xf]
  %v168 = vld [vmem:[%s1 + $0x1d8] sm:$0xf]
  %v169 = vld [vmem:[%s1 + $0x1dc] sm:$0xf]
  %v170 = vld [vmem:[%s1 + $0x1e0] sm:$0xf]
  %v171 = vld [vmem:[%s1 + $0x1e4] sm:$0xf]
  %v172 = vld [vmem:[%s1 + $0x1e8] sm:$0xf]
  %v173 = vld [vmem:[%s1 + $0x1ec] sm:$0xf]
  %v174 = vld [vmem:[%s1 + $0x1f0] sm:$0xf]
  %v175 = vld [vmem:[%s1 + $0x1f4] sm:$0xf]
  %v176 = vld [vmem:[%s1 + $0x1f8] sm:$0xf]
  %v177 = vld [vmem:[%s1 + $0x1fc] sm:$0xf]
  %v178 = vld [vmem:[%s1 + $0x200] sm:$0xf]
  %v179 = vld [vmem:[%s1 + $0x204] sm:$0xf]
  %v180 = vld [vmem:[%s1 + $0x208] sm:$0xf]
  %v181 = vld [vmem:[%s1 + $0x20c] sm:$0xf]
  %v182 = vld [vmem:[%s1 + $0x210] sm:$0xf]
  %v183 = vld [vmem:[%s1 + $0x214] sm:$0xf]
  %v184 = vld [vmem:[%s1 + $0x218] sm:$0xf]
  %v185 = vld [vmem:[%s1 + $0x21c] sm:$0xf]
  %v186 = vld [vmem:[%s1 + $0x220] sm:$0xf]
  %v187 = vld [vmem:[%s1 + $0x224] sm:$0xf]
  %v188 = vld [vmem:[%s1 + $0x228] sm:$0xf]
  %v189 = vld [vmem:[%s1 + $0x22c] sm:$0xf]
  %v190 = vld [vmem:[%s1 + $0x230] sm:$0xf]
  %v191 = vld [vmem:[%s1 + $0x234] sm:$0xf]
  %v192 = vld [vmem:[%s1 + $0x238] sm:$0xf]
  %v193 = vld [vmem:[%s1 + $0x23c] sm:$0xf]
  %v194 = vld [vmem:[%s1 + $0x240] sm:$0xf]
  %v195 = vld [vmem:[%s1 + $0x244] sm:$0xf]
  %v196 = vld [vmem:[%s1 + $0x248] sm:$0xf]
  %v197 = vld [vmem:[%s1 + $0x24c] sm:$0xf]
  %v198 = vld [vmem:[%s1 + $0x250] sm:$0xf]
  %v199 = vld [vmem:[%s1 + $0x254] sm:$0xf]
  %v200 = vld [vmem:[%s1 + $0x258] sm:$0xf]
  %v201 = vld [vmem:[%s1 + $0x25c] sm:$0xf]
  %v202 = vld [vmem:[%s1 + $0x260] sm:$0xf]
  %v203 = vld [vmem:[%s1 + $0x264] sm:$0xf]
  %v204 = vld [vmem:[%s1 + $0x268] sm:$0xf]
  %v205 = vld [vmem:[%s1 + $0x26c] sm:$0xf]
  %v206 = vld [vmem:[%s1 + $0x270] sm:$0xf]
  %v207 = vld [vmem:[%s1 + $0x274] sm:$0xf]
  %v208 = vld [vmem:[%s1 + $0x278] sm:$0xf]
  %v209 = vld [vmem:[%s1 + $0x27c] sm:$0xf]
  %v210 = vld [vmem:[%s1 + $0x280] sm:$0xf]
  %v211 = vld [vmem:[%s1 + $0x284] sm:$0xf]
  %v212 = vld [vmem:[%s1 + $0x288] sm:$0xf]
  %v213 = vld [vmem:[%s1 + $0x28c] sm:$0xf]
  %v214 = vld [vmem:[%s1 + $0x290] sm:$0xf]
  %v215 = vld [vmem:[%s1 + $0x294] sm:$0xf]
  %v216 = vld [vmem:[%s1 + $0x298] sm:$0xf]
  %v217 = vld [vmem:[%s1 + $0x29c] sm:$0xf]
  %v218 = vld [vmem:[%s1 + $0x2a0] sm:$0xf]
  %v219 = vld [vmem:[%s1 + $0x2a4] sm:$0xf]
  %v220 = vld [vmem:[%s1 + $0x2a8] sm:$0xf]
  %v221 = vld [vmem:[%s1 + $0x2ac] sm:$0xf]
  %v222 = vld [vmem:[%s1 + $0x2b0] sm:$0xf]
  %v223 = vld [vmem:[%s1 + $0x2b4] sm:$0xf]
  %v224 = vld [vmem:[%s1 + $0x2b8] sm:$0xf]
  %v225 = vld [vmem:[%s1 + $0x2bc] sm:$0xf]
  %v226 = vld [vmem:[%s1 + $0x2c0] sm:$0xf]
  %v227 = vld [vmem:[%s1 + $0x2c4] sm:$0xf]
  %v228 = vld [vmem:[%s1 + $0x2c8] sm:$0xf]
  %v229 = vld [vmem:[%s1 + $0x2cc] sm:$0xf]
  %v230 = vld [vmem:[%s1 + $0x2d0] sm:$0xf]
  %v231 = vld [vmem:[%s1 + $0x2d4] sm:$0xf]
  %v232 = vld [vmem:[%s1 + $0x2d8] sm:$0xf]
  %v233 = vld [vmem:[%s1 + $0x2dc] sm:$0xf]
  %v234 = vld [vmem:[%s1 + $0x2e0] sm:$0xf]
  %v235 = vld [vmem:[%s1 + $0x2e4] sm:$0xf]
  %v236 = vld [vmem:[%s1 + $0x2e8] sm:$0xf]
  %v237 = vld [vmem:[%s1 + $0x2ec] sm:$0xf]
  %v238 = vld [vmem:[%s1 + $0x2f0] sm:$0xf]
  %v239 = vld [vmem:[%s1 + $0x2f4] sm:$0xf]
  %v240 = vld [vmem:[%s1 + $0x2f8] sm:$0xf]
  %v241 = vld [vmem:[%s1 + $0x2fc] sm:$0xf]
  %v242 = vld [vmem:[%s1 + $0x300] sm:$0xf]
  %v243 = vld [vmem:[%s1 + $0x304] sm:$0xf]
  %v244 = vld [vmem:[%s1 + $0x308] sm:$0xf]
  %v245 = vld [vmem:[%s1 + $0x30c] sm:$0xf]
  %v246 = vld [vmem:[%s1 + $0x310] sm:$0xf]
  %v247 = vld [vmem:[%s1 + $0x314] sm:$0xf]
  %v248 = vld [vmem:[%s1 + $0x318] sm:$0xf]
  %v249 = vld [vmem:[%s1 + $0x31c] sm:$0xf]
  %v250 = vld [vmem:[%s1 + $0x320] sm:$0xf]
  %v251 = vld [vmem:[%s1 + $0x324] sm:$0xf]
  %v252 = vld [vmem:[%s1 + $0x328] sm:$0xf]
  %v253 = vld [vmem:[%s1 + $0x32c] sm:$0xf]
  %v254 = vld [vmem:[%s1 + $0x330] sm:$0xf]
  %v255 = vld [vmem:[%s1 + $0x334] sm:$0xf]
  %v256 = vld [vmem:[%s1 + $0x338] sm:$0xf]
  %v257 = vld [vmem:[%s1 + $0x33c] sm:$0xf]
  %v258 = vld [vmem:[%s1 + $0x340] sm:$0xf]
  %v259 = vld [vmem:[%s1 + $0x344] sm:$0xf]
  %v260 = vld [vmem:[%s1 + $0x348] sm:$0xf]
  %v261 = vld [vmem:[%s1 + $0x34c] sm:$0xf]
  %v262 = vld [vmem:[%s1 + $0x350] sm:$0xf]
  %v263 = vld [vmem:[%s1 + $0x354] sm:$0xf]
  %v264 = vld [vmem:[%s1 + $0x358] sm:$0xf]
  %v265 = vld [vmem:[%s1 + $0x35c] sm:$0xf]
  %v266 = vld [vmem:[%s1 + $0x360] sm:$0xf]
  %v267 = vld [vmem:[%s1 + $0x364] sm:$0xf]
  %v268 = vld [vmem:[%s1 + $0x368] sm:$0xf]
  %v269 = vld [vmem:[%s1 + $0x36c] sm:$0xf]
  %v270 = vld [vmem:[%s1 + $0x370] sm:$0xf]
  %v271 = vld [vmem:[%s1 + $0x374] sm:$0xf]
  %v272 = vld [vmem:[%s1 + $0x378] sm:$0xf]
  %v273 = vld [vmem:[%s1 + $0x37c] sm:$0xf]
  %v274 = vld [vmem:[%s1 + $0x380] sm:$0xf]
  %v275 = vld [vmem:[%s1 + $0x384] sm:$0xf]
  %v276 = vld [vmem:[%s1 + $0x388] sm:$0xf]
  %v277 = vld [vmem:[%s1 + $0x38c] sm:$0xf]
  %v278 = vld [vmem:[%s1 + $0x390] sm:$0xf]
  %v279 = vld [vmem:[%s1 + $0x394] sm:$0xf]
  %v280 = vld [vmem:[%s1 + $0x398] sm:$0xf]
  %v281 = vld [vmem:[%s1 + $0x39c] sm:$0xf]
  %v282 = vld [vmem:[%s1 + $0x3a0] sm:$0xf]
  %v283 = vld [vmem:[%s1 + $0x3a4] sm:$0xf]
  %v284 = vld [vmem:[%s1 + $0x3a8] sm:$0xf]
  %v285 = vld [vmem:[%s1 + $0x3ac] sm:$0xf]
  %v286 = vld [vmem:[%s1 + $0x3b0] sm:$0xf]
  %v287 = vld [vmem:[%s1 + $0x3b4] sm:$0xf]
  %v288 = vld [vmem:[%s1 + $0x3b8] sm:$0xf]
  %v289 = vld [vmem:[%s1 + $0x3bc] sm:$0xf]
  %v290 = vld [vmem:[%s1 + $0x3c0] sm:$0xf]
  %v291 = vld [vmem:[%s1 + $0x3c4] sm:$0xf]
  %v292 = vld [vmem:[%s1 + $0x3c8] sm:$0xf]
  %v293 = vld [vmem:[%s1 + $0x3cc] sm:$0xf]
  %v294 = vld [vmem:[%s1 + $0x3d0] sm:$0xf]
  %v295 = vld [vmem:[%s1 + $0x3d4] sm:$0xf]
  %v296 = vld [vmem:[%s1 + $0x3d8] sm:$0xf]
  %v297 = vld [vmem:[%s1 + $0x3dc] sm:$0xf]
  %v298 = vld [vmem:[%s1 + $0x3e0] sm:$0xf]
  %v299 = vld [vmem:[%s1 + $0x3e4] sm:$0xf]
  %v300 = vld [vmem:[%s1 + $0x3e8] sm:$0xf]
  %v301 = vld [vmem:[%s1 + $0x3ec] sm:$0xf]
  %v302 = vld [vmem:[%s1 + $0x3f0] sm:$0xf]
  %v303 = vld [vmem:[%s1 + $0x3f4] sm:$0xf]
  %v304 = vld [vmem:[%s1 + $0x3f8] sm:$0xf]
  %v305 = vld [vmem:[%s1 + $0x3fc] sm:$0xf]
  %v306 = vld [vmem:[%s1 + $0x400] sm:$0xf]
  %v307 = vld [vmem:[%s1 + $0x404] sm:$0xf]
  %v308 = vld [vmem:[%s1 + $0x408] sm:$0xf]
  %v309 = vld [vmem:[%s1 + $0x40c] sm:$0xf]
  %v310 = vld [vmem:[%s1 + $0x410] sm:$0xf]
  %v311 = vld [vmem:[%s1 + $0x414] sm:$0xf]
  %v312 = vld [vmem:[%s1 + $0x418] sm:$0xf]
  %v313 = vld [vmem:[%s1 + $0x41c] sm:$0xf]
  %v314 = vld [vmem:[%s1 + $0x420] sm:$0xf]
  %v315 = vld [vmem:[%s1 + $0x424] sm:$0xf]
  %v316 = vld [vmem:[%s1 + $0x428] sm:$0xf]
  %v317 = vld [vmem:[%s1 + $0x42c] sm:$0xf]
  %v318 = vld [vmem:[%s1 + $0x430] sm:$0xf]
  %v319 = vld [vmem:[%s1 + $0x434] sm:$0xf]
  %v320 = vld [vmem:[%s1 + $0x438] sm:$0xf]
  %v321 = vld [vmem:[%s1 + $0x43c] sm:$0xf]
  %v322 = vld [vmem:[%s1 + $0x440] sm:$0xf]
  %v323 = vld [vmem:[%s1 + $0x444] sm:$0xf]
  %v324 = vld [vmem:[%s1 + $0x448] sm:$0xf]
  %v325 = vld [vmem:[%s1 + $0x44c] sm:$0xf]
  %v326 = vld [vmem:[%s1 + $0x450] sm:$0xf]
  %v327 = vld [vmem:[%s1 + $0x454] sm:$0xf]
  %v328 = vld [vmem:[%s1 + $0x458] sm:$0xf]
  %v329 = vld [vmem:[%s1 + $0x45c] sm:$0xf]
  %v330 = vld [vmem:[%s1 + $0x460] sm:$0xf]
  %v331 = vld [vmem:[%s1 + $0x464] sm:$0xf]
  %v332 = vld [vmem:[%s1 + $0x468] sm:$0xf]
  %v333 = vld [vmem:[%s1 + $0x46c] sm:$0xf]
  %v334 = vld [vmem:[%s1 + $0x470] sm:$0xf]
  %v335 = vld [vmem:[%s1 + $0x474] sm:$0xf]
  %v336 = vld [vmem:[%s1 + $0x478] sm:$0xf]
  %v337 = vld [vmem:[%s1 + $0x47c] sm:$0xf]
  %v338 = vld [vmem:[%s1 + $0x480] sm:$0xf]
  %v339 = vld [vmem:[%s1 + $0x484] sm:$0xf]
  %v340 = vld [vmem:[%s1 + $0x488] sm:$0xf]
  %v341 = vld [vmem:[%s1 + $0x48c] sm:$0xf]
  %v342 = vld [vmem:[%s1 + $0x490] sm:$0xf]
  %v343 = vld [vmem:[%s1 + $0x494] sm:$0xf]
  %v344 = vld [vmem:[%s1 + $0x498] sm:$0xf]
  %v345 = vld [vmem:[%s1 + $0x49c] sm:$0xf]
  %v346 = vld [vmem:[%s1 + $0x4a0] sm:$0xf]
  %v347 = vld [vmem:[%s1 + $0x4a4] sm:$0xf]
  %v348 = vld [vmem:[%s1 + $0x4a8] sm:$0xf]
  %v349 = vld [vmem:[%s1 + $0x4ac] sm:$0xf]
  %v350 = vld [vmem:[%s1 + $0x4b0] sm:$0xf]
  %v351 = vld [vmem:[%s1 + $0x4b4] sm:$0xf]
  %v352 = vld [vmem:[%s1 + $0x4b8] sm:$0xf]
  %v353 = vld [vmem:[%s1 + $0x4bc] sm:$0xf]
  %v354 = vld [vmem:[%s1 + $0x4c0] sm:$0xf]
  %v355 = vld [vmem:[%s1 + $0x4c4] sm:$0xf]
  %v356 = vld [vmem:[%s1 + $0x4c8] sm:$0xf]
  %v357 = vld [vmem:[%s1 + $0x4cc] sm:$0xf]
  %v358 = vld [vmem:[%s1 + $0x4d0] sm:$0xf]
  %v359 = vld [vmem:[%s1 + $0x4d4] sm:$0xf]
  %v360 = vld [vmem:[%s1 + $0x4d8] sm:$0xf]
  %v361 = vld [vmem:[%s1 + $0x4dc] sm:$0xf]
  %v362 = vld [vmem:[%s1 + $0x4e0] sm:$0xf]
  %v363 = vld [vmem:[%s1 + $0x4e4] sm:$0xf]
  %v364 = vld [vmem:[%s1 + $0x4e8] sm:$0xf]
  %v365 = vld [vmem:[%s1 + $0x4ec] sm:$0xf]
  %v366 = vld [vmem:[%s1 + $0x4f0] sm:$0xf]
  %v367 = vld [vmem:[%s1 + $0x4f4] sm:$0xf]
  %v368 = vld [vmem:[%s1 + $0x4f8] sm:$0xf]
  %v369 = vld [vmem:[%s1 + $0x4fc] sm:$0xf]
  %v370 = vld [vmem:[%s1 + $0x500] sm:$0xf]
  %v371 = vld [vmem:[%s1 + $0x504] sm:$0xf]
  %v372 = vld [vmem:[%s1 + $0x508] sm:$0xf]
  %v373 = vld [vmem:[%s1 + $0x50c] sm:$0xf]
  %v374 = vld [vmem:[%s1 + $0x510] sm:$0xf]
  %v375 = vld [vmem:[%s1 + $0x514] sm:$0xf]
  %v376 = vld [vmem:[%s1 + $0x518] sm:$0xf]
  %v377 = vld [vmem:[%s1 + $0x51c] sm:$0xf]
  %v378 = vld [vmem:[%s1 + $0x520] sm:$0xf]
  %v379 = vld [vmem:[%s1 + $0x524] sm:$0xf]
  %v380 = vld [vmem:[%s1 + $0x528] sm:$0xf]
  %v381 = vld [vmem:[%s1 + $0x52c] sm:$0xf]
  %v382 = vld [vmem:[%s1 + $0x530] sm:$0xf]
  %v383 = vld [vmem:[%s1 + $0x534] sm:$0xf]
  %v384 = vld [vmem:[%s1 + $0x538] sm:$0xf]
  %v385 = vld [vmem:[%s1 + $0x53c] sm:$0xf]
  %v386 = vld [vmem:[%s1 + $0x540] sm:$0xf]
  %v387 = vld [vmem:[%s1 + $0x544] sm:$0xf]
  %v388 = vld [vmem:[%s1 + $0x548] sm:$0xf]
  %v389 = vld [vmem:[%s1 + $0x54c] sm:$0xf]
  %v390 = vld [vmem:[%s1 + $0x550] sm:$0xf]
  %v391 = vld [vmem:[%s1 + $0x554] sm:$0xf]
  %v392 = vld [vmem:[%s1 + $0x558] sm:$0xf]
  %v393 = vld [vmem:[%s1 + $0x55c] sm:$0xf]
  %v394 = vld [vmem:[%s1 + $0x560] sm:$0xf]
  %v395 = vld [vmem:[%s1 + $0x564] sm:$0xf]
  %v396 = vld [vmem:[%s1 + $0x568] sm:$0xf]
  %v397 = vld [vmem:[%s1 + $0x56c] sm:$0xf]
  %v398 = vld [vmem:[%s1 + $0x570] sm:$0xf]
  %v399 = vld [vmem:[%s1 + $0x574] sm:$0xf]
  %v400 = vld [vmem:[%s1 + $0x578] sm:$0xf]
  %v401 = vld [vmem:[%s1 + $0x57c] sm:$0xf]
  %v402 = vld [vmem:[%s1 + $0x580] sm:$0xf]
  %v403 = vld [vmem:[%s1 + $0x584] sm:$0xf]
  %v404 = vld [vmem:[%s1 + $0x588] sm:$0xf]
  %v405 = vld [vmem:[%s1 + $0x58c] sm:$0xf]
  %v406 = vld [vmem:[%s1 + $0x590] sm:$0xf]
  %v407 = vld [vmem:[%s1 + $0x594] sm:$0xf]
  %v408 = vld [vmem:[%s1 + $0x598] sm:$0xf]
  %v409 = vld [vmem:[%s1 + $0x59c] sm:$0xf]
  %v410 = vld [vmem:[%s1 + $0x5a0] sm:$0xf]
  %v411 = vld [vmem:[%s1 + $0x5a4] sm:$0xf]
  %v412 = vld [vmem:[%s1 + $0x5a8] sm:$0xf]
  %v413 = vld [vmem:[%s1 + $0x5ac] sm:$0xf]
  %v414 = vld [vmem:[%s1 + $0x5b0] sm:$0xf]
  %v415 = vld [vmem:[%s1 + $0x5b4] sm:$0xf]
  %v416 = vld [vmem:[%s1 + $0x5b8] sm:$0xf]
  %v417 = vld [vmem:[%s1 + $0x5bc] sm:$0xf]
  %v418 = vld [vmem:[%s1 + $0x5c0] sm:$0xf]
  %v419 = vld [vmem:[%s1 + $0x5c4] sm:$0xf]
  %v420 = vld [vmem:[%s1 + $0x5c8] sm:$0xf]
  %v421 = vld [vmem:[%s1 + $0x5cc] sm:$0xf]
  %v422 = vld [vmem:[%s1 + $0x5d0] sm:$0xf]
  %v423 = vld [vmem:[%s1 + $0x5d4] sm:$0xf]
  %v424 = vld [vmem:[%s1 + $0x5d8] sm:$0xf]
  %v425 = vld [vmem:[%s1 + $0x5dc] sm:$0xf]
  %v426 = vld [vmem:[%s1 + $0x5e0] sm:$0xf]
  %v427 = vld [vmem:[%s1 + $0x5e4] sm:$0xf]
  %v428 = vld [vmem:[%s1 + $0x5e8] sm:$0xf]
  %v429 = vld [vmem:[%s1 + $0x5ec] sm:$0xf]
  %v430 = vld [vmem:[%s1 + $0x5f0] sm:$0xf]
  %v431 = vld [vmem:[%s1 + $0x5f4] sm:$0xf]
  %v432 = vld [vmem:[%s1 + $0x5f8] sm:$0xf]
  %v433 = vld [vmem:[%s1 + $0x5fc] sm:$0xf]
  %v434 = vld [vmem:[%s1 + $0x600] sm:$0xf]
  %v435 = vld [vmem:[%s1 + $0x604] sm:$0xf]
  %v436 = vld [vmem:[%s1 + $0x608] sm:$0xf]
  %v437 = vld [vmem:[%s1 + $0x60c] sm:$0xf]
  %v438 = vld [vmem:[%s1 + $0x610] sm:$0xf]
  %v439 = vld [vmem:[%s1 + $0x614] sm:$0xf]
  %v440 = vld [vmem:[%s1 + $0x618] sm:$0xf]
  %v441 = vld [vmem:[%s1 + $0x61c] sm:$0xf]
  %v442 = vld [vmem:[%s1 + $0x620] sm:$0xf]
  %v443 = vld [vmem:[%s1 + $0x624] sm:$0xf]
  %v444 = vld [vmem:[%s1 + $0x628] sm:$0xf]
  %v445 = vld [vmem:[%s1 + $0x62c] sm:$0xf]
  %v446 = vld [vmem:[%s1 + $0x630] sm:$0xf]
  %v447 = vld [vmem:[%s1 + $0x634] sm:$0xf]
  %v448 = vld [vmem:[%s1 + $0x638] sm:$0xf]
  %v449 = vld [vmem:[%s1 + $0x63c] sm:$0xf]
  %v450 = vld [vmem:[%s1 + $0x640] sm:$0xf]
  %v451 = vld [vmem:[%s1 + $0x644] sm:$0xf]
  %v452 = vld [vmem:[%s1 + $0x648] sm:$0xf]
  %v453 = vld [vmem:[%s1 + $0x64c] sm:$0xf]
  %v454 = vld [vmem:[%s1 + $0x650] sm:$0xf]
  %v455 = vld [vmem:[%s1 + $0x654] sm:$0xf]
  %v456 = vld [vmem:[%s1 + $0x658] sm:$0xf]
  %v457 = vld [vmem:[%s1 + $0x65c] sm:$0xf]
  %v458 = vld [vmem:[%s1 + $0x660] sm:$0xf]
  %v459 = vld [vmem:[%s1 + $0x664] sm:$0xf]
  %v460 = vld [vmem:[%s1 + $0x668] sm:$0xf]
  %v461 = vld [vmem:[%s1 + $0x66c] sm:$0xf]
  %v462 = vld [vmem:[%s1 + $0x670] sm:$0xf]
  %v463 = vld [vmem:[%s1 + $0x674] sm:$0xf]
  %v464 = vld [vmem:[%s1 + $0x678] sm:$0xf]
  %v465 = vld [vmem:[%s1 + $0x67c] sm:$0xf]
  %v466 = vld [vmem:[%s1 + $0x680] sm:$0xf]
  %v467 = vld [vmem:[%s1 + $0x684] sm:$0xf]
  %v468 = vld [vmem:[%s1 + $0x688] sm:$0xf]
  %v469 = vld [vmem:[%s1 + $0x68c] sm:$0xf]
  %v470 = vld [vmem:[%s1 + $0x690] sm:$0xf]
  %v471 = vld [vmem:[%s1 + $0x694] sm:$0xf]
  %v472 = vld [vmem:[%s1 + $0x698] sm:$0xf]
  %v473 = vld [vmem:[%s1 + $0x69c] sm:$0xf]
  %v474 = vld [vmem:[%s1 + $0x6a0] sm:$0xf]
  %v475 = vld [vmem:[%s1 + $0x6a4] sm:$0xf]
  %v476 = vld [vmem:[%s1 + $0x6a8] sm:$0xf]
  %v477 = vld [vmem:[%s1 + $0x6ac] sm:$0xf]
  %v478 = vld [vmem:[%s1 + $0x6b0] sm:$0xf]
  %v479 = vld [vmem:[%s1 + $0x6b4] sm:$0xf]
  %v480 = vld [vmem:[%s1 + $0x6b8] sm:$0xf]
  %v481 = vld [vmem:[%s1 + $0x6bc] sm:$0xf]
  %v482 = vld [vmem:[%s1 + $0x6c0] sm:$0xf]
  %v483 = vld [vmem:[%s1 + $0x6c4] sm:$0xf]
  %v484 = vld [vmem:[%s1 + $0x6c8] sm:$0xf]
  %v485 = vld [vmem:[%s1 + $0x6cc] sm:$0xf]
  %v486 = vld [vmem:[%s1 + $0x6d0] sm:$0xf]
  %v487 = vld [vmem:[%s1 + $0x6d4] sm:$0xf]
  %v488 = vld [vmem:[%s1 + $0x6d8] sm:$0xf]
  %v489 = vld [vmem:[%s1 + $0x6dc] sm:$0xf]
  %v490 = vld [vmem:[%s1 + $0x6e0] sm:$0xf]
  %v491 = vld [vmem:[%s1 + $0x6e4] sm:$0xf]
  %v492 = vld [vmem:[%s1 + $0x6e8] sm:$0xf]
  %v493 = vld [vmem:[%s1 + $0x6ec] sm:$0xf]
  %v494 = vld [vmem:[%s1 + $0x6f0] sm:$0xf]
  %v495 = vld [vmem:[%s1 + $0x6f4] sm:$0xf]
  %v496 = vld [vmem:[%s1 + $0x6f8] sm:$0xf]
  %v497 = vld [vmem:[%s1 + $0x6fc] sm:$0xf]
  %v498 = vld [vmem:[%s1 + $0x700] sm:$0xf]
  %v499 = vld [vmem:[%s1 + $0x704] sm:$0xf]
  %v500 = vld [vmem:[%s1 + $0x708] sm:$0xf]
  %v501 = vld [vmem:[%s1 + $0x70c] sm:$0xf]
  %v502 = vld [vmem:[%s1 + $0x710] sm:$0xf]
  %v503 = vld [vmem:[%s1 + $0x714] sm:$0xf]
  %v504 = vld [vmem:[%s1 + $0x718] sm:$0xf]
  %v505 = vld [vmem:[%s1 + $0x71c] sm:$0xf]
  %v506 = vld [vmem:[%s1 + $0x720] sm:$0xf]
  %v507 = vld [vmem:[%s1 + $0x724] sm:$0xf]
  %v508 = vld [vmem:[%s1 + $0x728] sm:$0xf]
  %v509 = vld [vmem:[%s1 + $0x72c] sm:$0xf]
  %v510 = vld [vmem:[%s1 + $0x730] sm:$0xf]
  %v511 = vld [vmem:[%s1 + $0x734] sm:$0xf]
  %v512 = vld [vmem:[%s1 + $0x738] sm:$0xf]
  %v513 = vld [vmem:[%s1 + $0x73c] sm:$0xf]
  %v514 = vld [vmem:[%s1 + $0x740] sm:$0xf]
  %v515 = vld [vmem:[%s1 + $0x744] sm:$0xf]
  %v516 = vld [vmem:[%s1 + $0x748] sm:$0xf]
  %v517 = vld [vmem:[%s1 + $0x74c] sm:$0xf]
  %v518 = vld [vmem:[%s1 + $0x750] sm:$0xf]
  %v519 = vld [vmem:[%s1 + $0x754] sm:$0xf]
  %v520 = vld [vmem:[%s1 + $0x758] sm:$0xf]
  %v521 = vld [vmem:[%s1 + $0x75c] sm:$0xf]
  %v522 = vld [vmem:[%s1 + $0x760] sm:$0xf]
  %v523 = vld [vmem:[%s1 + $0x764] sm:$0xf]
  %v524 = vld [vmem:[%s1 + $0x768] sm:$0xf]
  %v525 = vld [vmem:[%s1 + $0x76c] sm:$0xf]
  %v526 = vld [vmem:[%s1 + $0x770] sm:$0xf]
  %v527 = vld [vmem:[%s1 + $0x774] sm:$0xf]
  %v528 = vld [vmem:[%s1 + $0x778] sm:$0xf]
  %v529 = vld [vmem:[%s1 + $0x77c] sm:$0xf]
  %v530 = vld [vmem:[%s1 + $0x780] sm:$0xf]
  %v531 = vld [vmem:[%s1 + $0x784] sm:$0xf]
  %v532 = vld [vmem:[%s1 + $0x788] sm:$0xf]
  %v533 = vld [vmem:[%s1 + $0x78c] sm:$0xf]
  %v534 = vld [vmem:[%s1 + $0x790] sm:$0xf]
  %v535 = vld [vmem:[%s1 + $0x794] sm:$0xf]
  %v536 = vld [vmem:[%s1 + $0x798] sm:$0xf]
  %v537 = vld [vmem:[%s1 + $0x79c] sm:$0xf]
  %v538 = vld [vmem:[%s1 + $0x7a0] sm:$0xf]
  %v539 = vld [vmem:[%s1 + $0x7a4] sm:$0xf]
  %v540 = vld [vmem:[%s1 + $0x7a8] sm:$0xf]
  %v541 = vld [vmem:[%s1 + $0x7ac] sm:$0xf]
  %v542 = vld [vmem:[%s1 + $0x7b0] sm:$0xf]
  %v543 = vld [vmem:[%s1 + $0x7b4] sm:$0xf]
  %v544 = vld [vmem:[%s1 + $0x7b8] sm:$0xf]
  %v545 = vld [vmem:[%s1 + $0x7bc] sm:$0xf]
  %v546 = vld [vmem:[%s1 + $0x7c0] sm:$0xf]
  %v547 = vld [vmem:[%s1 + $0x7c4] sm:$0xf]
  %v548 = vld [vmem:[%s1 + $0x7c8] sm:$0xf]
  %v549 = vld [vmem:[%s1 + $0x7cc] sm:$0xf]
  %v550 = vld [vmem:[%s1 + $0x7d0] sm:$0xf]
  %v551 = vld [vmem:[%s1 + $0x7d4] sm:$0xf]
  %v552 = vld [vmem:[%s1 + $0x7d8] sm:$0xf]
  %v553 = vld [vmem:[%s1 + $0x7dc] sm:$0xf]
  %v554 = vld [vmem:[%s1 + $0x7e0] sm:$0xf]
  %v555 = vld [vmem:[%s1 + $0x7e4] sm:$0xf]
  %v556 = vld [vmem:[%s1 + $0x7e8] sm:$0xf]
  %v557 = vld [vmem:[%s1 + $0x7ec] sm:$0xf]
  %v558 = vld [vmem:[%s1 + $0x7f0] sm:$0xf]
  %v559 = vld [vmem:[%s1 + $0x7f4] sm:$0xf]
  %v560 = vld [vmem:[%s1 + $0x7f8] sm:$0xf]
  %v561 = vld [vmem:[%s1 + $0x7fc] sm:$0xf]
  %v562 = vld [vmem:[%s1 + $0x800] sm:$0xf]
  %v563 = vld [vmem:[%s1 + $0x804] sm:$0xf]
  %v564 = vld [vmem:[%s1 + $0x808] sm:$0xf]
  %v565 = vld [vmem:[%s1 + $0x80c] sm:$0xf]
  %v566 = vld [vmem:[%s1 + $0x810] sm:$0xf]
  %v567 = vld [vmem:[%s1 + $0x814] sm:$0xf]
  %v568 = vld [vmem:[%s1 + $0x818] sm:$0xf]
  %v569 = vld [vmem:[%s1 + $0x81c] sm:$0xf]
  %v570 = vld [vmem:[%s1 + $0x820] sm:$0xf]
  %v571 = vld [vmem:[%s1 + $0x824] sm:$0xf]
  %v572 = vld [vmem:[%s1 + $0x828] sm:$0xf]
  %v573 = vld [vmem:[%s1 + $0x82c] sm:$0xf]
  %v574 = vld [vmem:[%s1 + $0x830] sm:$0xf]
  %v575 = vld [vmem:[%s1 + $0x834] sm:$0xf]
  %v576 = vld [vmem:[%s1 + $0x838] sm:$0xf]
  %v577 = vld [vmem:[%s1 + $0x83c] sm:$0xf]
  %v578 = vld [vmem:[%s1 + $0x840] sm:$0xf]
  %v579 = vld [vmem:[%s1 + $0x844] sm:$0xf]
  %v580 = vld [vmem:[%s1 + $0x848] sm:$0xf]
  %v581 = vld [vmem:[%s1 + $0x84c] sm:$0xf]
  %v582 = vld [vmem:[%s1 + $0x850] sm:$0xf]
  %v583 = vld [vmem:[%s1 + $0x854] sm:$0xf]
  %v584 = vld [vmem:[%s1 + $0x858] sm:$0xf]
  %v585 = vld [vmem:[%s1 + $0x85c] sm:$0xf]
  %v586 = vld [vmem:[%s1 + $0x860] sm:$0xf]
  %v587 = vld [vmem:[%s1 + $0x864] sm:$0xf]
  %v588 = vld [vmem:[%s1 + $0x868] sm:$0xf]
  %v589 = vld [vmem:[%s1 + $0x86c] sm:$0xf]
  %v590 = vld [vmem:[%s1 + $0x870] sm:$0xf]
  %v591 = vld [vmem:[%s1 + $0x874] sm:$0xf]
  %v592 = vld [vmem:[%s1 + $0x878] sm:$0xf]
  %v593 = vld [vmem:[%s1 + $0x87c] sm:$0xf]
  %v594 = vld [vmem:[%s1 + $0x880] sm:$0xf]
  %v595 = vld [vmem:[%s1 + $0x884] sm:$0xf]
  %v596 = vld [vmem:[%s1 + $0x888] sm:$0xf]
  %v597 = vld [vmem:[%s1 + $0x88c] sm:$0xf]
  %v598 = vld [vmem:[%s1 + $0x890] sm:$0xf]
  %v599 = vld [vmem:[%s1 + $0x894] sm:$0xf]
  %v600 = vld [vmem:[%s1 + $0x898] sm:$0xf]
  %v601 = vld [vmem:[%s1 + $0x89c] sm:$0xf]
  %v602 = vld [vmem:[%s1 + $0x8a0] sm:$0xf]
  %v603 = vld [vmem:[%s1 + $0x8a4] sm:$0xf]
  %v604 = vld [vmem:[%s1 + $0x8a8] sm:$0xf]
  %v605 = vld [vmem:[%s1 + $0x8ac] sm:$0xf]
  %v606 = vld [vmem:[%s1 + $0x8b0] sm:$0xf]
  %v607 = vld [vmem:[%s1 + $0x8b4] sm:$0xf]
  %v608 = vld [vmem:[%s1 + $0x8b8] sm:$0xf]
  %v609 = vld [vmem:[%s1 + $0x8bc] sm:$0xf]
  %v610 = vld [vmem:[%s1 + $0x8c0] sm:$0xf]
  %v611 = vld [vmem:[%s1 + $0x8c4] sm:$0xf]
  %v612 = vld [vmem:[%s1 + $0x8c8] sm:$0xf]
  %v613 = vld [vmem:[%s1 + $0x8cc] sm:$0xf]
  %v614 = vld [vmem:[%s1 + $0x8d0] sm:$0xf]
  %v615 = vld [vmem:[%s1 + $0x8d4] sm:$0xf]
  %v616 = vld [vmem:[%s1 + $0x8d8] sm:$0xf]
  %v617 = vld [vmem:[%s1 + $0x8dc] sm:$0xf]
  %v618 = vld [vmem:[%s1 + $0x8e0] sm:$0xf]
  %v619 = vld [vmem:[%s1 + $0x8e4] sm:$0xf]
  %v620 = vld [vmem:[%s1 + $0x8e8] sm:$0xf]
  %v621 = vld [vmem:[%s1 + $0x8ec] sm:$0xf]
  %v622 = vld [vmem:[%s1 + $0x8f0] sm:$0xf]
  %v623 = vld [vmem:[%s1 + $0x8f4] sm:$0xf]
  %v624 = vld [vmem:[%s1 + $0x8f8] sm:$0xf]
  %v625 = vld [vmem:[%s1 + $0x8fc] sm:$0xf]
  %v626 = vld [vmem:[%s1 + $0x900] sm:$0xf]
  %v627 = vld [vmem:[%s1 + $0x904] sm:$0xf]
  %v628 = vld [vmem:[%s1 + $0x908] sm:$0xf]
  %v629 = vld [vmem:[%s1 + $0x90c] sm:$0xf]
  %v630 = vld [vmem:[%s1 + $0x910] sm:$0xf]
  %v631 = vld [vmem:[%s1 + $0x914] sm:$0xf]
  %v632 = vld [vmem:[%s1 + $0x918] sm:$0xf]
  %v633 = vld [vmem:[%s1 + $0x91c] sm:$0xf]
  %v634 = vld [vmem:[%s1 + $0x920] sm:$0xf]
  %v635 = vld [vmem:[%s1 + $0x924] sm:$0xf]
  %v636 = vld [vmem:[%s1 + $0x928] sm:$0xf]
  %v637 = vld [vmem:[%s1 + $0x92c] sm:$0xf]
  %v638 = vld [vmem:[%s1 + $0x930] sm:$0xf]
  %v639 = vld [vmem:[%s1 + $0x934] sm:$0xf]
  %v640 = vld [vmem:[%s1 + $0x938] sm:$0xf]
  %v641 = vld [vmem:[%s1 + $0x93c] sm:$0xf]
  %v642 = vld [vmem:[%s1 + $0x940] sm:$0xf]
  %v643 = vld [vmem:[%s1 + $0x944] sm:$0xf]
  %v644 = vld [vmem:[%s1 + $0x948] sm:$0xf]
  %v645 = vld [vmem:[%s1 + $0x94c] sm:$0xf]
  %v646 = vld [vmem:[%s1 + $0x950] sm:$0xf]
  %v647 = vld [vmem:[%s1 + $0x954] sm:$0xf]
  %v648 = vld [vmem:[%s1 + $0x958] sm:$0xf]
  %v649 = vld [vmem:[%s1 + $0x95c] sm:$0xf]
  %v650 = vld [vmem:[%s1 + $0x960] sm:$0xf]
  %v651 = vld [vmem:[%s1 + $0x964] sm:$0xf]
  %v652 = vld [vmem:[%s1 + $0x968] sm:$0xf]
  %v653 = vld [vmem:[%s1 + $0x96c] sm:$0xf]
  %v654 = vld [vmem:[%s1 + $0x970] sm:$0xf]
  %v655 = vld [vmem:[%s1 + $0x974] sm:$0xf]
  %v656 = vld [vmem:[%s1 + $0x978] sm:$0xf]
  %v657 = vld [vmem:[%s1 + $0x97c] sm:$0xf]
  %v658 = vld [vmem:[%s1 + $0x980] sm:$0xf]
  %v659 = vld [vmem:[%s1 + $0x984] sm:$0xf]
  %v660 = vld [vmem:[%s1 + $0x988] sm:$0xf]
  %v661 = vld [vmem:[%s1 + $0x98c] sm:$0xf]
  %v662 = vld [vmem:[%s1 + $0x990] sm:$0xf]
  %v663 = vld [vmem:[%s1 + $0x994] sm:$0xf]
  %v664 = vld [vmem:[%s1 + $0x998] sm:$0xf]
  %v665 = vld [vmem:[%s1 + $0x99c] sm:$0xf]
  %v666 = vld [vmem:[%s1 + $0x9a0] sm:$0xf]
  %v667 = vld [vmem:[%s1 + $0x9a4] sm:$0xf]
  %v668 = vld [vmem:[%s1 + $0x9a8] sm:$0xf]
  %v669 = vld [vmem:[%s1 + $0x9ac] sm:$0xf]
  %v670 = vld [vmem:[%s1 + $0x9b0] sm:$0xf]
  %v671 = vld [vmem:[%s1 + $0x9b4] sm:$0xf]
  %v672 = vld [vmem:[%s1 + $0x9b8] sm:$0xf]
  %v673 = vld [vmem:[%s1 + $0x9bc] sm:$0xf]
  %v674 = vld [vmem:[%s1 + $0x9c0] sm:$0xf]
  %v675 = vld [vmem:[%s1 + $0x9c4] sm:$0xf]
  %v676 = vld [vmem:[%s1 + $0x9c8] sm:$0xf]
  %v677 = vld [vmem:[%s1 + $0x9cc] sm:$0xf]
  %v678 = vld [vmem:[%s1 + $0x9d0] sm:$0xf]
  %v679 = vld [vmem:[%s1 + $0x9d4] sm:$0xf]
  %v680 = vld [vmem:[%s1 + $0x9d8] sm:$0xf]
  %v681 = vld [vmem:[%s1 + $0x9dc] sm:$0xf]
  %v682 = vld [vmem:[%s1 + $0x9e0] sm:$0xf]
  %v683 = vld [vmem:[%s1 + $0x9e4] sm:$0xf]
  %v684 = vld [vmem:[%s1 + $0x9e8] sm:$0xf]
  %v685 = vld [vmem:[%s1 + $0x9ec] sm:$0xf]
  %v686 = vld [vmem:[%s1 + $0x9f0] sm:$0xf]
  %v687 = vld [vmem:[%s1 + $0x9f4] sm:$0xf]
  %v688 = vld [vmem:[%s1 + $0x9f8] sm:$0xf]
  %v689 = vld [vmem:[%s1 + $0x9fc] sm:$0xf]
  %v690 = vld [vmem:[%s1 + $0xa00] sm:$0xf]
  %v691 = vld [vmem:[%s1 + $0xa04] sm:$0xf]
  %v692 = vld [vmem:[%s1 + $0xa08] sm:$0xf]
  %v693 = vld [vmem:[%s1 + $0xa0c] sm:$0xf]
  %v694 = vld [vmem:[%s1 + $0xa10] sm:$0xf]
  %v695 = vld [vmem:[%s1 + $0xa14] sm:$0xf]
  %v696 = vld [vmem:[%s1 + $0xa18] sm:$0xf]
  %v697 = vld [vmem:[%s1 + $0xa1c] sm:$0xf]
  %v698 = vld [vmem:[%s1 + $0xa20] sm:$0xf]
  %v699 = vld [vmem:[%s1 + $0xa24] sm:$0xf]
  %v700 = vld [vmem:[%s1 + $0xa28] sm:$0xf]
  %v701 = vld [vmem:[%s1 + $0xa2c] sm:$0xf]
  %v702 = vld [vmem:[%s1 + $0xa30] sm:$0xf]
  %v703 = vld [vmem:[%s1 + $0xa34] sm:$0xf]
  %v704 = vld [vmem:[%s1 + $0xa38] sm:$0xf]
  %v705 = vld [vmem:[%s1 + $0xa3c] sm:$0xf]
  %v706 = vld [vmem:[%s2] sm:$0xff]
  %v707 = vperm.slane %v706, 0
  %v729 = vunpack.c.l.b16 %v29
  %v730 = vunpack.c.h.b16 %v29
  %v731 = vunpack.c.l.b16 %v30
  %v732 = vunpack.c.h.b16 %v30
  %v733 = vunpack.c.l.b16 %v31
  %v734 = vunpack.c.h.b16 %v31
  %v735 = vunpack.c.l.b16 %v32
  %v736 = vunpack.c.h.b16 %v32
  %v737 = vunpack.c.l.b16 %v33
  %v738 = vunpack.c.h.b16 %v33
  %v739 = vunpack.c.l.b16 %v34
  %v740 = vunpack.c.h.b16 %v34
  %v741 = vunpack.c.l.b16 %v35
  %v742 = vunpack.c.h.b16 %v35
  %v743 = vunpack.c.l.b16 %v36
  %v744 = vunpack.c.h.b16 %v36
  %v745 = vunpack.c.l.b16 %v37
  %v746 = vunpack.c.h.b16 %v37
  %v747 = vunpack.c.l.b16 %v38
  %v748 = vunpack.c.h.b16 %v38
  %v749 = vunpack.c.l.b16 %v39
  %v750 = vunpack.c.h.b16 %v39
  %v751 = vunpack.c.l.b16 %v40
  %v752 = vunpack.c.h.b16 %v40
  %v753 = vunpack.c.l.b16 %v41
  %v754 = vunpack.c.h.b16 %v41
  %v755 = vunpack.c.l.b16 %v42
  %v756 = vunpack.c.h.b16 %v42
  %v757 = vunpack.c.l.b16 %v43
  %v758 = vunpack.c.h.b16 %v43
  %v759 = vunpack.c.l.b16 %v44
  %v760 = vunpack.c.h.b16 %v44
  %v761 = vunpack.c.l.b16 %v45
  %v762 = vunpack.c.h.b16 %v45
  %v763 = vunpack.c.l.b16 %v46
  %v764 = vunpack.c.h.b16 %v46
  %v765 = vunpack.c.l.b16 %v47
  %v766 = vunpack.c.h.b16 %v47
  %v767 = vunpack.c.l.b16 %v48
  %v768 = vunpack.c.h.b16 %v48
  %v769 = vunpack.c.l.b16 %v49
  %v770 = vpack.c.b16 %v729, %v729
  %v771 = vpack.c.b16 %v730, %v730
  %v772 = vpack.c.b16 %v731, %v731
  %v773 = vpack.c.b16 %v732, %v732
  %v774 = vpack.c.b16 %v733, %v733
  %v775 = vpack.c.b16 %v734, %v734
  %v776 = vpack.c.b16 %v735, %v735
  %v777 = vpack.c.b16 %v736, %v736
  %v778 = vpack.c.b16 %v737, %v737
  %v779 = vpack.c.b16 %v738, %v738
  %v780 = vpack.c.b16 %v739, %v739
  %v781 = vpack.c.b16 %v740, %v740
  %v782 = vpack.c.b16 %v741, %v741
  %v783 = vpack.c.b16 %v742, %v742
  %v784 = vpack.c.b16 %v743, %v743
  %v785 = vpack.c.b16 %v744, %v744
  %v786 = vpack.c.b16 %v745, %v745
  %v787 = vpack.c.b16 %v746, %v746
  %v788 = vpack.c.b16 %v747, %v747
  %v789 = vpack.c.b16 %v748, %v748
  %v790 = vpack.c.b16 %v749, %v749
  %v791 = vpack.c.b16 %v750, %v750
  %v792 = vpack.c.b16 %v751, %v751
  %v793 = vpack.c.b16 %v752, %v752
  %v794 = vpack.c.b16 %v753, %v753
  %v795 = vpack.c.b16 %v754, %v754
  %v796 = vpack.c.b16 %v755, %v755
  %v797 = vpack.c.b16 %v756, %v756
  %v798 = vpack.c.b16 %v757, %v757
  %v799 = vpack.c.b16 %v758, %v758
  %v800 = vpack.c.b16 %v759, %v759
  %v801 = vpack.c.b16 %v760, %v760
  %v802 = vpack.c.b16 %v761, %v761
  %v803 = vpack.c.b16 %v762, %v762
  %v804 = vpack.c.b16 %v763, %v763
  %v805 = vpack.c.b16 %v764, %v764
  %v806 = vpack.c.b16 %v765, %v765
  %v807 = vpack.c.b16 %v766, %v766
  %v808 = vpack.c.b16 %v767, %v767
  %v809 = vpack.c.b16 %v768, %v768
  %v810 = vpack.c.b16 %v769, %v769
  %v1508 = vunpack.c.l.b16 %v50
  %v1509 = vunpack.c.l.b16 %v51
  %v1510 = vunpack.c.l.b16 %v52
  %v1511 = vunpack.c.l.b16 %v53
  %v1512 = vunpack.c.l.b16 %v54
  %v1513 = vunpack.c.l.b16 %v55
  %v1514 = vunpack.c.l.b16 %v56
  %v1515 = vunpack.c.l.b16 %v57
  %v1516 = vunpack.c.l.b16 %v58
  %v1517 = vunpack.c.l.b16 %v59
  %v1518 = vunpack.c.l.b16 %v60
  %v1519 = vunpack.c.l.b16 %v61
  %v1520 = vunpack.c.l.b16 %v62
  %v1521 = vunpack.c.l.b16 %v63
  %v1522 = vunpack.c.l.b16 %v64
  %v1523 = vunpack.c.l.b16 %v65
  %v1524 = vunpack.c.l.b16 %v66
  %v1525 = vunpack.c.l.b16 %v67
  %v1526 = vunpack.c.l.b16 %v68
  %v1527 = vunpack.c.l.b16 %v69
  %v1528 = vunpack.c.l.b16 %v70
  %v1529 = vunpack.c.l.b16 %v71
  %v1530 = vunpack.c.l.b16 %v72
  %v1531 = vunpack.c.l.b16 %v73
  %v1532 = vunpack.c.l.b16 %v74
  %v1533 = vunpack.c.l.b16 %v75
  %v1534 = vunpack.c.l.b16 %v76
  %v1535 = vunpack.c.l.b16 %v77
  %v1536 = vunpack.c.l.b16 %v78
  %v1537 = vunpack.c.l.b16 %v79
  %v1538 = vunpack.c.l.b16 %v80
  %v1539 = vunpack.c.l.b16 %v81
  %v1540 = vunpack.c.l.b16 %v82
  %v1541 = vunpack.c.l.b16 %v83
  %v1542 = vunpack.c.l.b16 %v84
  %v1543 = vunpack.c.l.b16 %v85
  %v1544 = vunpack.c.l.b16 %v86
  %v1545 = vunpack.c.l.b16 %v87
  %v1546 = vunpack.c.l.b16 %v88
  %v1547 = vunpack.c.l.b16 %v89
  %v1548 = vunpack.c.l.b16 %v90
  %v1549 = vunpack.c.l.b16 %v91
  %v1550 = vunpack.c.l.b16 %v92
  %v1551 = vunpack.c.l.b16 %v93
  %v1552 = vunpack.c.l.b16 %v94
  %v1553 = vunpack.c.l.b16 %v95
  %v1554 = vunpack.c.l.b16 %v96
  %v1555 = vunpack.c.l.b16 %v97
  %v1556 = vunpack.c.l.b16 %v98
  %v1557 = vunpack.c.l.b16 %v99
  %v1558 = vunpack.c.l.b16 %v100
  %v1559 = vunpack.c.l.b16 %v101
  %v1560 = vunpack.c.l.b16 %v102
  %v1561 = vunpack.c.l.b16 %v103
  %v1562 = vunpack.c.l.b16 %v104
  %v1563 = vunpack.c.l.b16 %v105
  %v1564 = vunpack.c.l.b16 %v106
  %v1565 = vunpack.c.l.b16 %v107
  %v1566 = vunpack.c.l.b16 %v108
  %v1567 = vunpack.c.l.b16 %v109
  %v1568 = vunpack.c.l.b16 %v110
  %v1569 = vunpack.c.l.b16 %v111
  %v1570 = vunpack.c.l.b16 %v112
  %v1571 = vunpack.c.l.b16 %v113
  %v1572 = vunpack.c.l.b16 %v114
  %v1573 = vunpack.c.l.b16 %v115
  %v1574 = vunpack.c.l.b16 %v116
  %v1575 = vunpack.c.l.b16 %v117
  %v1576 = vunpack.c.l.b16 %v118
  %v1577 = vunpack.c.l.b16 %v119
  %v1578 = vunpack.c.l.b16 %v120
  %v1579 = vunpack.c.l.b16 %v121
  %v1580 = vunpack.c.l.b16 %v122
  %v1581 = vunpack.c.l.b16 %v123
  %v1582 = vunpack.c.l.b16 %v124
  %v1583 = vunpack.c.l.b16 %v125
  %v1584 = vunpack.c.l.b16 %v126
  %v1585 = vunpack.c.l.b16 %v127
  %v1586 = vunpack.c.l.b16 %v128
  %v1587 = vunpack.c.l.b16 %v129
  %v1588 = vunpack.c.l.b16 %v130
  %v1589 = vunpack.c.l.b16 %v131
  %v1590 = vunpack.c.l.b16 %v132
  %v1591 = vunpack.c.l.b16 %v133
  %v1592 = vunpack.c.l.b16 %v134
  %v1593 = vunpack.c.l.b16 %v135
  %v1594 = vunpack.c.l.b16 %v136
  %v1595 = vunpack.c.l.b16 %v137
  %v1596 = vunpack.c.l.b16 %v138
  %v1597 = vunpack.c.l.b16 %v139
  %v1598 = vunpack.c.l.b16 %v140
  %v1599 = vunpack.c.l.b16 %v141
  %v1600 = vunpack.c.l.b16 %v142
  %v1601 = vunpack.c.l.b16 %v143
  %v1602 = vunpack.c.l.b16 %v144
  %v1603 = vunpack.c.l.b16 %v145
  %v1604 = vunpack.c.l.b16 %v146
  %v1605 = vunpack.c.l.b16 %v147
  %v1606 = vunpack.c.l.b16 %v148
  %v1607 = vunpack.c.l.b16 %v149
  %v1608 = vunpack.c.l.b16 %v150
  %v1609 = vunpack.c.l.b16 %v151
  %v1610 = vunpack.c.l.b16 %v152
  %v1611 = vunpack.c.l.b16 %v153
  %v1612 = vunpack.c.l.b16 %v154
  %v1613 = vunpack.c.l.b16 %v155
  %v1614 = vunpack.c.l.b16 %v156
  %v1615 = vunpack.c.l.b16 %v157
  %v1616 = vunpack.c.l.b16 %v158
  %v1617 = vunpack.c.l.b16 %v159
  %v1618 = vunpack.c.l.b16 %v160
  %v1619 = vunpack.c.l.b16 %v161
  %v1620 = vunpack.c.l.b16 %v162
  %v1621 = vunpack.c.l.b16 %v163
  %v1622 = vunpack.c.l.b16 %v164
  %v1623 = vunpack.c.l.b16 %v165
  %v1624 = vunpack.c.l.b16 %v166
  %v1625 = vunpack.c.l.b16 %v167
  %v1626 = vunpack.c.l.b16 %v168
  %v1627 = vunpack.c.l.b16 %v169
  %v1628 = vunpack.c.l.b16 %v170
  %v1629 = vunpack.c.l.b16 %v171
  %v1630 = vunpack.c.l.b16 %v172
  %v1631 = vunpack.c.l.b16 %v173
  %v1632 = vunpack.c.l.b16 %v174
  %v1633 = vunpack.c.l.b16 %v175
  %v1634 = vunpack.c.l.b16 %v176
  %v1635 = vunpack.c.l.b16 %v177
  %v1636 = vunpack.c.l.b16 %v178
  %v1637 = vunpack.c.l.b16 %v179
  %v1638 = vunpack.c.l.b16 %v180
  %v1639 = vunpack.c.l.b16 %v181
  %v1640 = vunpack.c.l.b16 %v182
  %v1641 = vunpack.c.l.b16 %v183
  %v1642 = vunpack.c.l.b16 %v184
  %v1643 = vunpack.c.l.b16 %v185
  %v1644 = vunpack.c.l.b16 %v186
  %v1645 = vunpack.c.l.b16 %v187
  %v1646 = vunpack.c.l.b16 %v188
  %v1647 = vunpack.c.l.b16 %v189
  %v1648 = vunpack.c.l.b16 %v190
  %v1649 = vunpack.c.l.b16 %v191
  %v1650 = vunpack.c.l.b16 %v192
  %v1651 = vunpack.c.l.b16 %v193
  %v1652 = vunpack.c.l.b16 %v194
  %v1653 = vunpack.c.l.b16 %v195
  %v1654 = vunpack.c.l.b16 %v196
  %v1655 = vunpack.c.l.b16 %v197
  %v1656 = vunpack.c.l.b16 %v198
  %v1657 = vunpack.c.l.b16 %v199
  %v1658 = vunpack.c.l.b16 %v200
  %v1659 = vunpack.c.l.b16 %v201
  %v1660 = vunpack.c.l.b16 %v202
  %v1661 = vunpack.c.l.b16 %v203
  %v1662 = vunpack.c.l.b16 %v204
  %v1663 = vunpack.c.l.b16 %v205
  %v1664 = vunpack.c.l.b16 %v206
  %v1665 = vunpack.c.l.b16 %v207
  %v1666 = vunpack.c.l.b16 %v208
  %v1667 = vunpack.c.l.b16 %v209
  %v1668 = vunpack.c.l.b16 %v210
  %v1669 = vunpack.c.l.b16 %v211
  %v1670 = vunpack.c.l.b16 %v212
  %v1671 = vunpack.c.l.b16 %v213
  %v1672 = vunpack.c.l.b16 %v214
  %v1673 = vunpack.c.l.b16 %v215
  %v1674 = vunpack.c.l.b16 %v216
  %v1675 = vunpack.c.l.b16 %v217
  %v1676 = vunpack.c.l.b16 %v218
  %v1677 = vunpack.c.l.b16 %v219
  %v1678 = vunpack.c.l.b16 %v220
  %v1679 = vunpack.c.l.b16 %v221
  %v1680 = vunpack.c.l.b16 %v222
  %v1681 = vunpack.c.l.b16 %v223
  %v1682 = vunpack.c.l.b16 %v224
  %v1683 = vunpack.c.l.b16 %v225
  %v1684 = vunpack.c.l.b16 %v226
  %v1685 = vunpack.c.l.b16 %v227
  %v1686 = vunpack.c.l.b16 %v228
  %v1687 = vunpack.c.l.b16 %v229
  %v1688 = vunpack.c.l.b16 %v230
  %v1689 = vunpack.c.l.b16 %v231
  %v1690 = vunpack.c.l.b16 %v232
  %v1691 = vunpack.c.l.b16 %v233
  %v1692 = vunpack.c.l.b16 %v234
  %v1693 = vunpack.c.l.b16 %v235
  %v1694 = vunpack.c.l.b16 %v236
  %v1695 = vunpack.c.l.b16 %v237
  %v1696 = vunpack.c.l.b16 %v238
  %v1697 = vunpack.c.l.b16 %v239
  %v1698 = vunpack.c.l.b16 %v240
  %v1699 = vunpack.c.l.b16 %v241
  %v1700 = vunpack.c.l.b16 %v242
  %v1701 = vunpack.c.l.b16 %v243
  %v1702 = vunpack.c.l.b16 %v244
  %v1703 = vunpack.c.l.b16 %v245
  %v1704 = vunpack.c.l.b16 %v246
  %v1705 = vunpack.c.l.b16 %v247
  %v1706 = vunpack.c.l.b16 %v248
  %v1707 = vunpack.c.l.b16 %v249
  %v1708 = vunpack.c.l.b16 %v250
  %v1709 = vunpack.c.l.b16 %v251
  %v1710 = vunpack.c.l.b16 %v252
  %v1711 = vunpack.c.l.b16 %v253
  %v1712 = vunpack.c.l.b16 %v254
  %v1713 = vunpack.c.l.b16 %v255
  %v1714 = vunpack.c.l.b16 %v256
  %v1715 = vunpack.c.l.b16 %v257
  %v1716 = vunpack.c.l.b16 %v258
  %v1717 = vunpack.c.l.b16 %v259
  %v1718 = vunpack.c.l.b16 %v260
  %v1719 = vunpack.c.l.b16 %v261
  %v1720 = vunpack.c.l.b16 %v262
  %v1721 = vunpack.c.l.b16 %v263
  %v1722 = vunpack.c.l.b16 %v264
  %v1723 = vunpack.c.l.b16 %v265
  %v1724 = vunpack.c.l.b16 %v266
  %v1725 = vunpack.c.l.b16 %v267
  %v1726 = vunpack.c.l.b16 %v268
  %v1727 = vunpack.c.l.b16 %v269
  %v1728 = vunpack.c.l.b16 %v270
  %v1729 = vunpack.c.l.b16 %v271
  %v1730 = vunpack.c.l.b16 %v272
  %v1731 = vunpack.c.l.b16 %v273
  %v1732 = vunpack.c.l.b16 %v274
  %v1733 = vunpack.c.l.b16 %v275
  %v1734 = vunpack.c.l.b16 %v276
  %v1735 = vunpack.c.l.b16 %v277
  %v1736 = vunpack.c.l.b16 %v278
  %v1737 = vunpack.c.l.b16 %v279
  %v1738 = vunpack.c.l.b16 %v280
  %v1739 = vunpack.c.l.b16 %v281
  %v1740 = vunpack.c.l.b16 %v282
  %v1741 = vunpack.c.l.b16 %v283
  %v1742 = vunpack.c.l.b16 %v284
  %v1743 = vunpack.c.l.b16 %v285
  %v1744 = vunpack.c.l.b16 %v286
  %v1745 = vunpack.c.l.b16 %v287
  %v1746 = vunpack.c.l.b16 %v288
  %v1747 = vunpack.c.l.b16 %v289
  %v1748 = vunpack.c.l.b16 %v290
  %v1749 = vunpack.c.l.b16 %v291
  %v1750 = vunpack.c.l.b16 %v292
  %v1751 = vunpack.c.l.b16 %v293
  %v1752 = vunpack.c.l.b16 %v294
  %v1753 = vunpack.c.l.b16 %v295
  %v1754 = vunpack.c.l.b16 %v296
  %v1755 = vunpack.c.l.b16 %v297
  %v1756 = vunpack.c.l.b16 %v298
  %v1757 = vunpack.c.l.b16 %v299
  %v1758 = vunpack.c.l.b16 %v300
  %v1759 = vunpack.c.l.b16 %v301
  %v1760 = vunpack.c.l.b16 %v302
  %v1761 = vunpack.c.l.b16 %v303
  %v1762 = vunpack.c.l.b16 %v304
  %v1763 = vunpack.c.l.b16 %v305
  %v1764 = vunpack.c.l.b16 %v306
  %v1765 = vunpack.c.l.b16 %v307
  %v1766 = vunpack.c.l.b16 %v308
  %v1767 = vunpack.c.l.b16 %v309
  %v1768 = vunpack.c.l.b16 %v310
  %v1769 = vunpack.c.l.b16 %v311
  %v1770 = vunpack.c.l.b16 %v312
  %v1771 = vunpack.c.l.b16 %v313
  %v1772 = vunpack.c.l.b16 %v314
  %v1773 = vunpack.c.l.b16 %v315
  %v1774 = vunpack.c.l.b16 %v316
  %v1775 = vunpack.c.l.b16 %v317
  %v1776 = vunpack.c.l.b16 %v318
  %v1777 = vunpack.c.l.b16 %v319
  %v1778 = vunpack.c.l.b16 %v320
  %v1779 = vunpack.c.l.b16 %v321
  %v1780 = vunpack.c.l.b16 %v322
  %v1781 = vunpack.c.l.b16 %v323
  %v1782 = vunpack.c.l.b16 %v324
  %v1783 = vunpack.c.l.b16 %v325
  %v1784 = vunpack.c.l.b16 %v326
  %v1785 = vunpack.c.l.b16 %v327
  %v1786 = vunpack.c.l.b16 %v328
  %v1787 = vunpack.c.l.b16 %v329
  %v1788 = vunpack.c.l.b16 %v330
  %v1789 = vunpack.c.l.b16 %v331
  %v1790 = vunpack.c.l.b16 %v332
  %v1791 = vunpack.c.l.b16 %v333
  %v1792 = vunpack.c.l.b16 %v334
  %v1793 = vunpack.c.l.b16 %v335
  %v1794 = vunpack.c.l.b16 %v336
  %v1795 = vunpack.c.l.b16 %v337
  %v1796 = vunpack.c.l.b16 %v338
  %v1797 = vunpack.c.l.b16 %v339
  %v1798 = vunpack.c.l.b16 %v340
  %v1799 = vunpack.c.l.b16 %v341
  %v1800 = vunpack.c.l.b16 %v342
  %v1801 = vunpack.c.l.b16 %v343
  %v1802 = vunpack.c.l.b16 %v344
  %v1803 = vunpack.c.l.b16 %v345
  %v1804 = vunpack.c.l.b16 %v346
  %v1805 = vunpack.c.l.b16 %v347
  %v1806 = vunpack.c.l.b16 %v348
  %v1807 = vunpack.c.l.b16 %v349
  %v1808 = vunpack.c.l.b16 %v350
  %v1809 = vunpack.c.l.b16 %v351
  %v1810 = vunpack.c.l.b16 %v352
  %v1811 = vunpack.c.l.b16 %v353
  %v1812 = vunpack.c.l.b16 %v354
  %v1813 = vunpack.c.l.b16 %v355
  %v1814 = vunpack.c.l.b16 %v356
  %v1815 = vunpack.c.l.b16 %v357
  %v1816 = vunpack.c.l.b16 %v358
  %v1817 = vunpack.c.l.b16 %v359
  %v1818 = vunpack.c.l.b16 %v360
  %v1819 = vunpack.c.l.b16 %v361
  %v1820 = vunpack.c.l.b16 %v362
  %v1821 = vunpack.c.l.b16 %v363
  %v1822 = vunpack.c.l.b16 %v364
  %v1823 = vunpack.c.l.b16 %v365
  %v1824 = vunpack.c.l.b16 %v366
  %v1825 = vunpack.c.l.b16 %v367
  %v1826 = vunpack.c.l.b16 %v368
  %v1827 = vunpack.c.l.b16 %v369
  %v1828 = vunpack.c.l.b16 %v370
  %v1829 = vunpack.c.l.b16 %v371
  %v1830 = vunpack.c.l.b16 %v372
  %v1831 = vunpack.c.l.b16 %v373
  %v1832 = vunpack.c.l.b16 %v374
  %v1833 = vunpack.c.l.b16 %v375
  %v1834 = vunpack.c.l.b16 %v376
  %v1835 = vunpack.c.l.b16 %v377
  %v1836 = vunpack.c.l.b16 %v378
  %v1837 = vunpack.c.l.b16 %v379
  %v1838 = vunpack.c.l.b16 %v380
  %v1839 = vunpack.c.l.b16 %v381
  %v1840 = vunpack.c.l.b16 %v382
  %v1841 = vunpack.c.l.b16 %v383
  %v1842 = vunpack.c.l.b16 %v384
  %v1843 = vunpack.c.l.b16 %v385
  %v1844 = vunpack.c.l.b16 %v386
  %v1845 = vunpack.c.l.b16 %v387
  %v1846 = vunpack.c.l.b16 %v388
  %v1847 = vunpack.c.l.b16 %v389
  %v1848 = vunpack.c.l.b16 %v390
  %v1849 = vunpack.c.l.b16 %v391
  %v1850 = vunpack.c.l.b16 %v392
  %v1851 = vunpack.c.l.b16 %v393
  %v1852 = vunpack.c.l.b16 %v394
  %v1853 = vunpack.c.l.b16 %v395
  %v1854 = vunpack.c.l.b16 %v396
  %v1855 = vunpack.c.l.b16 %v397
  %v1856 = vunpack.c.l.b16 %v398
  %v1857 = vunpack.c.l.b16 %v399
  %v1858 = vunpack.c.l.b16 %v400
  %v1859 = vunpack.c.l.b16 %v401
  %v1860 = vunpack.c.l.b16 %v402
  %v1861 = vunpack.c.l.b16 %v403
  %v1862 = vunpack.c.l.b16 %v404
  %v1863 = vunpack.c.l.b16 %v405
  %v1864 = vunpack.c.l.b16 %v406
  %v1865 = vunpack.c.l.b16 %v407
  %v1866 = vunpack.c.l.b16 %v408
  %v1867 = vunpack.c.l.b16 %v409
  %v1868 = vunpack.c.l.b16 %v410
  %v1869 = vunpack.c.l.b16 %v411
  %v1870 = vunpack.c.l.b16 %v412
  %v1871 = vunpack.c.l.b16 %v413
  %v1872 = vunpack.c.l.b16 %v414
  %v1873 = vunpack.c.l.b16 %v415
  %v1874 = vunpack.c.l.b16 %v416
  %v1875 = vunpack.c.l.b16 %v417
  %v1876 = vunpack.c.l.b16 %v418
  %v1877 = vunpack.c.l.b16 %v419
  %v1878 = vunpack.c.l.b16 %v420
  %v1879 = vunpack.c.l.b16 %v421
  %v1880 = vunpack.c.l.b16 %v422
  %v1881 = vunpack.c.l.b16 %v423
  %v1882 = vunpack.c.l.b16 %v424
  %v1883 = vunpack.c.l.b16 %v425
  %v1884 = vunpack.c.l.b16 %v426
  %v1885 = vunpack.c.l.b16 %v427
  %v1886 = vunpack.c.l.b16 %v428
  %v1887 = vunpack.c.l.b16 %v429
  %v1888 = vunpack.c.l.b16 %v430
  %v1889 = vunpack.c.l.b16 %v431
  %v1890 = vunpack.c.l.b16 %v432
  %v1891 = vunpack.c.l.b16 %v433
  %v1892 = vunpack.c.l.b16 %v434
  %v1893 = vunpack.c.l.b16 %v435
  %v1894 = vunpack.c.l.b16 %v436
  %v1895 = vunpack.c.l.b16 %v437
  %v1896 = vunpack.c.l.b16 %v438
  %v1897 = vunpack.c.l.b16 %v439
  %v1898 = vunpack.c.l.b16 %v440
  %v1899 = vunpack.c.l.b16 %v441
  %v1900 = vunpack.c.l.b16 %v442
  %v1901 = vunpack.c.l.b16 %v443
  %v1902 = vunpack.c.l.b16 %v444
  %v1903 = vunpack.c.l.b16 %v445
  %v1904 = vunpack.c.l.b16 %v446
  %v1905 = vunpack.c.l.b16 %v447
  %v1906 = vunpack.c.l.b16 %v448
  %v1907 = vunpack.c.l.b16 %v449
  %v1908 = vunpack.c.l.b16 %v450
  %v1909 = vunpack.c.l.b16 %v451
  %v1910 = vunpack.c.l.b16 %v452
  %v1911 = vunpack.c.l.b16 %v453
  %v1912 = vunpack.c.l.b16 %v454
  %v1913 = vunpack.c.l.b16 %v455
  %v1914 = vunpack.c.l.b16 %v456
  %v1915 = vunpack.c.l.b16 %v457
  %v1916 = vunpack.c.l.b16 %v458
  %v1917 = vunpack.c.l.b16 %v459
  %v1918 = vunpack.c.l.b16 %v460
  %v1919 = vunpack.c.l.b16 %v461
  %v1920 = vunpack.c.l.b16 %v462
  %v1921 = vunpack.c.l.b16 %v463
  %v1922 = vunpack.c.l.b16 %v464
  %v1923 = vunpack.c.l.b16 %v465
  %v1924 = vunpack.c.l.b16 %v466
  %v1925 = vunpack.c.l.b16 %v467
  %v1926 = vunpack.c.l.b16 %v468
  %v1927 = vunpack.c.l.b16 %v469
  %v1928 = vunpack.c.l.b16 %v470
  %v1929 = vunpack.c.l.b16 %v471
  %v1930 = vunpack.c.l.b16 %v472
  %v1931 = vunpack.c.l.b16 %v473
  %v1932 = vunpack.c.l.b16 %v474
  %v1933 = vunpack.c.l.b16 %v475
  %v1934 = vunpack.c.l.b16 %v476
  %v1935 = vunpack.c.l.b16 %v477
  %v1936 = vunpack.c.l.b16 %v478
  %v1937 = vunpack.c.l.b16 %v479
  %v1938 = vunpack.c.l.b16 %v480
  %v1939 = vunpack.c.l.b16 %v481
  %v1940 = vunpack.c.l.b16 %v482
  %v1941 = vunpack.c.l.b16 %v483
  %v1942 = vunpack.c.l.b16 %v484
  %v1943 = vunpack.c.l.b16 %v485
  %v1944 = vunpack.c.l.b16 %v486
  %v1945 = vunpack.c.l.b16 %v487
  %v1946 = vunpack.c.l.b16 %v488
  %v1947 = vunpack.c.l.b16 %v489
  %v1948 = vunpack.c.l.b16 %v490
  %v1949 = vunpack.c.l.b16 %v491
  %v1950 = vunpack.c.l.b16 %v492
  %v1951 = vunpack.c.l.b16 %v493
  %v1952 = vunpack.c.l.b16 %v494
  %v1953 = vunpack.c.l.b16 %v495
  %v1954 = vunpack.c.l.b16 %v496
  %v1955 = vunpack.c.l.b16 %v497
  %v1956 = vunpack.c.l.b16 %v498
  %v1957 = vunpack.c.l.b16 %v499
  %v1958 = vunpack.c.l.b16 %v500
  %v1959 = vunpack.c.l.b16 %v501
  %v1960 = vunpack.c.l.b16 %v502
  %v1961 = vunpack.c.l.b16 %v503
  %v1962 = vunpack.c.l.b16 %v504
  %v1963 = vunpack.c.l.b16 %v505
  %v1964 = vunpack.c.l.b16 %v506
  %v1965 = vunpack.c.l.b16 %v507
  %v1966 = vunpack.c.l.b16 %v508
  %v1967 = vunpack.c.l.b16 %v509
  %v1968 = vunpack.c.l.b16 %v510
  %v1969 = vunpack.c.l.b16 %v511
  %v1970 = vunpack.c.l.b16 %v512
  %v1971 = vunpack.c.l.b16 %v513
  %v1972 = vunpack.c.l.b16 %v514
  %v1973 = vunpack.c.l.b16 %v515
  %v1974 = vunpack.c.l.b16 %v516
  %v1975 = vunpack.c.l.b16 %v517
  %v1976 = vunpack.c.l.b16 %v518
  %v1977 = vunpack.c.l.b16 %v519
  %v1978 = vunpack.c.l.b16 %v520
  %v1979 = vunpack.c.l.b16 %v521
  %v1980 = vunpack.c.l.b16 %v522
  %v1981 = vunpack.c.l.b16 %v523
  %v1982 = vunpack.c.l.b16 %v524
  %v1983 = vunpack.c.l.b16 %v525
  %v1984 = vunpack.c.l.b16 %v526
  %v1985 = vunpack.c.l.b16 %v527
  %v1986 = vunpack.c.l.b16 %v528
  %v1987 = vunpack.c.l.b16 %v529
  %v1988 = vunpack.c.l.b16 %v530
  %v1989 = vunpack.c.l.b16 %v531
  %v1990 = vunpack.c.l.b16 %v532
  %v1991 = vunpack.c.l.b16 %v533
  %v1992 = vunpack.c.l.b16 %v534
  %v1993 = vunpack.c.l.b16 %v535
  %v1994 = vunpack.c.l.b16 %v536
  %v1995 = vunpack.c.l.b16 %v537
  %v1996 = vunpack.c.l.b16 %v538
  %v1997 = vunpack.c.l.b16 %v539
  %v1998 = vunpack.c.l.b16 %v540
  %v1999 = vunpack.c.l.b16 %v541
  %v2000 = vunpack.c.l.b16 %v542
  %v2001 = vunpack.c.l.b16 %v543
  %v2002 = vunpack.c.l.b16 %v544
  %v2003 = vunpack.c.l.b16 %v545
  %v2004 = vunpack.c.l.b16 %v546
  %v2005 = vunpack.c.l.b16 %v547
  %v2006 = vunpack.c.l.b16 %v548
  %v2007 = vunpack.c.l.b16 %v549
  %v2008 = vunpack.c.l.b16 %v550
  %v2009 = vunpack.c.l.b16 %v551
  %v2010 = vunpack.c.l.b16 %v552
  %v2011 = vunpack.c.l.b16 %v553
  %v2012 = vunpack.c.l.b16 %v554
  %v2013 = vunpack.c.l.b16 %v555
  %v2014 = vunpack.c.l.b16 %v556
  %v2015 = vunpack.c.l.b16 %v557
  %v2016 = vunpack.c.l.b16 %v558
  %v2017 = vunpack.c.l.b16 %v559
  %v2018 = vunpack.c.l.b16 %v560
  %v2019 = vunpack.c.l.b16 %v561
  %v2020 = vunpack.c.l.b16 %v562
  %v2021 = vunpack.c.l.b16 %v563
  %v2022 = vunpack.c.l.b16 %v564
  %v2023 = vunpack.c.l.b16 %v565
  %v2024 = vunpack.c.l.b16 %v566
  %v2025 = vunpack.c.l.b16 %v567
  %v2026 = vunpack.c.l.b16 %v568
  %v2027 = vunpack.c.l.b16 %v569
  %v2028 = vunpack.c.l.b16 %v570
  %v2029 = vunpack.c.l.b16 %v571
  %v2030 = vunpack.c.l.b16 %v572
  %v2031 = vunpack.c.l.b16 %v573
  %v2032 = vunpack.c.l.b16 %v574
  %v2033 = vunpack.c.l.b16 %v575
  %v2034 = vunpack.c.l.b16 %v576
  %v2035 = vunpack.c.l.b16 %v577
  %v2036 = vunpack.c.l.b16 %v578
  %v2037 = vunpack.c.l.b16 %v579
  %v2038 = vunpack.c.l.b16 %v580
  %v2039 = vunpack.c.l.b16 %v581
  %v2040 = vunpack.c.l.b16 %v582
  %v2041 = vunpack.c.l.b16 %v583
  %v2042 = vunpack.c.l.b16 %v584
  %v2043 = vunpack.c.l.b16 %v585
  %v2044 = vunpack.c.l.b16 %v586
  %v2045 = vunpack.c.l.b16 %v587
  %v2046 = vunpack.c.l.b16 %v588
  %v2047 = vunpack.c.l.b16 %v589
  %v2048 = vunpack.c.l.b16 %v590
  %v2049 = vunpack.c.l.b16 %v591
  %v2050 = vunpack.c.l.b16 %v592
  %v2051 = vunpack.c.l.b16 %v593
  %v2052 = vunpack.c.l.b16 %v594
  %v2053 = vunpack.c.l.b16 %v595
  %v2054 = vunpack.c.l.b16 %v596
  %v2055 = vunpack.c.l.b16 %v597
  %v2056 = vunpack.c.l.b16 %v598
  %v2057 = vunpack.c.l.b16 %v599
  %v2058 = vunpack.c.l.b16 %v600
  %v2059 = vunpack.c.l.b16 %v601
  %v2060 = vunpack.c.l.b16 %v602
  %v2061 = vunpack.c.l.b16 %v603
  %v2062 = vunpack.c.l.b16 %v604
  %v2063 = vunpack.c.l.b16 %v605
  %v2064 = vunpack.c.l.b16 %v606
  %v2065 = vunpack.c.l.b16 %v607
  %v2066 = vunpack.c.l.b16 %v608
  %v2067 = vunpack.c.l.b16 %v609
  %v2068 = vunpack.c.l.b16 %v610
  %v2069 = vunpack.c.l.b16 %v611
  %v2070 = vunpack.c.l.b16 %v612
  %v2071 = vunpack.c.l.b16 %v613
  %v2072 = vunpack.c.l.b16 %v614
  %v2073 = vunpack.c.l.b16 %v615
  %v2074 = vunpack.c.l.b16 %v616
  %v2075 = vunpack.c.l.b16 %v617
  %v2076 = vunpack.c.l.b16 %v618
  %v2077 = vunpack.c.l.b16 %v619
  %v2078 = vunpack.c.l.b16 %v620
  %v2079 = vunpack.c.l.b16 %v621
  %v2080 = vunpack.c.l.b16 %v622
  %v2081 = vunpack.c.l.b16 %v623
  %v2082 = vunpack.c.l.b16 %v624
  %v2083 = vunpack.c.l.b16 %v625
  %v2084 = vunpack.c.l.b16 %v626
  %v2085 = vunpack.c.l.b16 %v627
  %v2086 = vunpack.c.l.b16 %v628
  %v2087 = vunpack.c.l.b16 %v629
  %v2088 = vunpack.c.l.b16 %v630
  %v2089 = vunpack.c.l.b16 %v631
  %v2090 = vunpack.c.l.b16 %v632
  %v2091 = vunpack.c.l.b16 %v633
  %v2092 = vunpack.c.l.b16 %v634
  %v2093 = vunpack.c.l.b16 %v635
  %v2094 = vunpack.c.l.b16 %v636
  %v2095 = vunpack.c.l.b16 %v637
  %v2096 = vunpack.c.l.b16 %v638
  %v2097 = vunpack.c.l.b16 %v639
  %v2098 = vunpack.c.l.b16 %v640
  %v2099 = vunpack.c.l.b16 %v641
  %v2100 = vunpack.c.l.b16 %v642
  %v2101 = vunpack.c.l.b16 %v643
  %v2102 = vunpack.c.l.b16 %v644
  %v2103 = vunpack.c.l.b16 %v645
  %v2104 = vunpack.c.l.b16 %v646
  %v2105 = vunpack.c.l.b16 %v647
  %v2106 = vunpack.c.l.b16 %v648
  %v2107 = vunpack.c.l.b16 %v649
  %v2108 = vunpack.c.l.b16 %v650
  %v2109 = vunpack.c.l.b16 %v651
  %v2110 = vunpack.c.l.b16 %v652
  %v2111 = vunpack.c.l.b16 %v653
  %v2112 = vunpack.c.l.b16 %v654
  %v2113 = vunpack.c.l.b16 %v655
  %v2114 = vunpack.c.l.b16 %v656
  %v2115 = vunpack.c.l.b16 %v657
  %v2116 = vunpack.c.l.b16 %v658
  %v2117 = vunpack.c.l.b16 %v659
  %v2118 = vunpack.c.l.b16 %v660
  %v2119 = vunpack.c.l.b16 %v661
  %v2120 = vunpack.c.l.b16 %v662
  %v2121 = vunpack.c.l.b16 %v663
  %v2122 = vunpack.c.l.b16 %v664
  %v2123 = vunpack.c.l.b16 %v665
  %v2124 = vunpack.c.l.b16 %v666
  %v2125 = vunpack.c.l.b16 %v667
  %v2126 = vunpack.c.l.b16 %v668
  %v2127 = vunpack.c.l.b16 %v669
  %v2128 = vunpack.c.l.b16 %v670
  %v2129 = vunpack.c.l.b16 %v671
  %v2130 = vunpack.c.l.b16 %v672
  %v2131 = vunpack.c.l.b16 %v673
  %v2132 = vunpack.c.l.b16 %v674
  %v2133 = vunpack.c.l.b16 %v675
  %v2134 = vunpack.c.l.b16 %v676
  %v2135 = vunpack.c.l.b16 %v677
  %v2136 = vunpack.c.l.b16 %v678
  %v2137 = vunpack.c.l.b16 %v679
  %v2138 = vunpack.c.l.b16 %v680
  %v2139 = vunpack.c.l.b16 %v681
  %v2140 = vunpack.c.l.b16 %v682
  %v2141 = vunpack.c.l.b16 %v683
  %v2142 = vunpack.c.l.b16 %v684
  %v2143 = vunpack.c.l.b16 %v685
  %v2144 = vunpack.c.l.b16 %v686
  %v2145 = vunpack.c.l.b16 %v687
  %v2146 = vunpack.c.l.b16 %v688
  %v2147 = vunpack.c.l.b16 %v689
  %v2148 = vunpack.c.l.b16 %v690
  %v2149 = vunpack.c.l.b16 %v691
  %v2150 = vunpack.c.l.b16 %v692
  %v2151 = vunpack.c.l.b16 %v693
  %v2152 = vunpack.c.l.b16 %v694
  %v2153 = vunpack.c.l.b16 %v695
  %v2154 = vunpack.c.l.b16 %v696
  %v2155 = vunpack.c.l.b16 %v697
  %v2156 = vunpack.c.l.b16 %v698
  %v2157 = vunpack.c.l.b16 %v699
  %v2158 = vunpack.c.l.b16 %v700
  %v2159 = vunpack.c.l.b16 %v701
  %v2160 = vunpack.c.l.b16 %v702
  %v2161 = vunpack.c.l.b16 %v703
  %v2162 = vunpack.c.l.b16 %v704
  %v2163 = vunpack.c.l.b16 %v705
  %v2164 = vpack.c.b16 %v1509, %v1508
  %v2165 = vpack.c.b16 %v1511, %v1510
  %v2166 = vpack.c.b16 %v1513, %v1512
  %v2167 = vpack.c.b16 %v1515, %v1514
  %v2168 = vpack.c.b16 %v1517, %v1516
  %v2169 = vpack.c.b16 %v1519, %v1518
  %v2170 = vpack.c.b16 %v1521, %v1520
  %v2171 = vpack.c.b16 %v1523, %v1522
  %v2172 = vpack.c.b16 %v1525, %v1524
  %v2173 = vpack.c.b16 %v1527, %v1526
  %v2174 = vpack.c.b16 %v1529, %v1528
  %v2175 = vpack.c.b16 %v1531, %v1530
  %v2176 = vpack.c.b16 %v1533, %v1532
  %v2177 = vpack.c.b16 %v1535, %v1534
  %v2178 = vpack.c.b16 %v1537, %v1536
  %v2179 = vpack.c.b16 %v1539, %v1538
  %v2180 = vpack.c.b16 %v1541, %v1540
  %v2181 = vpack.c.b16 %v1543, %v1542
  %v2182 = vpack.c.b16 %v1545, %v1544
  %v2183 = vpack.c.b16 %v1547, %v1546
  %v2184 = vpack.c.b16 %v1549, %v1548
  %v2185 = vpack.c.b16 %v1551, %v1550
  %v2186 = vpack.c.b16 %v1553, %v1552
  %v2187 = vpack.c.b16 %v1555, %v1554
  %v2188 = vpack.c.b16 %v1557, %v1556
  %v2189 = vpack.c.b16 %v1559, %v1558
  %v2190 = vpack.c.b16 %v1561, %v1560
  %v2191 = vpack.c.b16 %v1563, %v1562
  %v2192 = vpack.c.b16 %v1565, %v1564
  %v2193 = vpack.c.b16 %v1567, %v1566
  %v2194 = vpack.c.b16 %v1569, %v1568
  %v2195 = vpack.c.b16 %v1571, %v1570
  %v2196 = vpack.c.b16 %v1573, %v1572
  %v2197 = vpack.c.b16 %v1575, %v1574
  %v2198 = vpack.c.b16 %v1577, %v1576
  %v2199 = vpack.c.b16 %v1579, %v1578
  %v2200 = vpack.c.b16 %v1581, %v1580
  %v2201 = vpack.c.b16 %v1583, %v1582
  %v2202 = vpack.c.b16 %v1585, %v1584
  %v2203 = vpack.c.b16 %v1587, %v1586
  %v2204 = vpack.c.b16 %v1589, %v1588
  %v2205 = vpack.c.b16 %v1591, %v1590
  %v2206 = vpack.c.b16 %v1593, %v1592
  %v2207 = vpack.c.b16 %v1595, %v1594
  %v2208 = vpack.c.b16 %v1597, %v1596
  %v2209 = vpack.c.b16 %v1599, %v1598
  %v2210 = vpack.c.b16 %v1601, %v1600
  %v2211 = vpack.c.b16 %v1603, %v1602
  %v2212 = vpack.c.b16 %v1605, %v1604
  %v2213 = vpack.c.b16 %v1607, %v1606
  %v2214 = vpack.c.b16 %v1609, %v1608
  %v2215 = vpack.c.b16 %v1611, %v1610
  %v2216 = vpack.c.b16 %v1613, %v1612
  %v2217 = vpack.c.b16 %v1615, %v1614
  %v2218 = vpack.c.b16 %v1617, %v1616
  %v2219 = vpack.c.b16 %v1619, %v1618
  %v2220 = vpack.c.b16 %v1621, %v1620
  %v2221 = vpack.c.b16 %v1623, %v1622
  %v2222 = vpack.c.b16 %v1625, %v1624
  %v2223 = vpack.c.b16 %v1627, %v1626
  %v2224 = vpack.c.b16 %v1629, %v1628
  %v2225 = vpack.c.b16 %v1631, %v1630
  %v2226 = vpack.c.b16 %v1633, %v1632
  %v2227 = vpack.c.b16 %v1635, %v1634
  %v2228 = vpack.c.b16 %v1637, %v1636
  %v2229 = vpack.c.b16 %v1639, %v1638
  %v2230 = vpack.c.b16 %v1641, %v1640
  %v2231 = vpack.c.b16 %v1643, %v1642
  %v2232 = vpack.c.b16 %v1645, %v1644
  %v2233 = vpack.c.b16 %v1647, %v1646
  %v2234 = vpack.c.b16 %v1649, %v1648
  %v2235 = vpack.c.b16 %v1651, %v1650
  %v2236 = vpack.c.b16 %v1653, %v1652
  %v2237 = vpack.c.b16 %v1655, %v1654
  %v2238 = vpack.c.b16 %v1657, %v1656
  %v2239 = vpack.c.b16 %v1659, %v1658
  %v2240 = vpack.c.b16 %v1661, %v1660
  %v2241 = vpack.c.b16 %v1663, %v1662
  %v2242 = vpack.c.b16 %v1665, %v1664
  %v2243 = vpack.c.b16 %v1667, %v1666
  %v2244 = vpack.c.b16 %v1669, %v1668
  %v2245 = vpack.c.b16 %v1671, %v1670
  %v2246 = vpack.c.b16 %v1673, %v1672
  %v2247 = vpack.c.b16 %v1675, %v1674
  %v2248 = vpack.c.b16 %v1677, %v1676
  %v2249 = vpack.c.b16 %v1679, %v1678
  %v2250 = vpack.c.b16 %v1681, %v1680
  %v2251 = vpack.c.b16 %v1683, %v1682
  %v2252 = vpack.c.b16 %v1685, %v1684
  %v2253 = vpack.c.b16 %v1687, %v1686
  %v2254 = vpack.c.b16 %v1689, %v1688
  %v2255 = vpack.c.b16 %v1691, %v1690
  %v2256 = vpack.c.b16 %v1693, %v1692
  %v2257 = vpack.c.b16 %v1695, %v1694
  %v2258 = vpack.c.b16 %v1697, %v1696
  %v2259 = vpack.c.b16 %v1699, %v1698
  %v2260 = vpack.c.b16 %v1701, %v1700
  %v2261 = vpack.c.b16 %v1703, %v1702
  %v2262 = vpack.c.b16 %v1705, %v1704
  %v2263 = vpack.c.b16 %v1707, %v1706
  %v2264 = vpack.c.b16 %v1709, %v1708
  %v2265 = vpack.c.b16 %v1711, %v1710
  %v2266 = vpack.c.b16 %v1713, %v1712
  %v2267 = vpack.c.b16 %v1715, %v1714
  %v2268 = vpack.c.b16 %v1717, %v1716
  %v2269 = vpack.c.b16 %v1719, %v1718
  %v2270 = vpack.c.b16 %v1721, %v1720
  %v2271 = vpack.c.b16 %v1723, %v1722
  %v2272 = vpack.c.b16 %v1725, %v1724
  %v2273 = vpack.c.b16 %v1727, %v1726
  %v2274 = vpack.c.b16 %v1729, %v1728
  %v2275 = vpack.c.b16 %v1731, %v1730
  %v2276 = vpack.c.b16 %v1733, %v1732
  %v2277 = vpack.c.b16 %v1735, %v1734
  %v2278 = vpack.c.b16 %v1737, %v1736
  %v2279 = vpack.c.b16 %v1739, %v1738
  %v2280 = vpack.c.b16 %v1741, %v1740
  %v2281 = vpack.c.b16 %v1743, %v1742
  %v2282 = vpack.c.b16 %v1745, %v1744
  %v2283 = vpack.c.b16 %v1747, %v1746
  %v2284 = vpack.c.b16 %v1749, %v1748
  %v2285 = vpack.c.b16 %v1751, %v1750
  %v2286 = vpack.c.b16 %v1753, %v1752
  %v2287 = vpack.c.b16 %v1755, %v1754
  %v2288 = vpack.c.b16 %v1757, %v1756
  %v2289 = vpack.c.b16 %v1759, %v1758
  %v2290 = vpack.c.b16 %v1761, %v1760
  %v2291 = vpack.c.b16 %v1763, %v1762
  %v2292 = vpack.c.b16 %v1765, %v1764
  %v2293 = vpack.c.b16 %v1767, %v1766
  %v2294 = vpack.c.b16 %v1769, %v1768
  %v2295 = vpack.c.b16 %v1771, %v1770
  %v2296 = vpack.c.b16 %v1773, %v1772
  %v2297 = vpack.c.b16 %v1775, %v1774
  %v2298 = vpack.c.b16 %v1777, %v1776
  %v2299 = vpack.c.b16 %v1779, %v1778
  %v2300 = vpack.c.b16 %v1781, %v1780
  %v2301 = vpack.c.b16 %v1783, %v1782
  %v2302 = vpack.c.b16 %v1785, %v1784
  %v2303 = vpack.c.b16 %v1787, %v1786
  %v2304 = vpack.c.b16 %v1789, %v1788
  %v2305 = vpack.c.b16 %v1791, %v1790
  %v2306 = vpack.c.b16 %v1793, %v1792
  %v2307 = vpack.c.b16 %v1795, %v1794
  %v2308 = vpack.c.b16 %v1797, %v1796
  %v2309 = vpack.c.b16 %v1799, %v1798
  %v2310 = vpack.c.b16 %v1801, %v1800
  %v2311 = vpack.c.b16 %v1803, %v1802
  %v2312 = vpack.c.b16 %v1805, %v1804
  %v2313 = vpack.c.b16 %v1807, %v1806
  %v2314 = vpack.c.b16 %v1809, %v1808
  %v2315 = vpack.c.b16 %v1811, %v1810
  %v2316 = vpack.c.b16 %v1813, %v1812
  %v2317 = vpack.c.b16 %v1815, %v1814
  %v2318 = vpack.c.b16 %v1817, %v1816
  %v2319 = vpack.c.b16 %v1819, %v1818
  %v2320 = vpack.c.b16 %v1821, %v1820
  %v2321 = vpack.c.b16 %v1823, %v1822
  %v2322 = vpack.c.b16 %v1825, %v1824
  %v2323 = vpack.c.b16 %v1827, %v1826
  %v2324 = vpack.c.b16 %v1829, %v1828
  %v2325 = vpack.c.b16 %v1831, %v1830
  %v2326 = vpack.c.b16 %v1833, %v1832
  %v2327 = vpack.c.b16 %v1835, %v1834
  %v2328 = vpack.c.b16 %v1837, %v1836
  %v2329 = vpack.c.b16 %v1839, %v1838
  %v2330 = vpack.c.b16 %v1841, %v1840
  %v2331 = vpack.c.b16 %v1843, %v1842
  %v2332 = vpack.c.b16 %v1845, %v1844
  %v2333 = vpack.c.b16 %v1847, %v1846
  %v2334 = vpack.c.b16 %v1849, %v1848
  %v2335 = vpack.c.b16 %v1851, %v1850
  %v2336 = vpack.c.b16 %v1853, %v1852
  %v2337 = vpack.c.b16 %v1855, %v1854
  %v2338 = vpack.c.b16 %v1857, %v1856
  %v2339 = vpack.c.b16 %v1859, %v1858
  %v2340 = vpack.c.b16 %v1861, %v1860
  %v2341 = vpack.c.b16 %v1863, %v1862
  %v2342 = vpack.c.b16 %v1865, %v1864
  %v2343 = vpack.c.b16 %v1867, %v1866
  %v2344 = vpack.c.b16 %v1869, %v1868
  %v2345 = vpack.c.b16 %v1871, %v1870
  %v2346 = vpack.c.b16 %v1873, %v1872
  %v2347 = vpack.c.b16 %v1875, %v1874
  %v2348 = vpack.c.b16 %v1877, %v1876
  %v2349 = vpack.c.b16 %v1879, %v1878
  %v2350 = vpack.c.b16 %v1881, %v1880
  %v2351 = vpack.c.b16 %v1883, %v1882
  %v2352 = vpack.c.b16 %v1885, %v1884
  %v2353 = vpack.c.b16 %v1887, %v1886
  %v2354 = vpack.c.b16 %v1889, %v1888
  %v2355 = vpack.c.b16 %v1891, %v1890
  %v2356 = vpack.c.b16 %v1893, %v1892
  %v2357 = vpack.c.b16 %v1895, %v1894
  %v2358 = vpack.c.b16 %v1897, %v1896
  %v2359 = vpack.c.b16 %v1899, %v1898
  %v2360 = vpack.c.b16 %v1901, %v1900
  %v2361 = vpack.c.b16 %v1903, %v1902
  %v2362 = vpack.c.b16 %v1905, %v1904
  %v2363 = vpack.c.b16 %v1907, %v1906
  %v2364 = vpack.c.b16 %v1909, %v1908
  %v2365 = vpack.c.b16 %v1911, %v1910
  %v2366 = vpack.c.b16 %v1913, %v1912
  %v2367 = vpack.c.b16 %v1915, %v1914
  %v2368 = vpack.c.b16 %v1917, %v1916
  %v2369 = vpack.c.b16 %v1919, %v1918
  %v2370 = vpack.c.b16 %v1921, %v1920
  %v2371 = vpack.c.b16 %v1923, %v1922
  %v2372 = vpack.c.b16 %v1925, %v1924
  %v2373 = vpack.c.b16 %v1927, %v1926
  %v2374 = vpack.c.b16 %v1929, %v1928
  %v2375 = vpack.c.b16 %v1931, %v1930
  %v2376 = vpack.c.b16 %v1933, %v1932
  %v2377 = vpack.c.b16 %v1935, %v1934
  %v2378 = vpack.c.b16 %v1937, %v1936
  %v2379 = vpack.c.b16 %v1939, %v1938
  %v2380 = vpack.c.b16 %v1941, %v1940
  %v2381 = vpack.c.b16 %v1943, %v1942
  %v2382 = vpack.c.b16 %v1945, %v1944
  %v2383 = vpack.c.b16 %v1947, %v1946
  %v2384 = vpack.c.b16 %v1949, %v1948
  %v2385 = vpack.c.b16 %v1951, %v1950
  %v2386 = vpack.c.b16 %v1953, %v1952
  %v2387 = vpack.c.b16 %v1955, %v1954
  %v2388 = vpack.c.b16 %v1957, %v1956
  %v2389 = vpack.c.b16 %v1959, %v1958
  %v2390 = vpack.c.b16 %v1961, %v1960
  %v2391 = vpack.c.b16 %v1963, %v1962
  %v2392 = vpack.c.b16 %v1965, %v1964
  %v2393 = vpack.c.b16 %v1967, %v1966
  %v2394 = vpack.c.b16 %v1969, %v1968
  %v2395 = vpack.c.b16 %v1971, %v1970
  %v2396 = vpack.c.b16 %v1973, %v1972
  %v2397 = vpack.c.b16 %v1975, %v1974
  %v2398 = vpack.c.b16 %v1977, %v1976
  %v2399 = vpack.c.b16 %v1979, %v1978
  %v2400 = vpack.c.b16 %v1981, %v1980
  %v2401 = vpack.c.b16 %v1983, %v1982
  %v2402 = vpack.c.b16 %v1985, %v1984
  %v2403 = vpack.c.b16 %v1987, %v1986
  %v2404 = vpack.c.b16 %v1989, %v1988
  %v2405 = vpack.c.b16 %v1991, %v1990
  %v2406 = vpack.c.b16 %v1993, %v1992
  %v2407 = vpack.c.b16 %v1995, %v1994
  %v2408 = vpack.c.b16 %v1997, %v1996
  %v2409 = vpack.c.b16 %v1999, %v1998
  %v2410 = vpack.c.b16 %v2001, %v2000
  %v2411 = vpack.c.b16 %v2003, %v2002
  %v2412 = vpack.c.b16 %v2005, %v2004
  %v2413 = vpack.c.b16 %v2007, %v2006
  %v2414 = vpack.c.b16 %v2009, %v2008
  %v2415 = vpack.c.b16 %v2011, %v2010
  %v2416 = vpack.c.b16 %v2013, %v2012
  %v2417 = vpack.c.b16 %v2015, %v2014
  %v2418 = vpack.c.b16 %v2017, %v2016
  %v2419 = vpack.c.b16 %v2019, %v2018
  %v2420 = vpack.c.b16 %v2021, %v2020
  %v2421 = vpack.c.b16 %v2023, %v2022
  %v2422 = vpack.c.b16 %v2025, %v2024
  %v2423 = vpack.c.b16 %v2027, %v2026
  %v2424 = vpack.c.b16 %v2029, %v2028
  %v2425 = vpack.c.b16 %v2031, %v2030
  %v2426 = vpack.c.b16 %v2033, %v2032
  %v2427 = vpack.c.b16 %v2035, %v2034
  %v2428 = vpack.c.b16 %v2037, %v2036
  %v2429 = vpack.c.b16 %v2039, %v2038
  %v2430 = vpack.c.b16 %v2041, %v2040
  %v2431 = vpack.c.b16 %v2043, %v2042
  %v2432 = vpack.c.b16 %v2045, %v2044
  %v2433 = vpack.c.b16 %v2047, %v2046
  %v2434 = vpack.c.b16 %v2049, %v2048
  %v2435 = vpack.c.b16 %v2051, %v2050
  %v2436 = vpack.c.b16 %v2053, %v2052
  %v2437 = vpack.c.b16 %v2055, %v2054
  %v2438 = vpack.c.b16 %v2057, %v2056
  %v2439 = vpack.c.b16 %v2059, %v2058
  %v2440 = vpack.c.b16 %v2061, %v2060
  %v2441 = vpack.c.b16 %v2063, %v2062
  %v2442 = vpack.c.b16 %v2065, %v2064
  %v2443 = vpack.c.b16 %v2067, %v2066
  %v2444 = vpack.c.b16 %v2069, %v2068
  %v2445 = vpack.c.b16 %v2071, %v2070
  %v2446 = vpack.c.b16 %v2073, %v2072
  %v2447 = vpack.c.b16 %v2075, %v2074
  %v2448 = vpack.c.b16 %v2077, %v2076
  %v2449 = vpack.c.b16 %v2079, %v2078
  %v2450 = vpack.c.b16 %v2081, %v2080
  %v2451 = vpack.c.b16 %v2083, %v2082
  %v2452 = vpack.c.b16 %v2085, %v2084
  %v2453 = vpack.c.b16 %v2087, %v2086
  %v2454 = vpack.c.b16 %v2089, %v2088
  %v2455 = vpack.c.b16 %v2091, %v2090
  %v2456 = vpack.c.b16 %v2093, %v2092
  %v2457 = vpack.c.b16 %v2095, %v2094
  %v2458 = vpack.c.b16 %v2097, %v2096
  %v2459 = vpack.c.b16 %v2099, %v2098
  %v2460 = vpack.c.b16 %v2101, %v2100
  %v2461 = vpack.c.b16 %v2103, %v2102
  %v2462 = vpack.c.b16 %v2105, %v2104
  %v2463 = vpack.c.b16 %v2107, %v2106
  %v2464 = vpack.c.b16 %v2109, %v2108
  %v2465 = vpack.c.b16 %v2111, %v2110
  %v2466 = vpack.c.b16 %v2113, %v2112
  %v2467 = vpack.c.b16 %v2115, %v2114
  %v2468 = vpack.c.b16 %v2117, %v2116
  %v2469 = vpack.c.b16 %v2119, %v2118
  %v2470 = vpack.c.b16 %v2121, %v2120
  %v2471 = vpack.c.b16 %v2123, %v2122
  %v2472 = vpack.c.b16 %v2125, %v2124
  %v2473 = vpack.c.b16 %v2127, %v2126
  %v2474 = vpack.c.b16 %v2129, %v2128
  %v2475 = vpack.c.b16 %v2131, %v2130
  %v2476 = vpack.c.b16 %v2133, %v2132
  %v2477 = vpack.c.b16 %v2135, %v2134
  %v2478 = vpack.c.b16 %v2137, %v2136
  %v2479 = vpack.c.b16 %v2139, %v2138
  %v2480 = vpack.c.b16 %v2141, %v2140
  %v2481 = vpack.c.b16 %v2143, %v2142
  %v2482 = vpack.c.b16 %v2145, %v2144
  %v2483 = vpack.c.b16 %v2147, %v2146
  %v2484 = vpack.c.b16 %v2149, %v2148
  %v2485 = vpack.c.b16 %v2151, %v2150
  %v2486 = vpack.c.b16 %v2153, %v2152
  %v2487 = vpack.c.b16 %v2155, %v2154
  %v2488 = vpack.c.b16 %v2157, %v2156
  %v2489 = vpack.c.b16 %v2159, %v2158
  %v2490 = vpack.c.b16 %v2161, %v2160
  %v2491 = vpack.c.b16 %v2163, %v2162
  %2820 = vmatpush.bf16.msra.mxu0 %v2171
  %2821 = vmatpush.bf16.msra.mxu0 %v2170
  %2822 = vmatpush.bf16.msra.mxu0 %v2169
  %2823 = vmatpush.bf16.msra.mxu0 %v2168
  %2824 = vmatpush.bf16.msra.mxu0 %v2167
  %2825 = vmatpush.bf16.msra.mxu0 %v2166
  %2826 = vmatpush.bf16.msra.mxu0 %v2165
  %2827 = vmatpush.bf16.msra.mxu0 %v2164
  %2828 = vmatmul.bf16.gmra.mxu0 %v770
  %v2829 = vpop.f32.mrf.mxu0
  %v2830 = vadd.f32 %v707, %v2829
  %v2831 = vpop.f32.mrf.mxu0
  %2832 = vdwg.mxu0
  %2833 = vmatpush.bf16.msra.mxu0 %v2179
  %2834 = vmatpush.bf16.msra.mxu0 %v2178
  %2835 = vmatpush.bf16.msra.mxu0 %v2177
  %2836 = vmatpush.bf16.msra.mxu0 %v2176
  %2837 = vmatpush.bf16.msra.mxu0 %v2175
  %2838 = vmatpush.bf16.msra.mxu0 %v2174
  %2839 = vmatpush.bf16.msra.mxu0 %v2173
  %2840 = vmatpush.bf16.msra.mxu0 %v2172
  %2841 = vmatmul.bf16.gmra.mxu0 %v771
  %v2842 = vpop.f32.mrf.mxu0
  %v2843 = vadd.f32 %v2830, %v2842
  %v2844 = vpop.f32.mrf.mxu0
  %2845 = vdwg.mxu0
  %2846 = vmatpush.bf16.msra.mxu0 %v2187
  %2847 = vmatpush.bf16.msra.mxu0 %v2186
  %2848 = vmatpush.bf16.msra.mxu0 %v2185
  %2849 = vmatpush.bf16.msra.mxu0 %v2184
  %2850 = vmatpush.bf16.msra.mxu0 %v2183
  %2851 = vmatpush.bf16.msra.mxu0 %v2182
  %2852 = vmatpush.bf16.msra.mxu0 %v2181
  %2853 = vmatpush.bf16.msra.mxu0 %v2180
  %2854 = vmatmul.bf16.gmra.mxu0 %v772
  %v2855 = vpop.f32.mrf.mxu0
  %v2856 = vadd.f32 %v2843, %v2855
  %v2857 = vpop.f32.mrf.mxu0
  %2858 = vdwg.mxu0
  %2859 = vmatpush.bf16.msra.mxu0 %v2195
  %2860 = vmatpush.bf16.msra.mxu0 %v2194
  %2861 = vmatpush.bf16.msra.mxu0 %v2193
  %2862 = vmatpush.bf16.msra.mxu0 %v2192
  %2863 = vmatpush.bf16.msra.mxu0 %v2191
  %2864 = vmatpush.bf16.msra.mxu0 %v2190
  %2865 = vmatpush.bf16.msra.mxu0 %v2189
  %2866 = vmatpush.bf16.msra.mxu0 %v2188
  %2867 = vmatmul.bf16.gmra.mxu0 %v773
  %v2868 = vpop.f32.mrf.mxu0
  %v2869 = vadd.f32 %v2856, %v2868
  %v2870 = vpop.f32.mrf.mxu0
  %2871 = vdwg.mxu0
  %2872 = vmatpush.bf16.msra.mxu0 %v2203
  %2873 = vmatpush.bf16.msra.mxu0 %v2202
  %2874 = vmatpush.bf16.msra.mxu0 %v2201
  %2875 = vmatpush.bf16.msra.mxu0 %v2200
  %2876 = vmatpush.bf16.msra.mxu0 %v2199
  %2877 = vmatpush.bf16.msra.mxu0 %v2198
  %2878 = vmatpush.bf16.msra.mxu0 %v2197
  %2879 = vmatpush.bf16.msra.mxu0 %v2196
  %2880 = vmatmul.bf16.gmra.mxu0 %v774
  %v2881 = vpop.f32.mrf.mxu0
  %v2882 = vadd.f32 %v2869, %v2881
  %v2883 = vpop.f32.mrf.mxu0
  %2884 = vdwg.mxu0
  %2885 = vmatpush.bf16.msra.mxu0 %v2211
  %2886 = vmatpush.bf16.msra.mxu0 %v2210
  %2887 = vmatpush.bf16.msra.mxu0 %v2209
  %2888 = vmatpush.bf16.msra.mxu0 %v2208
  %2889 = vmatpush.bf16.msra.mxu0 %v2207
  %2890 = vmatpush.bf16.msra.mxu0 %v2206
  %2891 = vmatpush.bf16.msra.mxu0 %v2205
  %2892 = vmatpush.bf16.msra.mxu0 %v2204
  %2893 = vmatmul.bf16.gmra.mxu0 %v775
  %v2894 = vpop.f32.mrf.mxu0
  %v2895 = vadd.f32 %v2882, %v2894
  %v2896 = vpop.f32.mrf.mxu0
  %2897 = vdwg.mxu0
  %2898 = vmatpush.bf16.msra.mxu0 %v2219
  %2899 = vmatpush.bf16.msra.mxu0 %v2218
  %2900 = vmatpush.bf16.msra.mxu0 %v2217
  %2901 = vmatpush.bf16.msra.mxu0 %v2216
  %2902 = vmatpush.bf16.msra.mxu0 %v2215
  %2903 = vmatpush.bf16.msra.mxu0 %v2214
  %2904 = vmatpush.bf16.msra.mxu0 %v2213
  %2905 = vmatpush.bf16.msra.mxu0 %v2212
  %2906 = vmatmul.bf16.gmra.mxu0 %v776
  %v2907 = vpop.f32.mrf.mxu0
  %v2908 = vadd.f32 %v2895, %v2907
  %v2909 = vpop.f32.mrf.mxu0
  %2910 = vdwg.mxu0
  %2911 = vmatpush.bf16.msra.mxu0 %v2227
  %2912 = vmatpush.bf16.msra.mxu0 %v2226
  %2913 = vmatpush.bf16.msra.mxu0 %v2225
  %2914 = vmatpush.bf16.msra.mxu0 %v2224
  %2915 = vmatpush.bf16.msra.mxu0 %v2223
  %2916 = vmatpush.bf16.msra.mxu0 %v2222
  %2917 = vmatpush.bf16.msra.mxu0 %v2221
  %2918 = vmatpush.bf16.msra.mxu0 %v2220
  %2919 = vmatmul.bf16.gmra.mxu0 %v777
  %v2920 = vpop.f32.mrf.mxu0
  %v2921 = vadd.f32 %v2908, %v2920
  %v2922 = vpop.f32.mrf.mxu0
  %2923 = vdwg.mxu0
  %2924 = vmatpush.bf16.msra.mxu0 %v2235
  %2925 = vmatpush.bf16.msra.mxu0 %v2234
  %2926 = vmatpush.bf16.msra.mxu0 %v2233
  %2927 = vmatpush.bf16.msra.mxu0 %v2232
  %2928 = vmatpush.bf16.msra.mxu0 %v2231
  %2929 = vmatpush.bf16.msra.mxu0 %v2230
  %2930 = vmatpush.bf16.msra.mxu0 %v2229
  %2931 = vmatpush.bf16.msra.mxu0 %v2228
  %2932 = vmatmul.bf16.gmra.mxu0 %v778
  %v2933 = vpop.f32.mrf.mxu0
  %v2934 = vadd.f32 %v2921, %v2933
  %v2935 = vpop.f32.mrf.mxu0
  %2936 = vdwg.mxu0
  %2937 = vmatpush.bf16.msra.mxu0 %v2243
  %2938 = vmatpush.bf16.msra.mxu0 %v2242
  %2939 = vmatpush.bf16.msra.mxu0 %v2241
  %2940 = vmatpush.bf16.msra.mxu0 %v2240
  %2941 = vmatpush.bf16.msra.mxu0 %v2239
  %2942 = vmatpush.bf16.msra.mxu0 %v2238
  %2943 = vmatpush.bf16.msra.mxu0 %v2237
  %2944 = vmatpush.bf16.msra.mxu0 %v2236
  %2945 = vmatmul.bf16.gmra.mxu0 %v779
  %v2946 = vpop.f32.mrf.mxu0
  %v2947 = vadd.f32 %v2934, %v2946
  %v2948 = vpop.f32.mrf.mxu0
  %2949 = vdwg.mxu0
  %2950 = vmatpush.bf16.msra.mxu0 %v2251
  %2951 = vmatpush.bf16.msra.mxu0 %v2250
  %2952 = vmatpush.bf16.msra.mxu0 %v2249
  %2953 = vmatpush.bf16.msra.mxu0 %v2248
  %2954 = vmatpush.bf16.msra.mxu0 %v2247
  %2955 = vmatpush.bf16.msra.mxu0 %v2246
  %2956 = vmatpush.bf16.msra.mxu0 %v2245
  %2957 = vmatpush.bf16.msra.mxu0 %v2244
  %2958 = vmatmul.bf16.gmra.mxu0 %v780
  %v2959 = vpop.f32.mrf.mxu0
  %v2960 = vadd.f32 %v2947, %v2959
  %v2961 = vpop.f32.mrf.mxu0
  %2962 = vdwg.mxu0
  %2963 = vmatpush.bf16.msra.mxu0 %v2259
  %2964 = vmatpush.bf16.msra.mxu0 %v2258
  %2965 = vmatpush.bf16.msra.mxu0 %v2257
  %2966 = vmatpush.bf16.msra.mxu0 %v2256
  %2967 = vmatpush.bf16.msra.mxu0 %v2255
  %2968 = vmatpush.bf16.msra.mxu0 %v2254
  %2969 = vmatpush.bf16.msra.mxu0 %v2253
  %2970 = vmatpush.bf16.msra.mxu0 %v2252
  %2971 = vmatmul.bf16.gmra.mxu0 %v781
  %v2972 = vpop.f32.mrf.mxu0
  %v2973 = vadd.f32 %v2960, %v2972
  %v2974 = vpop.f32.mrf.mxu0
  %2975 = vdwg.mxu0
  %2976 = vmatpush.bf16.msra.mxu0 %v2267
  %2977 = vmatpush.bf16.msra.mxu0 %v2266
  %2978 = vmatpush.bf16.msra.mxu0 %v2265
  %2979 = vmatpush.bf16.msra.mxu0 %v2264
  %2980 = vmatpush.bf16.msra.mxu0 %v2263
  %2981 = vmatpush.bf16.msra.mxu0 %v2262
  %2982 = vmatpush.bf16.msra.mxu0 %v2261
  %2983 = vmatpush.bf16.msra.mxu0 %v2260
  %2984 = vmatmul.bf16.gmra.mxu0 %v782
  %v2985 = vpop.f32.mrf.mxu0
  %v2986 = vadd.f32 %v2973, %v2985
  %v2987 = vpop.f32.mrf.mxu0
  %2988 = vdwg.mxu0
  %2989 = vmatpush.bf16.msra.mxu0 %v2275
  %2990 = vmatpush.bf16.msra.mxu0 %v2274
  %2991 = vmatpush.bf16.msra.mxu0 %v2273
  %2992 = vmatpush.bf16.msra.mxu0 %v2272
  %2993 = vmatpush.bf16.msra.mxu0 %v2271
  %2994 = vmatpush.bf16.msra.mxu0 %v2270
  %2995 = vmatpush.bf16.msra.mxu0 %v2269
  %2996 = vmatpush.bf16.msra.mxu0 %v2268
  %2997 = vmatmul.bf16.gmra.mxu0 %v783
  %v2998 = vpop.f32.mrf.mxu0
  %v2999 = vadd.f32 %v2986, %v2998
  %v3000 = vpop.f32.mrf.mxu0
  %3001 = vdwg.mxu0
  %3002 = vmatpush.bf16.msra.mxu0 %v2283
  %3003 = vmatpush.bf16.msra.mxu0 %v2282
  %3004 = vmatpush.bf16.msra.mxu0 %v2281
  %3005 = vmatpush.bf16.msra.mxu0 %v2280
  %3006 = vmatpush.bf16.msra.mxu0 %v2279
  %3007 = vmatpush.bf16.msra.mxu0 %v2278
  %3008 = vmatpush.bf16.msra.mxu0 %v2277
  %3009 = vmatpush.bf16.msra.mxu0 %v2276
  %3010 = vmatmul.bf16.gmra.mxu0 %v784
  %v3011 = vpop.f32.mrf.mxu0
  %v3012 = vadd.f32 %v2999, %v3011
  %v3013 = vpop.f32.mrf.mxu0
  %3014 = vdwg.mxu0
  %3015 = vmatpush.bf16.msra.mxu0 %v2291
  %3016 = vmatpush.bf16.msra.mxu0 %v2290
  %3017 = vmatpush.bf16.msra.mxu0 %v2289
  %3018 = vmatpush.bf16.msra.mxu0 %v2288
  %3019 = vmatpush.bf16.msra.mxu0 %v2287
  %3020 = vmatpush.bf16.msra.mxu0 %v2286
  %3021 = vmatpush.bf16.msra.mxu0 %v2285
  %3022 = vmatpush.bf16.msra.mxu0 %v2284
  %3023 = vmatmul.bf16.gmra.mxu0 %v785
  %v3024 = vpop.f32.mrf.mxu0
  %v3025 = vadd.f32 %v3012, %v3024
  %v3026 = vpop.f32.mrf.mxu0
  %3027 = vdwg.mxu0
  %3028 = vmatpush.bf16.msra.mxu0 %v2299
  %3029 = vmatpush.bf16.msra.mxu0 %v2298
  %3030 = vmatpush.bf16.msra.mxu0 %v2297
  %3031 = vmatpush.bf16.msra.mxu0 %v2296
  %3032 = vmatpush.bf16.msra.mxu0 %v2295
  %3033 = vmatpush.bf16.msra.mxu0 %v2294
  %3034 = vmatpush.bf16.msra.mxu0 %v2293
  %3035 = vmatpush.bf16.msra.mxu0 %v2292
  %3036 = vmatmul.bf16.gmra.mxu0 %v786
  %v3037 = vpop.f32.mrf.mxu0
  %v3038 = vadd.f32 %v3025, %v3037
  %v3039 = vpop.f32.mrf.mxu0
  %3040 = vdwg.mxu0
  %3041 = vmatpush.bf16.msra.mxu0 %v2307
  %3042 = vmatpush.bf16.msra.mxu0 %v2306
  %3043 = vmatpush.bf16.msra.mxu0 %v2305
  %3044 = vmatpush.bf16.msra.mxu0 %v2304
  %3045 = vmatpush.bf16.msra.mxu0 %v2303
  %3046 = vmatpush.bf16.msra.mxu0 %v2302
  %3047 = vmatpush.bf16.msra.mxu0 %v2301
  %3048 = vmatpush.bf16.msra.mxu0 %v2300
  %3049 = vmatmul.bf16.gmra.mxu0 %v787
  %v3050 = vpop.f32.mrf.mxu0
  %v3051 = vadd.f32 %v3038, %v3050
  %v3052 = vpop.f32.mrf.mxu0
  %3053 = vdwg.mxu0
  %3054 = vmatpush.bf16.msra.mxu0 %v2315
  %3055 = vmatpush.bf16.msra.mxu0 %v2314
  %3056 = vmatpush.bf16.msra.mxu0 %v2313
  %3057 = vmatpush.bf16.msra.mxu0 %v2312
  %3058 = vmatpush.bf16.msra.mxu0 %v2311
  %3059 = vmatpush.bf16.msra.mxu0 %v2310
  %3060 = vmatpush.bf16.msra.mxu0 %v2309
  %3061 = vmatpush.bf16.msra.mxu0 %v2308
  %3062 = vmatmul.bf16.gmra.mxu0 %v788
  %v3063 = vpop.f32.mrf.mxu0
  %v3064 = vadd.f32 %v3051, %v3063
  %v3065 = vpop.f32.mrf.mxu0
  %3066 = vdwg.mxu0
  %3067 = vmatpush.bf16.msra.mxu0 %v2323
  %3068 = vmatpush.bf16.msra.mxu0 %v2322
  %3069 = vmatpush.bf16.msra.mxu0 %v2321
  %3070 = vmatpush.bf16.msra.mxu0 %v2320
  %3071 = vmatpush.bf16.msra.mxu0 %v2319
  %3072 = vmatpush.bf16.msra.mxu0 %v2318
  %3073 = vmatpush.bf16.msra.mxu0 %v2317
  %3074 = vmatpush.bf16.msra.mxu0 %v2316
  %3075 = vmatmul.bf16.gmra.mxu0 %v789
  %v3076 = vpop.f32.mrf.mxu0
  %v3077 = vadd.f32 %v3064, %v3076
  %v3078 = vpop.f32.mrf.mxu0
  %3079 = vdwg.mxu0
  %3080 = vmatpush.bf16.msra.mxu0 %v2331
  %3081 = vmatpush.bf16.msra.mxu0 %v2330
  %3082 = vmatpush.bf16.msra.mxu0 %v2329
  %3083 = vmatpush.bf16.msra.mxu0 %v2328
  %3084 = vmatpush.bf16.msra.mxu0 %v2327
  %3085 = vmatpush.bf16.msra.mxu0 %v2326
  %3086 = vmatpush.bf16.msra.mxu0 %v2325
  %3087 = vmatpush.bf16.msra.mxu0 %v2324
  %3088 = vmatmul.bf16.gmra.mxu0 %v790
  %v3089 = vpop.f32.mrf.mxu0
  %v3090 = vadd.f32 %v3077, %v3089
  %v3091 = vpop.f32.mrf.mxu0
  %3092 = vdwg.mxu0
  %3093 = vmatpush.bf16.msra.mxu0 %v2339
  %3094 = vmatpush.bf16.msra.mxu0 %v2338
  %3095 = vmatpush.bf16.msra.mxu0 %v2337
  %3096 = vmatpush.bf16.msra.mxu0 %v2336
  %3097 = vmatpush.bf16.msra.mxu0 %v2335
  %3098 = vmatpush.bf16.msra.mxu0 %v2334
  %3099 = vmatpush.bf16.msra.mxu0 %v2333
  %3100 = vmatpush.bf16.msra.mxu0 %v2332
  %3101 = vmatmul.bf16.gmra.mxu0 %v791
  %v3102 = vpop.f32.mrf.mxu0
  %v3103 = vadd.f32 %v3090, %v3102
  %v3104 = vpop.f32.mrf.mxu0
  %3105 = vdwg.mxu0
  %3106 = vmatpush.bf16.msra.mxu0 %v2347
  %3107 = vmatpush.bf16.msra.mxu0 %v2346
  %3108 = vmatpush.bf16.msra.mxu0 %v2345
  %3109 = vmatpush.bf16.msra.mxu0 %v2344
  %3110 = vmatpush.bf16.msra.mxu0 %v2343
  %3111 = vmatpush.bf16.msra.mxu0 %v2342
  %3112 = vmatpush.bf16.msra.mxu0 %v2341
  %3113 = vmatpush.bf16.msra.mxu0 %v2340
  %3114 = vmatmul.bf16.gmra.mxu0 %v792
  %v3115 = vpop.f32.mrf.mxu0
  %v3116 = vadd.f32 %v3103, %v3115
  %v3117 = vpop.f32.mrf.mxu0
  %3118 = vdwg.mxu0
  %3119 = vmatpush.bf16.msra.mxu0 %v2355
  %3120 = vmatpush.bf16.msra.mxu0 %v2354
  %3121 = vmatpush.bf16.msra.mxu0 %v2353
  %3122 = vmatpush.bf16.msra.mxu0 %v2352
  %3123 = vmatpush.bf16.msra.mxu0 %v2351
  %3124 = vmatpush.bf16.msra.mxu0 %v2350
  %3125 = vmatpush.bf16.msra.mxu0 %v2349
  %3126 = vmatpush.bf16.msra.mxu0 %v2348
  %3127 = vmatmul.bf16.gmra.mxu0 %v793
  %v3128 = vpop.f32.mrf.mxu0
  %v3129 = vadd.f32 %v3116, %v3128
  %v3130 = vpop.f32.mrf.mxu0
  %3131 = vdwg.mxu0
  %3132 = vmatpush.bf16.msra.mxu0 %v2363
  %3133 = vmatpush.bf16.msra.mxu0 %v2362
  %3134 = vmatpush.bf16.msra.mxu0 %v2361
  %3135 = vmatpush.bf16.msra.mxu0 %v2360
  %3136 = vmatpush.bf16.msra.mxu0 %v2359
  %3137 = vmatpush.bf16.msra.mxu0 %v2358
  %3138 = vmatpush.bf16.msra.mxu0 %v2357
  %3139 = vmatpush.bf16.msra.mxu0 %v2356
  %3140 = vmatmul.bf16.gmra.mxu0 %v794
  %v3141 = vpop.f32.mrf.mxu0
  %v3142 = vadd.f32 %v3129, %v3141
  %v3143 = vpop.f32.mrf.mxu0
  %3144 = vdwg.mxu0
  %3145 = vmatpush.bf16.msra.mxu0 %v2371
  %3146 = vmatpush.bf16.msra.mxu0 %v2370
  %3147 = vmatpush.bf16.msra.mxu0 %v2369
  %3148 = vmatpush.bf16.msra.mxu0 %v2368
  %3149 = vmatpush.bf16.msra.mxu0 %v2367
  %3150 = vmatpush.bf16.msra.mxu0 %v2366
  %3151 = vmatpush.bf16.msra.mxu0 %v2365
  %3152 = vmatpush.bf16.msra.mxu0 %v2364
  %3153 = vmatmul.bf16.gmra.mxu0 %v795
  %v3154 = vpop.f32.mrf.mxu0
  %v3155 = vadd.f32 %v3142, %v3154
  %v3156 = vpop.f32.mrf.mxu0
  %3157 = vdwg.mxu0
  %3158 = vmatpush.bf16.msra.mxu0 %v2379
  %3159 = vmatpush.bf16.msra.mxu0 %v2378
  %3160 = vmatpush.bf16.msra.mxu0 %v2377
  %3161 = vmatpush.bf16.msra.mxu0 %v2376
  %3162 = vmatpush.bf16.msra.mxu0 %v2375
  %3163 = vmatpush.bf16.msra.mxu0 %v2374
  %3164 = vmatpush.bf16.msra.mxu0 %v2373
  %3165 = vmatpush.bf16.msra.mxu0 %v2372
  %3166 = vmatmul.bf16.gmra.mxu0 %v796
  %v3167 = vpop.f32.mrf.mxu0
  %v3168 = vadd.f32 %v3155, %v3167
  %v3169 = vpop.f32.mrf.mxu0
  %3170 = vdwg.mxu0
  %3171 = vmatpush.bf16.msra.mxu0 %v2387
  %3172 = vmatpush.bf16.msra.mxu0 %v2386
  %3173 = vmatpush.bf16.msra.mxu0 %v2385
  %3174 = vmatpush.bf16.msra.mxu0 %v2384
  %3175 = vmatpush.bf16.msra.mxu0 %v2383
  %3176 = vmatpush.bf16.msra.mxu0 %v2382
  %3177 = vmatpush.bf16.msra.mxu0 %v2381
  %3178 = vmatpush.bf16.msra.mxu0 %v2380
  %3179 = vmatmul.bf16.gmra.mxu0 %v797
  %v3180 = vpop.f32.mrf.mxu0
  %v3181 = vadd.f32 %v3168, %v3180
  %v3182 = vpop.f32.mrf.mxu0
  %3183 = vdwg.mxu0
  %3184 = vmatpush.bf16.msra.mxu0 %v2395
  %3185 = vmatpush.bf16.msra.mxu0 %v2394
  %3186 = vmatpush.bf16.msra.mxu0 %v2393
  %3187 = vmatpush.bf16.msra.mxu0 %v2392
  %3188 = vmatpush.bf16.msra.mxu0 %v2391
  %3189 = vmatpush.bf16.msra.mxu0 %v2390
  %3190 = vmatpush.bf16.msra.mxu0 %v2389
  %3191 = vmatpush.bf16.msra.mxu0 %v2388
  %3192 = vmatmul.bf16.gmra.mxu0 %v798
  %v3193 = vpop.f32.mrf.mxu0
  %v3194 = vadd.f32 %v3181, %v3193
  %v3195 = vpop.f32.mrf.mxu0
  %3196 = vdwg.mxu0
  %3197 = vmatpush.bf16.msra.mxu0 %v2403
  %3198 = vmatpush.bf16.msra.mxu0 %v2402
  %3199 = vmatpush.bf16.msra.mxu0 %v2401
  %3200 = vmatpush.bf16.msra.mxu0 %v2400
  %3201 = vmatpush.bf16.msra.mxu0 %v2399
  %3202 = vmatpush.bf16.msra.mxu0 %v2398
  %3203 = vmatpush.bf16.msra.mxu0 %v2397
  %3204 = vmatpush.bf16.msra.mxu0 %v2396
  %3205 = vmatmul.bf16.gmra.mxu0 %v799
  %v3206 = vpop.f32.mrf.mxu0
  %v3207 = vadd.f32 %v3194, %v3206
  %v3208 = vpop.f32.mrf.mxu0
  %3209 = vdwg.mxu0
  %3210 = vmatpush.bf16.msra.mxu0 %v2411
  %3211 = vmatpush.bf16.msra.mxu0 %v2410
  %3212 = vmatpush.bf16.msra.mxu0 %v2409
  %3213 = vmatpush.bf16.msra.mxu0 %v2408
  %3214 = vmatpush.bf16.msra.mxu0 %v2407
  %3215 = vmatpush.bf16.msra.mxu0 %v2406
  %3216 = vmatpush.bf16.msra.mxu0 %v2405
  %3217 = vmatpush.bf16.msra.mxu0 %v2404
  %3218 = vmatmul.bf16.gmra.mxu0 %v800
  %v3219 = vpop.f32.mrf.mxu0
  %v3220 = vadd.f32 %v3207, %v3219
  %v3221 = vpop.f32.mrf.mxu0
  %3222 = vdwg.mxu0
  %3223 = vmatpush.bf16.msra.mxu0 %v2419
  %3224 = vmatpush.bf16.msra.mxu0 %v2418
  %3225 = vmatpush.bf16.msra.mxu0 %v2417
  %3226 = vmatpush.bf16.msra.mxu0 %v2416
  %3227 = vmatpush.bf16.msra.mxu0 %v2415
  %3228 = vmatpush.bf16.msra.mxu0 %v2414
  %3229 = vmatpush.bf16.msra.mxu0 %v2413
  %3230 = vmatpush.bf16.msra.mxu0 %v2412
  %3231 = vmatmul.bf16.gmra.mxu0 %v801
  %v3232 = vpop.f32.mrf.mxu0
  %v3233 = vadd.f32 %v3220, %v3232
  %v3234 = vpop.f32.mrf.mxu0
  %3235 = vdwg.mxu0
  %3236 = vmatpush.bf16.msra.mxu0 %v2427
  %3237 = vmatpush.bf16.msra.mxu0 %v2426
  %3238 = vmatpush.bf16.msra.mxu0 %v2425
  %3239 = vmatpush.bf16.msra.mxu0 %v2424
  %3240 = vmatpush.bf16.msra.mxu0 %v2423
  %3241 = vmatpush.bf16.msra.mxu0 %v2422
  %3242 = vmatpush.bf16.msra.mxu0 %v2421
  %3243 = vmatpush.bf16.msra.mxu0 %v2420
  %3244 = vmatmul.bf16.gmra.mxu0 %v802
  %v3245 = vpop.f32.mrf.mxu0
  %v3246 = vadd.f32 %v3233, %v3245
  %v3247 = vpop.f32.mrf.mxu0
  %3248 = vdwg.mxu0
  %3249 = vmatpush.bf16.msra.mxu0 %v2435
  %3250 = vmatpush.bf16.msra.mxu0 %v2434
  %3251 = vmatpush.bf16.msra.mxu0 %v2433
  %3252 = vmatpush.bf16.msra.mxu0 %v2432
  %3253 = vmatpush.bf16.msra.mxu0 %v2431
  %3254 = vmatpush.bf16.msra.mxu0 %v2430
  %3255 = vmatpush.bf16.msra.mxu0 %v2429
  %3256 = vmatpush.bf16.msra.mxu0 %v2428
  %3257 = vmatmul.bf16.gmra.mxu0 %v803
  %v3258 = vpop.f32.mrf.mxu0
  %v3259 = vadd.f32 %v3246, %v3258
  %v3260 = vpop.f32.mrf.mxu0
  %3261 = vdwg.mxu0
  %3262 = vmatpush.bf16.msra.mxu0 %v2443
  %3263 = vmatpush.bf16.msra.mxu0 %v2442
  %3264 = vmatpush.bf16.msra.mxu0 %v2441
  %3265 = vmatpush.bf16.msra.mxu0 %v2440
  %3266 = vmatpush.bf16.msra.mxu0 %v2439
  %3267 = vmatpush.bf16.msra.mxu0 %v2438
  %3268 = vmatpush.bf16.msra.mxu0 %v2437
  %3269 = vmatpush.bf16.msra.mxu0 %v2436
  %3270 = vmatmul.bf16.gmra.mxu0 %v804
  %v3271 = vpop.f32.mrf.mxu0
  %v3272 = vadd.f32 %v3259, %v3271
  %v3273 = vpop.f32.mrf.mxu0
  %3274 = vdwg.mxu0
  %3275 = vmatpush.bf16.msra.mxu0 %v2451
  %3276 = vmatpush.bf16.msra.mxu0 %v2450
  %3277 = vmatpush.bf16.msra.mxu0 %v2449
  %3278 = vmatpush.bf16.msra.mxu0 %v2448
  %3279 = vmatpush.bf16.msra.mxu0 %v2447
  %3280 = vmatpush.bf16.msra.mxu0 %v2446
  %3281 = vmatpush.bf16.msra.mxu0 %v2445
  %3282 = vmatpush.bf16.msra.mxu0 %v2444
  %3283 = vmatmul.bf16.gmra.mxu0 %v805
  %v3284 = vpop.f32.mrf.mxu0
  %v3285 = vadd.f32 %v3272, %v3284
  %v3286 = vpop.f32.mrf.mxu0
  %3287 = vdwg.mxu0
  %3288 = vmatpush.bf16.msra.mxu0 %v2459
  %3289 = vmatpush.bf16.msra.mxu0 %v2458
  %3290 = vmatpush.bf16.msra.mxu0 %v2457
  %3291 = vmatpush.bf16.msra.mxu0 %v2456
  %3292 = vmatpush.bf16.msra.mxu0 %v2455
  %3293 = vmatpush.bf16.msra.mxu0 %v2454
  %3294 = vmatpush.bf16.msra.mxu0 %v2453
  %3295 = vmatpush.bf16.msra.mxu0 %v2452
  %3296 = vmatmul.bf16.gmra.mxu0 %v806
  %v3297 = vpop.f32.mrf.mxu0
  %v3298 = vadd.f32 %v3285, %v3297
  %v3299 = vpop.f32.mrf.mxu0
  %3300 = vdwg.mxu0
  %3301 = vmatpush.bf16.msra.mxu0 %v2467
  %3302 = vmatpush.bf16.msra.mxu0 %v2466
  %3303 = vmatpush.bf16.msra.mxu0 %v2465
  %3304 = vmatpush.bf16.msra.mxu0 %v2464
  %3305 = vmatpush.bf16.msra.mxu0 %v2463
  %3306 = vmatpush.bf16.msra.mxu0 %v2462
  %3307 = vmatpush.bf16.msra.mxu0 %v2461
  %3308 = vmatpush.bf16.msra.mxu0 %v2460
  %3309 = vmatmul.bf16.gmra.mxu0 %v807
  %v3310 = vpop.f32.mrf.mxu0
  %v3311 = vadd.f32 %v3298, %v3310
  %v3312 = vpop.f32.mrf.mxu0
  %3313 = vdwg.mxu0
  %3314 = vmatpush.bf16.msra.mxu0 %v2475
  %3315 = vmatpush.bf16.msra.mxu0 %v2474
  %3316 = vmatpush.bf16.msra.mxu0 %v2473
  %3317 = vmatpush.bf16.msra.mxu0 %v2472
  %3318 = vmatpush.bf16.msra.mxu0 %v2471
  %3319 = vmatpush.bf16.msra.mxu0 %v2470
  %3320 = vmatpush.bf16.msra.mxu0 %v2469
  %3321 = vmatpush.bf16.msra.mxu0 %v2468
  %3322 = vmatmul.bf16.gmra.mxu0 %v808
  %v3323 = vpop.f32.mrf.mxu0
  %v3324 = vadd.f32 %v3311, %v3323
  %v3325 = vpop.f32.mrf.mxu0
  %3326 = vdwg.mxu0
  %3327 = vmatpush.bf16.msra.mxu0 %v2483
  %3328 = vmatpush.bf16.msra.mxu0 %v2482
  %3329 = vmatpush.bf16.msra.mxu0 %v2481
  %3330 = vmatpush.bf16.msra.mxu0 %v2480
  %3331 = vmatpush.bf16.msra.mxu0 %v2479
  %3332 = vmatpush.bf16.msra.mxu0 %v2478
  %3333 = vmatpush.bf16.msra.mxu0 %v2477
  %3334 = vmatpush.bf16.msra.mxu0 %v2476
  %3335 = vmatmul.bf16.gmra.mxu0 %v809
  %v3336 = vpop.f32.mrf.mxu0
  %v3337 = vadd.f32 %v3324, %v3336
  %v3338 = vpop.f32.mrf.mxu0
  %3339 = vdwg.mxu0
  %3340 = vmatpush.bf16.msra.mxu0 %v2491
  %3341 = vmatpush.bf16.msra.mxu0 %v2490
  %3342 = vmatpush.bf16.msra.mxu0 %v2489
  %3343 = vmatpush.bf16.msra.mxu0 %v2488
  %3344 = vmatpush.bf16.msra.mxu0 %v2487
  %3345 = vmatpush.bf16.msra.mxu0 %v2486
  %3346 = vmatpush.bf16.msra.mxu0 %v2485
  %3347 = vmatpush.bf16.msra.mxu0 %v2484
  %3348 = vmatmul.bf16.gmra.mxu0 %v810
  %v3349 = vpop.f32.mrf.mxu0
  %v3350 = vadd.f32 %v3337, %v3349
  %v3351 = vpop.f32.mrf.mxu0
  %3352 = vdwg.mxu0
  %v3353 = vsel %vm28, 1, 0
  %vm3354 = vcmp.eq.s32.totalorder %v3353, 1
  %v3355 = vsel %vm3354, %v3350, 0.0
  %v3356 = vrot.slane %v3355, 4
  %v3357 = vadd.f32 %v3355, %v3356
  %v3358 = vrot.slane %v3357, 2
  %v3359 = vadd.f32 %v3357, %v3358
  %v3360 = vrot.slane %v3359, 1
  %v3361 = vadd.f32 %v3359, %v3360
  %v3362 = vmul.f32 %v3361, 0.5
  %v3363 = vsub.f32 %v3350, %v3362
  %v3364 = vsel %vm3354, %v3363, 0.0
  %v3365 = vmul.f32 %v3364, %v3364
  %v3366 = vrot.slane %v3365, 4
  %v3367 = vadd.f32 %v3365, %v3366
  %v3368 = vrot.slane %v3367, 2
  %v3369 = vadd.f32 %v3367, %v3368
  %v3370 = vrot.slane %v3369, 1
  %v3371 = vadd.f32 %v3369, %v3370
  %v3372 = vmul.f32 %v3371, 0.5
  %v3373 = vadd.f32 %v3372, 1e-05
  %v3374 = vrsqrt.pop %v3373
  %v3375 = vmul.f32 %v3374, %v3373
  %v3376 = vmul.f32 %v3375, %v3374
  %v3377 = vmul.f32 0.5, %v3376
  %v3378 = vsub.f32 1.5, %v3377
  %v3379 = vmul.f32 %v3374, %v3378
  %vm3380 = vweird.f32 %v3373
  %vm3381 = vweird.f32 %v3374
  %vm3382 = vmor %vm3380, %vm3381
  %v3383 = vsel %vm3382, %v3374, %v3379
  %v3384 = vmul.f32 %v3363, %v3383
  %v3385 = vperm.slane %v706, 1
  %v3386 = vmul.f32 %v3384, %v3385
  %v3387 = vperm.slane %v706, 2
  %v3388 = vadd.f32 %v3386, %v3387
  %vm3389 = vcmp.gt.f32.partialorder %v3388, 0.0
  %v3390 = vmul.f32 %v3388, 0.2
  %v3391 = vsel %vm3389, %v3388, %v3390
  %v3392 = vsel %vm3354, %v3391, 0.0
  %v3393 = vpack.c.bf16 %v3392, %v3392
  %v3394 = vld [vmem:[%s3] sm:$0xf]
  %v3395 = vld [vmem:[%s3 + $0x4] sm:$0xf]
  %v3396 = vld [vmem:[%s3 + $0x8] sm:$0xf]
  %v3397 = vld [vmem:[%s3 + $0xc] sm:$0xf]
  %v3398 = vld [vmem:[%s3 + $0x10] sm:$0xf]
  %v3399 = vld [vmem:[%s3 + $0x14] sm:$0xf]
  %v3400 = vld [vmem:[%s3 + $0x18] sm:$0xf]
  %v3401 = vld [vmem:[%s3 + $0x1c] sm:$0xf]
  %v3402 = vld [vmem:[%s3 + $0x20] sm:$0xf]
  %v3403 = vld [vmem:[%s3 + $0x24] sm:$0xf]
  %v3404 = vld [vmem:[%s3 + $0x28] sm:$0xf]
  %v3405 = vld [vmem:[%s3 + $0x2c] sm:$0xf]
  %v3406 = vld [vmem:[%s3 + $0x30] sm:$0xf]
  %v3407 = vld [vmem:[%s3 + $0x34] sm:$0xf]
  %v3408 = vld [vmem:[%s3 + $0x38] sm:$0xf]
  %v3409 = vld [vmem:[%s3 + $0x3c] sm:$0xf]
  %v3410 = vld [vmem:[%s4] sm:$0xff]
  %v3411 = vperm.slane %v3410, 0
  %v3428 = vunpack.c.l.b16 %v3394
  %v3429 = vunpack.c.l.b16 %v3395
  %v3430 = vunpack.c.l.b16 %v3396
  %v3431 = vunpack.c.l.b16 %v3397
  %v3432 = vunpack.c.l.b16 %v3398
  %v3433 = vunpack.c.l.b16 %v3399
  %v3434 = vunpack.c.l.b16 %v3400
  %v3435 = vunpack.c.l.b16 %v3401
  %v3436 = vunpack.c.l.b16 %v3402
  %v3437 = vunpack.c.l.b16 %v3403
  %v3438 = vunpack.c.l.b16 %v3404
  %v3439 = vunpack.c.l.b16 %v3405
  %v3440 = vunpack.c.l.b16 %v3406
  %v3441 = vunpack.c.l.b16 %v3407
  %v3442 = vunpack.c.l.b16 %v3408
  %v3443 = vunpack.c.l.b16 %v3409
  %v3444 = vpack.c.b16 %v3429, %v3428
  %v3445 = vpack.c.b16 %v3431, %v3430
  %v3446 = vpack.c.b16 %v3433, %v3432
  %v3447 = vpack.c.b16 %v3435, %v3434
  %v3448 = vpack.c.b16 %v3437, %v3436
  %v3449 = vpack.c.b16 %v3439, %v3438
  %v3450 = vpack.c.b16 %v3441, %v3440
  %v3451 = vpack.c.b16 %v3443, %v3442
  %3460 = vmatpush.bf16.msra.mxu0 %v3451
  %3461 = vmatpush.bf16.msra.mxu0 %v3450
  %3462 = vmatpush.bf16.msra.mxu0 %v3449
  %3463 = vmatpush.bf16.msra.mxu0 %v3448
  %3464 = vmatpush.bf16.msra.mxu0 %v3447
  %3465 = vmatpush.bf16.msra.mxu0 %v3446
  %3466 = vmatpush.bf16.msra.mxu0 %v3445
  %3467 = vmatpush.bf16.msra.mxu0 %v3444
  %3468 = vmatmul.bf16.gmra.mxu0 %v3393
  %v3469 = vpop.f32.mrf.mxu0
  %v3470 = vadd.f32 %v3411, %v3469
  %v3471 = vpop.f32.mrf.mxu0
  %3472 = vdwg.mxu0
  %v3473 = vsel %vm3354, %v3470, 0.0
  %v3474 = vrot.slane %v3473, 4
  %v3475 = vadd.f32 %v3473, %v3474
  %v3476 = vrot.slane %v3475, 2
  %v3477 = vadd.f32 %v3475, %v3476
  %v3478 = vrot.slane %v3477, 1
  %v3479 = vadd.f32 %v3477, %v3478
  %v3480 = vmul.f32 %v3479, 0.5
  %v3481 = vsub.f32 %v3470, %v3480
  %v3482 = vsel %vm3354, %v3481, 0.0
  %v3483 = vmul.f32 %v3482, %v3482
  %v3484 = vrot.slane %v3483, 4
  %v3485 = vadd.f32 %v3483, %v3484
  %v3486 = vrot.slane %v3485, 2
  %v3487 = vadd.f32 %v3485, %v3486
  %v3488 = vrot.slane %v3487, 1
  %v3489 = vadd.f32 %v3487, %v3488
  %v3490 = vmul.f32 %v3489, 0.5
  %v3491 = vadd.f32 %v3490, 1e-05
  %v3492 = vrsqrt.pop %v3491
  %v3493 = vmul.f32 %v3492, %v3491
  %v3494 = vmul.f32 %v3493, %v3492
  %v3495 = vmul.f32 0.5, %v3494
  %v3496 = vsub.f32 1.5, %v3495
  %v3497 = vmul.f32 %v3492, %v3496
  %vm3498 = vweird.f32 %v3491
  %vm3499 = vweird.f32 %v3492
  %vm3500 = vmor %vm3498, %vm3499
  %v3501 = vsel %vm3500, %v3492, %v3497
  %v3502 = vmul.f32 %v3481, %v3501
  %v3503 = vperm.slane %v3410, 1
  %v3504 = vmul.f32 %v3502, %v3503
  %v3505 = vperm.slane %v3410, 2
  %v3506 = vadd.f32 %v3504, %v3505
  %vm3507 = vcmp.gt.f32.partialorder %v3506, 0.0
  %v3508 = vmul.f32 %v3506, 0.2
  %v3509 = vsel %vm3507, %v3506, %v3508
  %v3510 = vsel %vm3354, %v3509, 0.0
  %v3511 = vpack.c.bf16 %v3510, %v3510
  %v3512 = vld [vmem:[%s5] sm:$0xf]
  %v3513 = vld [vmem:[%s5 + $0x4] sm:$0xf]
  %v3514 = vld [vmem:[%s5 + $0x8] sm:$0xf]
  %v3515 = vld [vmem:[%s5 + $0xc] sm:$0xf]
  %v3516 = vld [vmem:[%s5 + $0x10] sm:$0xf]
  %v3517 = vld [vmem:[%s5 + $0x14] sm:$0xf]
  %v3518 = vld [vmem:[%s5 + $0x18] sm:$0xf]
  %v3519 = vld [vmem:[%s5 + $0x1c] sm:$0xf]
  %v3520 = vld [vmem:[%s5 + $0x20] sm:$0xf]
  %v3521 = vld [vmem:[%s5 + $0x24] sm:$0xf]
  %v3522 = vld [vmem:[%s5 + $0x28] sm:$0xf]
  %v3523 = vld [vmem:[%s5 + $0x2c] sm:$0xf]
  %v3524 = vld [vmem:[%s5 + $0x30] sm:$0xf]
  %v3525 = vld [vmem:[%s5 + $0x34] sm:$0xf]
  %v3526 = vld [vmem:[%s5 + $0x38] sm:$0xf]
  %v3527 = vld [vmem:[%s5 + $0x3c] sm:$0xf]
  %v3528 = vld [vmem:[%s6] sm:$0x1]
  %v3529 = vperm.slane %v3528, 0
  %v3546 = vunpack.c.l.b16 %v3512
  %v3547 = vunpack.c.l.b16 %v3513
  %v3548 = vunpack.c.l.b16 %v3514
  %v3549 = vunpack.c.l.b16 %v3515
  %v3550 = vunpack.c.l.b16 %v3516
  %v3551 = vunpack.c.l.b16 %v3517
  %v3552 = vunpack.c.l.b16 %v3518
  %v3553 = vunpack.c.l.b16 %v3519
  %v3554 = vunpack.c.l.b16 %v3520
  %v3555 = vunpack.c.l.b16 %v3521
  %v3556 = vunpack.c.l.b16 %v3522
  %v3557 = vunpack.c.l.b16 %v3523
  %v3558 = vunpack.c.l.b16 %v3524
  %v3559 = vunpack.c.l.b16 %v3525
  %v3560 = vunpack.c.l.b16 %v3526
  %v3561 = vunpack.c.l.b16 %v3527
  %v3562 = vpack.c.b16 %v3547, %v3546
  %v3563 = vpack.c.b16 %v3549, %v3548
  %v3564 = vpack.c.b16 %v3551, %v3550
  %v3565 = vpack.c.b16 %v3553, %v3552
  %v3566 = vpack.c.b16 %v3555, %v3554
  %v3567 = vpack.c.b16 %v3557, %v3556
  %v3568 = vpack.c.b16 %v3559, %v3558
  %v3569 = vpack.c.b16 %v3561, %v3560
  %3578 = vmatpush.bf16.msra.mxu0 %v3569
  %3579 = vmatpush.bf16.msra.mxu0 %v3568
  %3580 = vmatpush.bf16.msra.mxu0 %v3567
  %3581 = vmatpush.bf16.msra.mxu0 %v3566
  %3582 = vmatpush.bf16.msra.mxu0 %v3565
  %3583 = vmatpush.bf16.msra.mxu0 %v3564
  %3584 = vmatpush.bf16.msra.mxu0 %v3563
  %3585 = vmatpush.bf16.msra.mxu0 %v3562
  %3586 = vmatmul.bf16.gmra.mxu0 %v3511
  %v3587 = vpop.f32.mrf.mxu0
  %v3588 = vadd.f32 %v3529, %v3587
  %v3589 = vpop.f32.mrf.mxu0
  %3590 = vdwg.mxu0
  %3591 = vst [vmem:[%s7] sm:$0xff] %v3588
  // Predicated region
  $region30: #{discriminator_forward.9} parent=0 // pred_check
    _
  $region31: #{discriminator_forward.9} parent=0 // pred_check_branch
    %3593 = sbr.rel (0) target = $region33
  $region32: #{discriminator_forward.9} parent=0 // pred_region
    _
  $region33: #{discriminator_forward.9} parent=0 // pred_fallthru
    _
  // Predicated region
  $region34: #{discriminator_forward.9} parent=0 // pred_check
    _
  $region35: #{discriminator_forward.9} parent=0 // pred_check_branch
    %3595 = sbr.rel (0) target = $region37
  $region36: #{discriminator_forward.9} parent=0 // pred_region
    _
  $region37: #{discriminator_forward.9} parent=0 // pred_fallthru
    _

</llo_original>
